<compile_context>
chip_gen: v5e
topology: v5e:2x2
jax: 0.10.0
libtpu: 0.0.40
codegen_flags: <defaults>
</compile_context>

<pallas_src>
import jax
import jax.numpy as jnp
from jax.experimental import pallas as pl
from jax.experimental.pallas import tpu as pltpu

DENSE_DIM = 198 - 59               # 139 dense features
EMB_DIM = 64
IN_DIM = DENSE_DIM + 2 * EMB_DIM   # 267 (original concat width)
K_PAD = 256                        # dense input / layer-1 K padded lane-dense
HID = 512
OUT_DIM = 500
OUT_PAD = 512                      # lane-dense padded output width


def _round_up(x, m):
    return ((x + m - 1) // m) * m


def _mlp_kernel(x_ref, rb_ref,
                w1_ref,
                w2_ref, b2_ref,
                w3_ref, b3_ref,
                w4_ref, b4_ref,
                w5_ref, b5_ref,
                w6_ref, b6_ref,
                o_ref):
    # Layer 1: dense part on the MXU (bf16 x bf16 -> f32 accumulate); the
    # embedding contributions + b1 arrive pre-folded as the per-row f32 rb_ref.
    h = jnp.dot(x_ref[...], w1_ref[...], preferred_element_type=jnp.float32)
    h = jnp.maximum(h + rb_ref[...], 0.0)
    # Layers 2-5: 512x512 bf16 matmuls + bias + ReLU.
    for w_ref, b_ref in ((w2_ref, b2_ref), (w3_ref, b3_ref),
                         (w4_ref, b4_ref), (w5_ref, b5_ref)):
        h = jnp.dot(h.astype(jnp.bfloat16), w_ref[...],
                    preferred_element_type=jnp.float32)
        h = jnp.maximum(h + b_ref[...], 0.0)
    # Layer 6: linear, output padded to 512 lanes (unmasked stores).
    o_ref[...] = (jnp.dot(h.astype(jnp.bfloat16), w6_ref[...],
                          preferred_element_type=jnp.float32) + b6_ref[...])


def prepare_params(params):
    """One-time prep: pad to lane-dense shapes, cast weights to bf16, fold the
    embedding tables through the matching columns of W1."""
    w1 = params["w1"]                         # [267, 512] f32
    w1_dense = w1[:DENSE_DIM]                 # [139, 512]
    w1_month = w1[DENSE_DIM:DENSE_DIM + EMB_DIM]
    w1_hour = w1[DENSE_DIM + EMB_DIM:]

    prep = {}
    wd = jnp.zeros((K_PAD, HID), jnp.float32).at[:DENSE_DIM].set(w1_dense)
    prep["w1"] = wd.astype(jnp.bfloat16)
    prep["month_table"] = params["month_emb"] @ w1_month      # [12, 512] f32
    prep["hour_table"] = params["hour_emb"] @ w1_hour         # [24, 512] f32
    prep["b1"] = params["b1"]                                  # [1, 512] f32

    for i in range(2, 6):
        prep[f"w{i}"] = params[f"w{i}"].astype(jnp.bfloat16)   # [512, 512]
        prep[f"b{i}"] = params[f"b{i}"]                        # [1, 512] f32

    w6 = jnp.zeros((HID, OUT_PAD), jnp.float32).at[:, :OUT_DIM].set(params["w6"])
    b6 = jnp.zeros((1, OUT_PAD), jnp.float32).at[:, :OUT_DIM].set(params["b6"])
    prep["w6"] = w6.astype(jnp.bfloat16)
    prep["b6"] = b6
    return prep


def unitary_action_model_pallas(inp, prep, *, block_m=None):
    """inp: [B, 141] float32; last two columns are (month, hour) indices as floats."""
    B = inp.shape[0]
    dense = inp[:, :DENSE_DIM]
    month = inp[:, -2].astype(jnp.int32)
    hour = inp[:, -1].astype(jnp.int32)

    # Per-row layer-1 additive term: embeddings folded through W1, plus b1.
    row_bias = (prep["month_table"][month] + prep["hour_table"][hour]
                + prep["b1"])                                   # [B, 512] f32

    if block_m is None:
        block_m = min(256, _round_up(B, 8))
    bm = _round_up(block_m, 8)
    b_pad = _round_up(B, bm)
    grid = (b_pad // bm,)

    x = jnp.zeros((b_pad, K_PAD), jnp.bfloat16)
    x = x.at[:B, :DENSE_DIM].set(dense.astype(jnp.bfloat16))
    rb = jnp.zeros((b_pad, HID), jnp.float32).at[:B].set(row_bias)

    operands = [x, rb, prep["w1"]]
    for i in range(2, 7):
        operands.append(prep[f"w{i}"])
        operands.append(prep[f"b{i}"])

    in_specs = [
        pl.BlockSpec((bm, K_PAD), lambda i: (i, 0)),      # x tile (per batch block)
        pl.BlockSpec((bm, HID), lambda i: (i, 0)),        # row_bias tile
        pl.BlockSpec((K_PAD, HID), lambda i: (0, 0)),     # w1 (VMEM-resident)
    ]
    for _ in range(4):                                     # w2..w5 / b2..b5
        in_specs.append(pl.BlockSpec((HID, HID), lambda i: (0, 0)))
        in_specs.append(pl.BlockSpec((1, HID), lambda i: (0, 0)))
    in_specs.append(pl.BlockSpec((HID, OUT_PAD), lambda i: (0, 0)))  # w6
    in_specs.append(pl.BlockSpec((1, OUT_PAD), lambda i: (0, 0)))    # b6

    weight_elems = K_PAD * HID + 4 * HID * HID + HID * OUT_PAD
    cost = pl.CostEstimate(
        flops=2 * b_pad * weight_elems,
        transcendentals=0,
        bytes_accessed=(weight_elems * 2 + 4 * HID * 4 + OUT_PAD * 4
                        + b_pad * (K_PAD * 2 + HID * 4 + OUT_PAD * 4)),
    )

    out = pl.pallas_call(
        _mlp_kernel,
        out_shape=jax.ShapeDtypeStruct((b_pad, OUT_PAD), jnp.float32),
        grid_spec=pltpu.PrefetchScalarGridSpec(
            num_scalar_prefetch=0,
            grid=grid,
            in_specs=in_specs,
            out_specs=pl.BlockSpec((bm, OUT_PAD), lambda i: (i, 0)),
        ),
        compiler_params=pltpu.CompilerParams(
            dimension_semantics=("parallel",),
            vmem_limit_bytes=32 * 1024 * 1024,
        ),
        cost_estimate=cost,
    )(*operands)
    return out[:B, :OUT_DIM]


def init_params(key):
    """Deterministic synthetic parameters with the same shapes as the torch module."""
    keys = jax.random.split(key, 16)
    dims = [(IN_DIM, HID), (HID, HID), (HID, HID), (HID, HID), (HID, HID), (HID, OUT_DIM)]
    params = {}
    k_idx = 0
    for i, (d_in, d_out) in enumerate(dims, start=1):
        scale = 1.0 / jnp.sqrt(jnp.float32(d_in))
        params[f"w{i}"] = (jax.random.uniform(keys[k_idx], (d_in, d_out),
                                              jnp.float32, -1.0, 1.0) * scale)
        k_idx += 1
        params[f"b{i}"] = (jax.random.uniform(keys[k_idx], (1, d_out),
                                              jnp.float32, -1.0, 1.0) * scale)
        k_idx += 1
    params["month_emb"] = jax.random.normal(keys[k_idx], (12, EMB_DIM), jnp.float32)
    params["hour_emb"] = jax.random.normal(keys[k_idx + 1], (24, EMB_DIM), jnp.float32)
    return params


def reference_forward_f32(inp, params):
    """Pure-f32 JAX reference matching the original torch module semantics."""
    dense = inp[:, :-2]
    month = inp[:, -2].astype(jnp.int32)
    hour = inp[:, -1].astype(jnp.int32)
    x = jnp.concatenate([dense, params["month_emb"][month],
                         params["hour_emb"][hour]], axis=1)
    for i in range(1, 6):
        x = jnp.maximum(x @ params[f"w{i}"] + params[f"b{i}"], 0.0)
    return x @ params["w6"] + params["b6"]


def reference_forward_matched(inp, prep):
    """Plain-JAX reference using the exact same bf16/fold numerics as the kernel."""
    B = inp.shape[0]
    dense = inp[:, :DENSE_DIM]
    month = inp[:, -2].astype(jnp.int32)
    hour = inp[:, -1].astype(jnp.int32)
    x = jnp.zeros((B, K_PAD), jnp.bfloat16).at[:, :DENSE_DIM].set(
        dense.astype(jnp.bfloat16))
    rb = prep["month_table"][month] + prep["hour_table"][hour] + prep["b1"]
    h = jnp.maximum(
        jnp.dot(x, prep["w1"], preferred_element_type=jnp.float32) + rb, 0.0)
    for i in range(2, 6):
        h = jnp.maximum(
            jnp.dot(h.astype(jnp.bfloat16), prep[f"w{i}"],
                    preferred_element_type=jnp.float32) + prep[f"b{i}"], 0.0)
    out = jnp.dot(h.astype(jnp.bfloat16), prep["w6"],
                  preferred_element_type=jnp.float32) + prep["b6"]
    return out[:, :OUT_DIM]


if __name__ == "__main__":
    key = jax.random.PRNGKey(0)
    k_param, k_dense, k_month, k_hour = jax.random.split(key, 4)

    params = init_params(k_param)
    prep = prepare_params(params)

    B = 8
    dense = jax.random.normal(k_dense, (B, DENSE_DIM), jnp.float32)
    month = jax.random.randint(k_month, (B,), 0, 12).astype(jnp.float32)
    hour = jax.random.randint(k_hour, (B,), 0, 24).astype(jnp.float32)
    inp = jnp.concatenate([dense, month[:, None], hour[:, None]], axis=1)  # [B, 141]

    out = unitary_action_model_pallas(inp, prep)
    out = jax.block_until_ready(out)
    assert out.shape == (B, OUT_DIM)

    # Tight check against a reference using identical bf16 numerics.
    ref_matched = reference_forward_matched(inp, prep)
    assert jnp.allclose(out, ref_matched, atol=1e-2, rtol=1e-2), \
        "mismatch vs bf16-matched JAX reference"

    # Loose check against the original all-f32 torch-equivalent semantics
    # (differences are pure bf16 rounding).
    ref_f32 = reference_forward_f32(inp, params)
    assert jnp.allclose(out, ref_f32, atol=1e-1, rtol=1e-1), \
        "mismatch vs f32 JAX reference"

    # Exercise the multi-tile batch grid + batch padding path.
    B2 = 40
    k2a, k2b, k2c = jax.random.split(jax.random.PRNGKey(1), 3)
    dense2 = jax.random.normal(k2a, (B2, DENSE_DIM), jnp.float32)
    month2 = jax.random.randint(k2b, (B2,), 0, 12).astype(jnp.float32)
    hour2 = jax.random.randint(k2c, (B2,), 0, 24).astype(jnp.float32)
    inp2 = jnp.concatenate([dense2, month2[:, None], hour2[:, None]], axis=1)
    out2 = jax.block_until_ready(
        unitary_action_model_pallas(inp2, prep, block_m=16))   # grid = (3,)
    assert out2.shape == (B2, OUT_DIM)
    assert jnp.allclose(out2, reference_forward_matched(inp2, prep),
                        atol=1e-2, rtol=1e-2), "mismatch on gridded batch"

    # TODO(synk): cross-pallas_call weight-resident prefetch (SEMAPHORE/VMEM
    # futures) for repeated tiny-batch serving is left out; weights are still
    # re-DMA'd per call (now ~2.9 MB bf16 instead of ~5.8 MB f32).

    print("KERNEL_OK")
</pallas_src>

<mosaic_0001>
module attributes {stable_mosaic.version = 11 : i64} {
  func.func @_mlp_kernel(%arg0: i32, %arg1: memref<8x256xbf16, #tpu.memory_space<vmem>>, %arg2: memref<8x512xf32, #tpu.memory_space<vmem>>, %arg3: memref<256x512xbf16, #tpu.memory_space<vmem>>, %arg4: memref<512x512xbf16, #tpu.memory_space<vmem>>, %arg5: memref<1x512xf32, #tpu.memory_space<vmem>>, %arg6: memref<512x512xbf16, #tpu.memory_space<vmem>>, %arg7: memref<1x512xf32, #tpu.memory_space<vmem>>, %arg8: memref<512x512xbf16, #tpu.memory_space<vmem>>, %arg9: memref<1x512xf32, #tpu.memory_space<vmem>>, %arg10: memref<512x512xbf16, #tpu.memory_space<vmem>>, %arg11: memref<1x512xf32, #tpu.memory_space<vmem>>, %arg12: memref<512x512xbf16, #tpu.memory_space<vmem>>, %arg13: memref<1x512xf32, #tpu.memory_space<vmem>>, %arg14: memref<8x512xf32, #tpu.memory_space<vmem>>) attributes {dimension_semantics = [#tpu.dimension_semantics<parallel>], iteration_bounds = array<i64: 1>, scalar_prefetch = 0 : i64, scratch_operands = 0 : i64, tpu.core_type = #tpu.core_type<tc>, window_params = [{transform_indices = @transform_0, window_bounds = array<i64: 8, 256>}, {transform_indices = @transform_1, window_bounds = array<i64: 8, 512>}, {pipeline_mode = #tpu.pipeline_mode<synchronous>, transform_indices = @transform_2, window_bounds = array<i64: 256, 512>}, {pipeline_mode = #tpu.pipeline_mode<synchronous>, transform_indices = @transform_3, window_bounds = array<i64: 512, 512>}, {pipeline_mode = #tpu.pipeline_mode<synchronous>, transform_indices = @transform_4, window_bounds = array<i64: 1, 512>}, {pipeline_mode = #tpu.pipeline_mode<synchronous>, transform_indices = @transform_5, window_bounds = array<i64: 512, 512>}, {pipeline_mode = #tpu.pipeline_mode<synchronous>, transform_indices = @transform_6, window_bounds = array<i64: 1, 512>}, {pipeline_mode = #tpu.pipeline_mode<synchronous>, transform_indices = @transform_7, window_bounds = array<i64: 512, 512>}, {pipeline_mode = #tpu.pipeline_mode<synchronous>, transform_indices = @transform_8, window_bounds = array<i64: 1, 512>}, {pipeline_mode = #tpu.pipeline_mode<synchronous>, transform_indices = @transform_9, window_bounds = array<i64: 512, 512>}, {pipeline_mode = #tpu.pipeline_mode<synchronous>, transform_indices = @transform_10, window_bounds = array<i64: 1, 512>}, {pipeline_mode = #tpu.pipeline_mode<synchronous>, transform_indices = @transform_11, window_bounds = array<i64: 512, 512>}, {pipeline_mode = #tpu.pipeline_mode<synchronous>, transform_indices = @transform_12, window_bounds = array<i64: 1, 512>}, {transform_indices = @transform_13, window_bounds = array<i64: 8, 512>}]} {
    %c0 = arith.constant 0 : index
    %c0_0 = arith.constant 0 : index
    %0 = vector.load %arg1[%c0, %c0_0] : memref<8x256xbf16, #tpu.memory_space<vmem>>, vector<8x256xbf16>
    %c0_1 = arith.constant 0 : index
    %c0_2 = arith.constant 0 : index
    %1 = vector.load %arg3[%c0_1, %c0_2] : memref<256x512xbf16, #tpu.memory_space<vmem>>, vector<256x512xbf16>
    %cst = arith.constant dense<0.000000e+00> : vector<8x512xf32>
    %2 = tpu.matmul %0, %1, %cst {dimension_numbers = #tpu.dot_dimension_numbers<[1], [0], [0], [1], [0, 0, 1, 1], [], []>} : vector<8x256xbf16>, vector<256x512xbf16>, vector<8x512xf32> -> vector<8x512xf32>
    %c0_3 = arith.constant 0 : index
    %c0_4 = arith.constant 0 : index
    %3 = vector.load %arg2[%c0_3, %c0_4] : memref<8x512xf32, #tpu.memory_space<vmem>>, vector<8x512xf32>
    %4 = arith.addf %2, %3 : vector<8x512xf32>
    %cst_5 = arith.constant 0.000000e+00 : f32
    %5 = vector.broadcast %cst_5 : f32 to vector<8x512xf32>
    %6 = arith.maximumf %4, %5 : vector<8x512xf32>
    %7 = arith.truncf %6 : vector<8x512xf32> to vector<8x512xbf16>
    %c0_6 = arith.constant 0 : index
    %c0_7 = arith.constant 0 : index
    %8 = vector.load %arg4[%c0_6, %c0_7] : memref<512x512xbf16, #tpu.memory_space<vmem>>, vector<512x512xbf16>
    %cst_8 = arith.constant dense<0.000000e+00> : vector<8x512xf32>
    %9 = tpu.matmul %7, %8, %cst_8 {dimension_numbers = #tpu.dot_dimension_numbers<[1], [0], [0], [1], [0, 0, 1, 1], [], []>} : vector<8x512xbf16>, vector<512x512xbf16>, vector<8x512xf32> -> vector<8x512xf32>
    %c0_9 = arith.constant 0 : index
    %c0_10 = arith.constant 0 : index
    %10 = vector.load %arg5[%c0_9, %c0_10] : memref<1x512xf32, #tpu.memory_space<vmem>>, vector<1x512xf32>
    %11 = vector.broadcast %10 : vector<1x512xf32> to vector<8x512xf32>
    %12 = arith.addf %9, %11 : vector<8x512xf32>
    %cst_11 = arith.constant 0.000000e+00 : f32
    %13 = vector.broadcast %cst_11 : f32 to vector<8x512xf32>
    %14 = arith.maximumf %12, %13 : vector<8x512xf32>
    %15 = arith.truncf %14 : vector<8x512xf32> to vector<8x512xbf16>
    %c0_12 = arith.constant 0 : index
    %c0_13 = arith.constant 0 : index
    %16 = vector.load %arg6[%c0_12, %c0_13] : memref<512x512xbf16, #tpu.memory_space<vmem>>, vector<512x512xbf16>
    %cst_14 = arith.constant dense<0.000000e+00> : vector<8x512xf32>
    %17 = tpu.matmul %15, %16, %cst_14 {dimension_numbers = #tpu.dot_dimension_numbers<[1], [0], [0], [1], [0, 0, 1, 1], [], []>} : vector<8x512xbf16>, vector<512x512xbf16>, vector<8x512xf32> -> vector<8x512xf32>
    %c0_15 = arith.constant 0 : index
    %c0_16 = arith.constant 0 : index
    %18 = vector.load %arg7[%c0_15, %c0_16] : memref<1x512xf32, #tpu.memory_space<vmem>>, vector<1x512xf32>
    %19 = vector.broadcast %18 : vector<1x512xf32> to vector<8x512xf32>
    %20 = arith.addf %17, %19 : vector<8x512xf32>
    %cst_17 = arith.constant 0.000000e+00 : f32
    %21 = vector.broadcast %cst_17 : f32 to vector<8x512xf32>
    %22 = arith.maximumf %20, %21 : vector<8x512xf32>
    %23 = arith.truncf %22 : vector<8x512xf32> to vector<8x512xbf16>
    %c0_18 = arith.constant 0 : index
    %c0_19 = arith.constant 0 : index
    %24 = vector.load %arg8[%c0_18, %c0_19] : memref<512x512xbf16, #tpu.memory_space<vmem>>, vector<512x512xbf16>
    %cst_20 = arith.constant dense<0.000000e+00> : vector<8x512xf32>
    %25 = tpu.matmul %23, %24, %cst_20 {dimension_numbers = #tpu.dot_dimension_numbers<[1], [0], [0], [1], [0, 0, 1, 1], [], []>} : vector<8x512xbf16>, vector<512x512xbf16>, vector<8x512xf32> -> vector<8x512xf32>
    %c0_21 = arith.constant 0 : index
    %c0_22 = arith.constant 0 : index
    %26 = vector.load %arg9[%c0_21, %c0_22] : memref<1x512xf32, #tpu.memory_space<vmem>>, vector<1x512xf32>
    %27 = vector.broadcast %26 : vector<1x512xf32> to vector<8x512xf32>
    %28 = arith.addf %25, %27 : vector<8x512xf32>
    %cst_23 = arith.constant 0.000000e+00 : f32
    %29 = vector.broadcast %cst_23 : f32 to vector<8x512xf32>
    %30 = arith.maximumf %28, %29 : vector<8x512xf32>
    %31 = arith.truncf %30 : vector<8x512xf32> to vector<8x512xbf16>
    %c0_24 = arith.constant 0 : index
    %c0_25 = arith.constant 0 : index
    %32 = vector.load %arg10[%c0_24, %c0_25] : memref<512x512xbf16, #tpu.memory_space<vmem>>, vector<512x512xbf16>
    %cst_26 = arith.constant dense<0.000000e+00> : vector<8x512xf32>
    %33 = tpu.matmul %31, %32, %cst_26 {dimension_numbers = #tpu.dot_dimension_numbers<[1], [0], [0], [1], [0, 0, 1, 1], [], []>} : vector<8x512xbf16>, vector<512x512xbf16>, vector<8x512xf32> -> vector<8x512xf32>
    %c0_27 = arith.constant 0 : index
    %c0_28 = arith.constant 0 : index
    %34 = vector.load %arg11[%c0_27, %c0_28] : memref<1x512xf32, #tpu.memory_space<vmem>>, vector<1x512xf32>
    %35 = vector.broadcast %34 : vector<1x512xf32> to vector<8x512xf32>
    %36 = arith.addf %33, %35 : vector<8x512xf32>
    %cst_29 = arith.constant 0.000000e+00 : f32
    %37 = vector.broadcast %cst_29 : f32 to vector<8x512xf32>
    %38 = arith.maximumf %36, %37 : vector<8x512xf32>
    %39 = arith.truncf %38 : vector<8x512xf32> to vector<8x512xbf16>
    %c0_30 = arith.constant 0 : index
    %c0_31 = arith.constant 0 : index
    %40 = vector.load %arg12[%c0_30, %c0_31] : memref<512x512xbf16, #tpu.memory_space<vmem>>, vector<512x512xbf16>
    %cst_32 = arith.constant dense<0.000000e+00> : vector<8x512xf32>
    %41 = tpu.matmul %39, %40, %cst_32 {dimension_numbers = #tpu.dot_dimension_numbers<[1], [0], [0], [1], [0, 0, 1, 1], [], []>} : vector<8x512xbf16>, vector<512x512xbf16>, vector<8x512xf32> -> vector<8x512xf32>
    %c0_33 = arith.constant 0 : index
    %c0_34 = arith.constant 0 : index
    %42 = vector.load %arg13[%c0_33, %c0_34] : memref<1x512xf32, #tpu.memory_space<vmem>>, vector<1x512xf32>
    %43 = vector.broadcast %42 : vector<1x512xf32> to vector<8x512xf32>
    %44 = arith.addf %41, %43 : vector<8x512xf32>
    %c0_35 = arith.constant 0 : index
    %c0_36 = arith.constant 0 : index
    %45 = vector.load %arg14[%c0_35, %c0_36] : memref<8x512xf32, #tpu.memory_space<vmem>>, vector<8x512xf32>
    tpu.vector_store %arg14[%c0_35, %c0_36], %44 {strides = array<i32>} : memref<8x512xf32, #tpu.memory_space<vmem>>, vector<8x512xf32>,
    return
  }
  func.func @transform_0(%arg0: i32) -> (i32, i32) {
    %c0_i32 = arith.constant 0 : i32
    %c0_i32_0 = arith.constant 0 : i32
    return %arg0, %c0_i32 : i32, i32
  }
  func.func @transform_1(%arg0: i32) -> (i32, i32) {
    %c0_i32 = arith.constant 0 : i32
    %c0_i32_0 = arith.constant 0 : i32
    return %arg0, %c0_i32 : i32, i32
  }
  func.func @transform_2(%arg0: i32) -> (i32, i32) {
    %c0_i32 = arith.constant 0 : i32
    %c0_i32_0 = arith.constant 0 : i32
    %c0_i32_1 = arith.constant 0 : i32
    return %c0_i32, %c0_i32_0 : i32, i32
  }
  func.func @transform_3(%arg0: i32) -> (i32, i32) {
    %c0_i32 = arith.constant 0 : i32
    %c0_i32_0 = arith.constant 0 : i32
    %c0_i32_1 = arith.constant 0 : i32
    return %c0_i32, %c0_i32_0 : i32, i32
  }
  func.func @transform_4(%arg0: i32) -> (i32, i32) {
    %c0_i32 = arith.constant 0 : i32
    %c0_i32_0 = arith.constant 0 : i32
    %c0_i32_1 = arith.constant 0 : i32
    return %c0_i32, %c0_i32_0 : i32, i32
  }
  func.func @transform_5(%arg0: i32) -> (i32, i32) {
    %c0_i32 = arith.constant 0 : i32
    %c0_i32_0 = arith.constant 0 : i32
    %c0_i32_1 = arith.constant 0 : i32
    return %c0_i32, %c0_i32_0 : i32, i32
  }
  func.func @transform_6(%arg0: i32) -> (i32, i32) {
    %c0_i32 = arith.constant 0 : i32
    %c0_i32_0 = arith.constant 0 : i32
    %c0_i32_1 = arith.constant 0 : i32
    return %c0_i32, %c0_i32_0 : i32, i32
  }
  func.func @transform_7(%arg0: i32) -> (i32, i32) {
    %c0_i32 = arith.constant 0 : i32
    %c0_i32_0 = arith.constant 0 : i32
    %c0_i32_1 = arith.constant 0 : i32
    return %c0_i32, %c0_i32_0 : i32, i32
  }
  func.func @transform_8(%arg0: i32) -> (i32, i32) {
    %c0_i32 = arith.constant 0 : i32
    %c0_i32_0 = arith.constant 0 : i32
    %c0_i32_1 = arith.constant 0 : i32
    return %c0_i32, %c0_i32_0 : i32, i32
  }
  func.func @transform_9(%arg0: i32) -> (i32, i32) {
    %c0_i32 = arith.constant 0 : i32
    %c0_i32_0 = arith.constant 0 : i32
    %c0_i32_1 = arith.constant 0 : i32
    return %c0_i32, %c0_i32_0 : i32, i32
  }
  func.func @transform_10(%arg0: i32) -> (i32, i32) {
    %c0_i32 = arith.constant 0 : i32
    %c0_i32_0 = arith.constant 0 : i32
    %c0_i32_1 = arith.constant 0 : i32
    return %c0_i32, %c0_i32_0 : i32, i32
  }
  func.func @transform_11(%arg0: i32) -> (i32, i32) {
    %c0_i32 = arith.constant 0 : i32
    %c0_i32_0 = arith.constant 0 : i32
    %c0_i32_1 = arith.constant 0 : i32
    return %c0_i32, %c0_i32_0 : i32, i32
  }
  func.func @transform_12(%arg0: i32) -> (i32, i32) {
    %c0_i32 = arith.constant 0 : i32
    %c0_i32_0 = arith.constant 0 : i32
    %c0_i32_1 = arith.constant 0 : i32
    return %c0_i32, %c0_i32_0 : i32, i32
  }
  func.func @transform_13(%arg0: i32) -> (i32, i32) {
    %c0_i32 = arith.constant 0 : i32
    %c0_i32_0 = arith.constant 0 : i32
    return %arg0, %c0_i32 : i32, i32
  }
}

</mosaic_0001>

<llo_original>
// kernel: tpu_custom_call.1
$region0: #{tpu_custom_call.1}
  #allocation0 [shape = 'u32[]', space=smem, size = 0x4, offset = 0x4, fixed_abs, tag = 'smem constant byte address 0x4 - core index']
  #allocation1 [shape = 'u32[72,128]{1,0:T(1,128)}', space=vmem, size = 0x9000, scoped, tag = 'internal scratch']
  %s0 = inlined_call_operand.hbm [shape: bf16[8,256], index: 0, kind: input, shape index: {}]
  %s1 = inlined_call_operand.hbm [shape: f32[8,512], index: 1, kind: input, shape index: {}]
  %s2 = inlined_call_operand.hbm [shape: bf16[256,512], index: 2, kind: input, shape index: {}]
  %s3 = inlined_call_operand.hbm [shape: bf16[512,512], index: 3, kind: input, shape index: {}]
  %s4 = inlined_call_operand.hbm [shape: f32[1,512], index: 4, kind: input, shape index: {}]
  %s5 = inlined_call_operand.hbm [shape: bf16[512,512], index: 5, kind: input, shape index: {}]
  %s6 = inlined_call_operand.vmem [shape: f32[1,512], index: 6, kind: input, shape index: {}]
  %s7 = inlined_call_operand.hbm [shape: bf16[512,512], index: 7, kind: input, shape index: {}]
  %s8 = inlined_call_operand.hbm [shape: f32[1,512], index: 8, kind: input, shape index: {}]
  %s9 = inlined_call_operand.hbm [shape: bf16[512,512], index: 9, kind: input, shape index: {}]
  %s10 = inlined_call_operand.vmem [shape: f32[1,512], index: 10, kind: input, shape index: {}]
  %s11 = inlined_call_operand.hbm [shape: bf16[512,512], index: 11, kind: input, shape index: {}]
  %s12 = inlined_call_operand.hbm [shape: f32[1,512], index: 12, kind: input, shape index: {}]
  %s13 = inlined_call_operand.hbm [shape: f32[8,512], index: 13, kind: output, shape index: {}]
  %s14 = sld [smem:[#allocation0]]
  $region106: #{tpu_custom_call.1} parent=0
    _
  %s16 = ssub.s32 1, %s14
  %s17 = scalar_select 0, %s16, %s14
  $region1: #{tpu_custom_call.1} parent=0
    #allocation2 [shape = 'u8[4096]{0}', space=vmem, size = 0x1000, scoped, tag = 'input window, operand 0, single buffered']
    #allocation3 [shape = 's32[1]{0}', space=sflag, size = 0x4, scoped, tag = 'scoped memory for tpu_custom_call.1']
    #allocation4 [shape = 's32[1]{0}', space=sflag, size = 0x4, scoped, tag = 'scoped memory for tpu_custom_call.1']
    #allocation5 [shape = 'u8[16384]{0}', space=vmem, size = 0x4000, scoped, tag = 'input window, operand 1, single buffered']
    #allocation6 [shape = 's32[1]{0}', space=sflag, size = 0x4, scoped, tag = 'scoped memory for tpu_custom_call.1']
    #allocation7 [shape = 'u8[262144]{0}', space=vmem, size = 0x40000, scoped, tag = 'input window, operand 2, single buffered']
    #allocation8 [shape = 'u8[524288]{0}', space=vmem, size = 0x80000, scoped, tag = 'input window, operand 3, single buffered']
    #allocation9 [shape = 's32[1]{0}', space=sflag, size = 0x4, scoped, tag = 'scoped memory for tpu_custom_call.1']
    #allocation10 [shape = 'u8[2048]{0}', space=vmem, size = 0x800, scoped, tag = 'input window, operand 4, single buffered']
    #allocation11 [shape = 'u8[524288]{0}', space=vmem, size = 0x80000, scoped, tag = 'input window, operand 5, single buffered']
    #allocation12 [shape = 's32[1]{0}', space=sflag, size = 0x4, scoped, tag = 'scoped memory for tpu_custom_call.1']
    #allocation13 [shape = 'u8[524288]{0}', space=vmem, size = 0x80000, scoped, tag = 'input window, operand 7, single buffered']
    #allocation14 [shape = 'u8[2048]{0}', space=vmem, size = 0x800, scoped, tag = 'input window, operand 8, single buffered']
    #allocation15 [shape = 's32[1]{0}', space=sflag, size = 0x4, scoped, tag = 'scoped memory for tpu_custom_call.1']
    #allocation16 [shape = 'u8[524288]{0}', space=vmem, size = 0x80000, scoped, tag = 'input window, operand 9, single buffered']
    #allocation17 [shape = 'u8[524288]{0}', space=vmem, size = 0x80000, scoped, tag = 'input window, operand 11, single buffered']
    #allocation18 [shape = 's32[1]{0}', space=sflag, size = 0x4, scoped, tag = 'scoped memory for tpu_custom_call.1']
    #allocation19 [shape = 'u8[2048]{0}', space=vmem, size = 0x800, scoped, tag = 'input window, operand 12, single buffered']
    #allocation20 [shape = 'u8[16384]{0}', space=vmem, size = 0x4000, scoped, tag = 'output window, operand 0, single buffered']
    %18 = vsyncpa [#allocation3], 0
    %19 = vsyncpa [#allocation6], 0
    %20 = vsyncpa [#allocation9], 0
    %21 = vsyncpa [#allocation12], 0
    %22 = vsyncpa [#allocation15], 0
    %23 = vsyncpa [#allocation18], 0
    %24 = vsyncpa [#allocation4], 0
    // Predicated region
    $region2: #{tpu_custom_call.1} parent=1 // pred_check
      _
    $region3: #{tpu_custom_call.1} parent=1 // pred_check_branch
      %26 = sbr.rel (0) target = $region5
    $region4: #{tpu_custom_call.1} parent=1 // pred_region
      %28 = vsyncadd [#allocation3], 0
      %s30 = sshll.u32 %s0, 4
      %s31 = int_to_ptr.hbm [resolvable:$true] %s30
      %s32 = sshll.u32 [#allocation2], 4
      %s33 = int_to_ptr.vmem [resolvable:$true] %s32
      %35 = dma.hbm_to_vmem [thread:$0]  %s31, 128, %s33, [#allocation3]
    $region5: #{tpu_custom_call.1} parent=1 // pred_fallthru
      _
    // Predicated region
    $region6: #{tpu_custom_call.1} parent=1 // pred_check
      _
    $region7: #{tpu_custom_call.1} parent=1 // pred_check_branch
      %37 = sbr.rel (0) target = $region9
    $region8: #{tpu_custom_call.1} parent=1 // pred_region
      %39 = vsyncadd [#allocation6], 0
      %s41 = sshll.u32 %s1, 4
      %s42 = int_to_ptr.hbm [resolvable:$true] %s41
      %s43 = sshll.u32 [#allocation5], 4
      %s44 = int_to_ptr.vmem [resolvable:$true] %s43
      %46 = dma.hbm_to_vmem [thread:$0]  %s42, 512, %s44, [#allocation6]
    $region9: #{tpu_custom_call.1} parent=1 // pred_fallthru
      _
    // Predicated region
    $region10: #{tpu_custom_call.1} parent=1 // pred_check
      _
    $region11: #{tpu_custom_call.1} parent=1 // pred_check_branch
      %48 = sbr.rel (0) target = $region13
    $region12: #{tpu_custom_call.1} parent=1 // pred_region
      %50 = vsyncadd [#allocation6], 0
      %s51 = sshll.u32 %s2, 4
      %s52 = int_to_ptr.hbm [resolvable:$true] %s51
      %s53 = sshll.u32 [#allocation7], 4
      %s54 = int_to_ptr.vmem [resolvable:$true] %s53
      %59 = dma.hbm_to_vmem [thread:$0]  %s52, 8192, %s54, [#allocation6], 256, 256, 16
    $region13: #{tpu_custom_call.1} parent=1 // pred_fallthru
      _
    // Predicated region
    $region14: #{tpu_custom_call.1} parent=1 // pred_check
      _
    $region15: #{tpu_custom_call.1} parent=1 // pred_check_branch
      %61 = sbr.rel (0) target = $region17
    $region16: #{tpu_custom_call.1} parent=1 // pred_region
      %63 = vsyncadd [#allocation9], 0
      %s64 = sshll.u32 %s3, 4
      %s65 = int_to_ptr.hbm [resolvable:$true] %s64
      %s66 = sshll.u32 [#allocation8], 4
      %s67 = int_to_ptr.vmem [resolvable:$true] %s66
      %72 = dma.hbm_to_vmem [thread:$0]  %s65, 16384, %s67, [#allocation9], 256, 256, 16
    $region17: #{tpu_custom_call.1} parent=1 // pred_fallthru
      _
    // Predicated region
    $region18: #{tpu_custom_call.1} parent=1 // pred_check
      _
    $region19: #{tpu_custom_call.1} parent=1 // pred_check_branch
      %74 = sbr.rel (0) target = $region21
    $region20: #{tpu_custom_call.1} parent=1 // pred_region
      %76 = vsyncadd [#allocation9], 0
      %s78 = sshll.u32 %s4, 4
      %s79 = int_to_ptr.hbm [resolvable:$true] %s78
      %s80 = sshll.u32 [#allocation10], 4
      %s81 = int_to_ptr.vmem [resolvable:$true] %s80
      %83 = dma.hbm_to_vmem [thread:$0]  %s79, 64, %s81, [#allocation9]
    $region21: #{tpu_custom_call.1} parent=1 // pred_fallthru
      _
    // Predicated region
    $region22: #{tpu_custom_call.1} parent=1 // pred_check
      _
    $region23: #{tpu_custom_call.1} parent=1 // pred_check_branch
      %85 = sbr.rel (0) target = $region25
    $region24: #{tpu_custom_call.1} parent=1 // pred_region
      %87 = vsyncadd [#allocation12], 0
      %s88 = sshll.u32 %s5, 4
      %s89 = int_to_ptr.hbm [resolvable:$true] %s88
      %s90 = sshll.u32 [#allocation11], 4
      %s91 = int_to_ptr.vmem [resolvable:$true] %s90
      %96 = dma.hbm_to_vmem [thread:$0]  %s89, 16384, %s91, [#allocation12], 256, 256, 16
    $region25: #{tpu_custom_call.1} parent=1 // pred_fallthru
      _
    // Predicated region
    $region26: #{tpu_custom_call.1} parent=1 // pred_check
      _
    $region27: #{tpu_custom_call.1} parent=1 // pred_check_branch
      %98 = sbr.rel (0) target = $region29
    $region28: #{tpu_custom_call.1} parent=1 // pred_region
      _
    $region29: #{tpu_custom_call.1} parent=1 // pred_fallthru
      _
    // Predicated region
    $region30: #{tpu_custom_call.1} parent=1 // pred_check
      _
    $region31: #{tpu_custom_call.1} parent=1 // pred_check_branch
      %100 = sbr.rel (0) target = $region33
    $region32: #{tpu_custom_call.1} parent=1 // pred_region
      %102 = vsyncadd [#allocation12], 0
      %s103 = sshll.u32 %s7, 4
      %s104 = int_to_ptr.hbm [resolvable:$true] %s103
      %s105 = sshll.u32 [#allocation13], 4
      %s106 = int_to_ptr.vmem [resolvable:$true] %s105
      %111 = dma.hbm_to_vmem [thread:$0]  %s104, 16384, %s106, [#allocation12], 256, 256, 16
    $region33: #{tpu_custom_call.1} parent=1 // pred_fallthru
      _
    // Predicated region
    $region34: #{tpu_custom_call.1} parent=1 // pred_check
      _
    $region35: #{tpu_custom_call.1} parent=1 // pred_check_branch
      %113 = sbr.rel (0) target = $region37
    $region36: #{tpu_custom_call.1} parent=1 // pred_region
      %115 = vsyncadd [#allocation15], 0
      %s117 = sshll.u32 %s8, 4
      %s118 = int_to_ptr.hbm [resolvable:$true] %s117
      %s119 = sshll.u32 [#allocation14], 4
      %s120 = int_to_ptr.vmem [resolvable:$true] %s119
      %122 = dma.hbm_to_vmem [thread:$0]  %s118, 64, %s120, [#allocation15]
    $region37: #{tpu_custom_call.1} parent=1 // pred_fallthru
      _
    // Predicated region
    $region38: #{tpu_custom_call.1} parent=1 // pred_check
      _
    $region39: #{tpu_custom_call.1} parent=1 // pred_check_branch
      %124 = sbr.rel (0) target = $region41
    $region40: #{tpu_custom_call.1} parent=1 // pred_region
      %126 = vsyncadd [#allocation15], 0
      %s127 = sshll.u32 %s9, 4
      %s128 = int_to_ptr.hbm [resolvable:$true] %s127
      %s129 = sshll.u32 [#allocation16], 4
      %s130 = int_to_ptr.vmem [resolvable:$true] %s129
      %135 = dma.hbm_to_vmem [thread:$0]  %s128, 16384, %s130, [#allocation15], 256, 256, 16
    $region41: #{tpu_custom_call.1} parent=1 // pred_fallthru
      _
    // Predicated region
    $region42: #{tpu_custom_call.1} parent=1 // pred_check
      _
    $region43: #{tpu_custom_call.1} parent=1 // pred_check_branch
      %137 = sbr.rel (0) target = $region45
    $region44: #{tpu_custom_call.1} parent=1 // pred_region
      _
    $region45: #{tpu_custom_call.1} parent=1 // pred_fallthru
      _
    // Predicated region
    $region46: #{tpu_custom_call.1} parent=1 // pred_check
      _
    $region47: #{tpu_custom_call.1} parent=1 // pred_check_branch
      %139 = sbr.rel (0) target = $region49
    $region48: #{tpu_custom_call.1} parent=1 // pred_region
      %141 = vsyncadd [#allocation18], 0
      %s142 = sshll.u32 %s11, 4
      %s143 = int_to_ptr.hbm [resolvable:$true] %s142
      %s144 = sshll.u32 [#allocation17], 4
      %s145 = int_to_ptr.vmem [resolvable:$true] %s144
      %150 = dma.hbm_to_vmem [thread:$0]  %s143, 16384, %s145, [#allocation18], 256, 256, 16
    $region49: #{tpu_custom_call.1} parent=1 // pred_fallthru
      _
    // Predicated region
    $region50: #{tpu_custom_call.1} parent=1 // pred_check
      _
    $region51: #{tpu_custom_call.1} parent=1 // pred_check_branch
      %152 = sbr.rel (0) target = $region53
    $region52: #{tpu_custom_call.1} parent=1 // pred_region
      %154 = vsyncadd [#allocation18], 0
      %s156 = sshll.u32 %s12, 4
      %s157 = int_to_ptr.hbm [resolvable:$true] %s156
      %s158 = sshll.u32 [#allocation19], 4
      %s159 = int_to_ptr.vmem [resolvable:$true] %s158
      %161 = dma.hbm_to_vmem [thread:$0]  %s157, 64, %s159, [#allocation18]
    $region53: #{tpu_custom_call.1} parent=1 // pred_fallthru
      _
    // Predicated region
    $region54: #{tpu_custom_call.1} parent=1 // pred_check
      _
    $region55: #{tpu_custom_call.1} parent=1 // pred_check_branch
      %163 = sbr.rel (0) target = $region57
    $region56: #{tpu_custom_call.1} parent=1 // pred_region
      %165 = dma.done [#allocation3], 128
    $region57: #{tpu_custom_call.1} parent=1 // pred_fallthru
      _
    // Predicated region
    $region58: #{tpu_custom_call.1} parent=1 // pred_check
      _
    $region59: #{tpu_custom_call.1} parent=1 // pred_check_branch
      %167 = sbr.rel (0) target = $region61
    $region60: #{tpu_custom_call.1} parent=1 // pred_region
      %169 = dma.done [#allocation6], 512
    $region61: #{tpu_custom_call.1} parent=1 // pred_fallthru
      _
    // Predicated region
    $region62: #{tpu_custom_call.1} parent=1 // pred_check
      _
    $region63: #{tpu_custom_call.1} parent=1 // pred_check_branch
      %171 = sbr.rel (0) target = $region65
    $region64: #{tpu_custom_call.1} parent=1 // pred_region
      %173 = dma.done [#allocation6], 8192
    $region65: #{tpu_custom_call.1} parent=1 // pred_fallthru
      _
    // Predicated region
    $region66: #{tpu_custom_call.1} parent=1 // pred_check
      _
    $region67: #{tpu_custom_call.1} parent=1 // pred_check_branch
      %175 = sbr.rel (0) target = $region69
    $region68: #{tpu_custom_call.1} parent=1 // pred_region
      %177 = dma.done [#allocation9], 16384
    $region69: #{tpu_custom_call.1} parent=1 // pred_fallthru
      _
    // Predicated region
    $region70: #{tpu_custom_call.1} parent=1 // pred_check
      _
    $region71: #{tpu_custom_call.1} parent=1 // pred_check_branch
      %179 = sbr.rel (0) target = $region73
    $region72: #{tpu_custom_call.1} parent=1 // pred_region
      %181 = dma.done [#allocation9], 64
    $region73: #{tpu_custom_call.1} parent=1 // pred_fallthru
      _
    // Predicated region
    $region74: #{tpu_custom_call.1} parent=1 // pred_check
      _
    $region75: #{tpu_custom_call.1} parent=1 // pred_check_branch
      %183 = sbr.rel (0) target = $region77
    $region76: #{tpu_custom_call.1} parent=1 // pred_region
      %185 = dma.done [#allocation12], 16384
    $region77: #{tpu_custom_call.1} parent=1 // pred_fallthru
      _
    // Predicated region
    $region78: #{tpu_custom_call.1} parent=1 // pred_check
      _
    $region79: #{tpu_custom_call.1} parent=1 // pred_check_branch
      %187 = sbr.rel (0) target = $region81
    $region80: #{tpu_custom_call.1} parent=1 // pred_region
      %189 = dma.done [#allocation12], 16384
    $region81: #{tpu_custom_call.1} parent=1 // pred_fallthru
      _
    // Predicated region
    $region82: #{tpu_custom_call.1} parent=1 // pred_check
      _
    $region83: #{tpu_custom_call.1} parent=1 // pred_check_branch
      %191 = sbr.rel (0) target = $region85
    $region84: #{tpu_custom_call.1} parent=1 // pred_region
      %193 = dma.done [#allocation15], 64
    $region85: #{tpu_custom_call.1} parent=1 // pred_fallthru
      _
    // Predicated region
    $region86: #{tpu_custom_call.1} parent=1 // pred_check
      _
    $region87: #{tpu_custom_call.1} parent=1 // pred_check_branch
      %195 = sbr.rel (0) target = $region89
    $region88: #{tpu_custom_call.1} parent=1 // pred_region
      %197 = dma.done [#allocation15], 16384
    $region89: #{tpu_custom_call.1} parent=1 // pred_fallthru
      _
    // Predicated region
    $region90: #{tpu_custom_call.1} parent=1 // pred_check
      _
    $region91: #{tpu_custom_call.1} parent=1 // pred_check_branch
      %199 = sbr.rel (0) target = $region93
    $region92: #{tpu_custom_call.1} parent=1 // pred_region
      %201 = dma.done [#allocation18], 16384
    $region93: #{tpu_custom_call.1} parent=1 // pred_fallthru
      _
    // Predicated region
    $region94: #{tpu_custom_call.1} parent=1 // pred_check
      _
    $region95: #{tpu_custom_call.1} parent=1 // pred_check_branch
      %203 = sbr.rel (0) target = $region97
    $region96: #{tpu_custom_call.1} parent=1 // pred_region
      %205 = dma.done [#allocation18], 64
    $region97: #{tpu_custom_call.1} parent=1 // pred_fallthru
      _
    %v206 = vld [vmem:[#allocation2] sm:$0xff]
    %v207 = vld [vmem:[#allocation7] sm:$0xff]
    %v208 = vld [vmem:[#allocation7 + $0x8] sm:$0xff]
    %v209 = vld [vmem:[#allocation7 + $0x10] sm:$0xff]
    %v210 = vld [vmem:[#allocation7 + $0x18] sm:$0xff]
    %v211 = vld [vmem:[#allocation7 + $0x20] sm:$0xff]
    %v212 = vld [vmem:[#allocation7 + $0x28] sm:$0xff]
    %v213 = vld [vmem:[#allocation7 + $0x30] sm:$0xff]
    %v214 = vld [vmem:[#allocation7 + $0x38] sm:$0xff]
    %v215 = vld [vmem:[#allocation7 + $0x40] sm:$0xff]
    %v216 = vld [vmem:[#allocation7 + $0x48] sm:$0xff]
    %v217 = vld [vmem:[#allocation7 + $0x50] sm:$0xff]
    %v218 = vld [vmem:[#allocation7 + $0x58] sm:$0xff]
    %v219 = vld [vmem:[#allocation7 + $0x60] sm:$0xff]
    %v220 = vld [vmem:[#allocation7 + $0x68] sm:$0xff]
    %v221 = vld [vmem:[#allocation7 + $0x70] sm:$0xff]
    %v222 = vld [vmem:[#allocation7 + $0x78] sm:$0xff]
    %v223 = vld [vmem:[#allocation7 + $0x80] sm:$0xff]
    %v224 = vld [vmem:[#allocation7 + $0x88] sm:$0xff]
    %v225 = vld [vmem:[#allocation7 + $0x90] sm:$0xff]
    %v226 = vld [vmem:[#allocation7 + $0x98] sm:$0xff]
    %v227 = vld [vmem:[#allocation7 + $0xa0] sm:$0xff]
    %v228 = vld [vmem:[#allocation7 + $0xa8] sm:$0xff]
    %v229 = vld [vmem:[#allocation7 + $0xb0] sm:$0xff]
    %v230 = vld [vmem:[#allocation7 + $0xb8] sm:$0xff]
    %v231 = vld [vmem:[#allocation7 + $0xc0] sm:$0xff]
    %v232 = vld [vmem:[#allocation7 + $0xc8] sm:$0xff]
    %v233 = vld [vmem:[#allocation7 + $0xd0] sm:$0xff]
    %v234 = vld [vmem:[#allocation7 + $0xd8] sm:$0xff]
    %v235 = vld [vmem:[#allocation7 + $0xe0] sm:$0xff]
    %v236 = vld [vmem:[#allocation7 + $0xe8] sm:$0xff]
    %v237 = vld [vmem:[#allocation7 + $0xf0] sm:$0xff]
    %v238 = vld [vmem:[#allocation7 + $0xf8] sm:$0xff]
    %v239 = vld [vmem:[#allocation7 + $0x100] sm:$0xff]
    %v240 = vld [vmem:[#allocation7 + $0x108] sm:$0xff]
    %v241 = vld [vmem:[#allocation7 + $0x110] sm:$0xff]
    %v242 = vld [vmem:[#allocation7 + $0x118] sm:$0xff]
    %v243 = vld [vmem:[#allocation7 + $0x120] sm:$0xff]
    %v244 = vld [vmem:[#allocation7 + $0x128] sm:$0xff]
    %v245 = vld [vmem:[#allocation7 + $0x130] sm:$0xff]
    %v246 = vld [vmem:[#allocation7 + $0x138] sm:$0xff]
    %v247 = vld [vmem:[#allocation7 + $0x140] sm:$0xff]
    %v248 = vld [vmem:[#allocation7 + $0x148] sm:$0xff]
    %v249 = vld [vmem:[#allocation7 + $0x150] sm:$0xff]
    %v250 = vld [vmem:[#allocation7 + $0x158] sm:$0xff]
    %v251 = vld [vmem:[#allocation7 + $0x160] sm:$0xff]
    %v252 = vld [vmem:[#allocation7 + $0x168] sm:$0xff]
    %v253 = vld [vmem:[#allocation7 + $0x170] sm:$0xff]
    %v254 = vld [vmem:[#allocation7 + $0x178] sm:$0xff]
    %v255 = vld [vmem:[#allocation7 + $0x180] sm:$0xff]
    %v256 = vld [vmem:[#allocation7 + $0x188] sm:$0xff]
    %v257 = vld [vmem:[#allocation7 + $0x190] sm:$0xff]
    %v258 = vld [vmem:[#allocation7 + $0x198] sm:$0xff]
    %v259 = vld [vmem:[#allocation7 + $0x1a0] sm:$0xff]
    %v260 = vld [vmem:[#allocation7 + $0x1a8] sm:$0xff]
    %v261 = vld [vmem:[#allocation7 + $0x1b0] sm:$0xff]
    %v262 = vld [vmem:[#allocation7 + $0x1b8] sm:$0xff]
    %v263 = vld [vmem:[#allocation7 + $0x1c0] sm:$0xff]
    %v264 = vld [vmem:[#allocation7 + $0x1c8] sm:$0xff]
    %v265 = vld [vmem:[#allocation7 + $0x1d0] sm:$0xff]
    %v266 = vld [vmem:[#allocation7 + $0x1d8] sm:$0xff]
    %v267 = vld [vmem:[#allocation7 + $0x1e0] sm:$0xff]
    %v268 = vld [vmem:[#allocation7 + $0x1e8] sm:$0xff]
    %v269 = vld [vmem:[#allocation7 + $0x1f0] sm:$0xff]
    %v270 = vld [vmem:[#allocation7 + $0x1f8] sm:$0xff]
    %v271 = vld [vmem:[#allocation5] sm:$0xff]
    %v272 = vld [vmem:[#allocation5 + $0x8] sm:$0xff]
    %v273 = vld [vmem:[#allocation5 + $0x10] sm:$0xff]
    %v274 = vld [vmem:[#allocation5 + $0x18] sm:$0xff]
    %v276 = vunpack.c.l.b16 %v206
    %v277 = vunpack.c.h.b16 %v206
    %v278 = vpack.c.b16 %v276, %v276
    %v279 = vpack.c.b16 %v277, %v277
    %v346 = vunpack.c.l.b16 %v207
    %v347 = vunpack.c.h.b16 %v207
    %v348 = vunpack.c.l.b16 %v208
    %v349 = vunpack.c.h.b16 %v208
    %v350 = vunpack.c.l.b16 %v209
    %v351 = vunpack.c.h.b16 %v209
    %v352 = vunpack.c.l.b16 %v210
    %v353 = vunpack.c.h.b16 %v210
    %v354 = vunpack.c.l.b16 %v211
    %v355 = vunpack.c.h.b16 %v211
    %v356 = vunpack.c.l.b16 %v212
    %v357 = vunpack.c.h.b16 %v212
    %v358 = vunpack.c.l.b16 %v213
    %v359 = vunpack.c.h.b16 %v213
    %v360 = vunpack.c.l.b16 %v214
    %v361 = vunpack.c.h.b16 %v214
    %v362 = vunpack.c.l.b16 %v215
    %v363 = vunpack.c.h.b16 %v215
    %v364 = vunpack.c.l.b16 %v216
    %v365 = vunpack.c.h.b16 %v216
    %v366 = vunpack.c.l.b16 %v217
    %v367 = vunpack.c.h.b16 %v217
    %v368 = vunpack.c.l.b16 %v218
    %v369 = vunpack.c.h.b16 %v218
    %v370 = vunpack.c.l.b16 %v219
    %v371 = vunpack.c.h.b16 %v219
    %v372 = vunpack.c.l.b16 %v220
    %v373 = vunpack.c.h.b16 %v220
    %v374 = vunpack.c.l.b16 %v221
    %v375 = vunpack.c.h.b16 %v221
    %v376 = vunpack.c.l.b16 %v222
    %v377 = vunpack.c.h.b16 %v222
    %v378 = vunpack.c.l.b16 %v223
    %v379 = vunpack.c.h.b16 %v223
    %v380 = vunpack.c.l.b16 %v224
    %v381 = vunpack.c.h.b16 %v224
    %v382 = vunpack.c.l.b16 %v225
    %v383 = vunpack.c.h.b16 %v225
    %v384 = vunpack.c.l.b16 %v226
    %v385 = vunpack.c.h.b16 %v226
    %v386 = vunpack.c.l.b16 %v227
    %v387 = vunpack.c.h.b16 %v227
    %v388 = vunpack.c.l.b16 %v228
    %v389 = vunpack.c.h.b16 %v228
    %v390 = vunpack.c.l.b16 %v229
    %v391 = vunpack.c.h.b16 %v229
    %v392 = vunpack.c.l.b16 %v230
    %v393 = vunpack.c.h.b16 %v230
    %v394 = vunpack.c.l.b16 %v231
    %v395 = vunpack.c.h.b16 %v231
    %v396 = vunpack.c.l.b16 %v232
    %v397 = vunpack.c.h.b16 %v232
    %v398 = vunpack.c.l.b16 %v233
    %v399 = vunpack.c.h.b16 %v233
    %v400 = vunpack.c.l.b16 %v234
    %v401 = vunpack.c.h.b16 %v234
    %v402 = vunpack.c.l.b16 %v235
    %v403 = vunpack.c.h.b16 %v235
    %v404 = vunpack.c.l.b16 %v236
    %v405 = vunpack.c.h.b16 %v236
    %v406 = vunpack.c.l.b16 %v237
    %v407 = vunpack.c.h.b16 %v237
    %v408 = vunpack.c.l.b16 %v238
    %v409 = vunpack.c.h.b16 %v238
    %v410 = vunpack.c.l.b16 %v239
    %v411 = vunpack.c.h.b16 %v239
    %v412 = vunpack.c.l.b16 %v240
    %v413 = vunpack.c.h.b16 %v240
    %v414 = vunpack.c.l.b16 %v241
    %v415 = vunpack.c.h.b16 %v241
    %v416 = vunpack.c.l.b16 %v242
    %v417 = vunpack.c.h.b16 %v242
    %v418 = vunpack.c.l.b16 %v243
    %v419 = vunpack.c.h.b16 %v243
    %v420 = vunpack.c.l.b16 %v244
    %v421 = vunpack.c.h.b16 %v244
    %v422 = vunpack.c.l.b16 %v245
    %v423 = vunpack.c.h.b16 %v245
    %v424 = vunpack.c.l.b16 %v246
    %v425 = vunpack.c.h.b16 %v246
    %v426 = vunpack.c.l.b16 %v247
    %v427 = vunpack.c.h.b16 %v247
    %v428 = vunpack.c.l.b16 %v248
    %v429 = vunpack.c.h.b16 %v248
    %v430 = vunpack.c.l.b16 %v249
    %v431 = vunpack.c.h.b16 %v249
    %v432 = vunpack.c.l.b16 %v250
    %v433 = vunpack.c.h.b16 %v250
    %v434 = vunpack.c.l.b16 %v251
    %v435 = vunpack.c.h.b16 %v251
    %v436 = vunpack.c.l.b16 %v252
    %v437 = vunpack.c.h.b16 %v252
    %v438 = vunpack.c.l.b16 %v253
    %v439 = vunpack.c.h.b16 %v253
    %v440 = vunpack.c.l.b16 %v254
    %v441 = vunpack.c.h.b16 %v254
    %v442 = vunpack.c.l.b16 %v255
    %v443 = vunpack.c.h.b16 %v255
    %v444 = vunpack.c.l.b16 %v256
    %v445 = vunpack.c.h.b16 %v256
    %v446 = vunpack.c.l.b16 %v257
    %v447 = vunpack.c.h.b16 %v257
    %v448 = vunpack.c.l.b16 %v258
    %v449 = vunpack.c.h.b16 %v258
    %v450 = vunpack.c.l.b16 %v259
    %v451 = vunpack.c.h.b16 %v259
    %v452 = vunpack.c.l.b16 %v260
    %v453 = vunpack.c.h.b16 %v260
    %v454 = vunpack.c.l.b16 %v261
    %v455 = vunpack.c.h.b16 %v261
    %v456 = vunpack.c.l.b16 %v262
    %v457 = vunpack.c.h.b16 %v262
    %v458 = vunpack.c.l.b16 %v263
    %v459 = vunpack.c.h.b16 %v263
    %v460 = vunpack.c.l.b16 %v264
    %v461 = vunpack.c.h.b16 %v264
    %v462 = vunpack.c.l.b16 %v265
    %v463 = vunpack.c.h.b16 %v265
    %v464 = vunpack.c.l.b16 %v266
    %v465 = vunpack.c.h.b16 %v266
    %v466 = vunpack.c.l.b16 %v267
    %v467 = vunpack.c.h.b16 %v267
    %v468 = vunpack.c.l.b16 %v268
    %v469 = vunpack.c.h.b16 %v268
    %v470 = vunpack.c.l.b16 %v269
    %v471 = vunpack.c.h.b16 %v269
    %v472 = vunpack.c.l.b16 %v270
    %v473 = vunpack.c.h.b16 %v270
    %v474 = vpack.c.b16 %v350, %v346
    %v475 = vpack.c.b16 %v351, %v347
    %v476 = vpack.c.b16 %v352, %v348
    %v477 = vpack.c.b16 %v353, %v349
    %v478 = vpack.c.b16 %v358, %v354
    %v479 = vpack.c.b16 %v359, %v355
    %v480 = vpack.c.b16 %v360, %v356
    %v481 = vpack.c.b16 %v361, %v357
    %v482 = vpack.c.b16 %v366, %v362
    %v483 = vpack.c.b16 %v367, %v363
    %v484 = vpack.c.b16 %v368, %v364
    %v485 = vpack.c.b16 %v369, %v365
    %v486 = vpack.c.b16 %v374, %v370
    %v487 = vpack.c.b16 %v375, %v371
    %v488 = vpack.c.b16 %v376, %v372
    %v489 = vpack.c.b16 %v377, %v373
    %v490 = vpack.c.b16 %v382, %v378
    %v491 = vpack.c.b16 %v383, %v379
    %v492 = vpack.c.b16 %v384, %v380
    %v493 = vpack.c.b16 %v385, %v381
    %v494 = vpack.c.b16 %v390, %v386
    %v495 = vpack.c.b16 %v391, %v387
    %v496 = vpack.c.b16 %v392, %v388
    %v497 = vpack.c.b16 %v393, %v389
    %v498 = vpack.c.b16 %v398, %v394
    %v499 = vpack.c.b16 %v399, %v395
    %v500 = vpack.c.b16 %v400, %v396
    %v501 = vpack.c.b16 %v401, %v397
    %v502 = vpack.c.b16 %v406, %v402
    %v503 = vpack.c.b16 %v407, %v403
    %v504 = vpack.c.b16 %v408, %v404
    %v505 = vpack.c.b16 %v409, %v405
    %v506 = vpack.c.b16 %v414, %v410
    %v507 = vpack.c.b16 %v415, %v411
    %v508 = vpack.c.b16 %v416, %v412
    %v509 = vpack.c.b16 %v417, %v413
    %v510 = vpack.c.b16 %v422, %v418
    %v511 = vpack.c.b16 %v423, %v419
    %v512 = vpack.c.b16 %v424, %v420
    %v513 = vpack.c.b16 %v425, %v421
    %v514 = vpack.c.b16 %v430, %v426
    %v515 = vpack.c.b16 %v431, %v427
    %v516 = vpack.c.b16 %v432, %v428
    %v517 = vpack.c.b16 %v433, %v429
    %v518 = vpack.c.b16 %v438, %v434
    %v519 = vpack.c.b16 %v439, %v435
    %v520 = vpack.c.b16 %v440, %v436
    %v521 = vpack.c.b16 %v441, %v437
    %v522 = vpack.c.b16 %v446, %v442
    %v523 = vpack.c.b16 %v447, %v443
    %v524 = vpack.c.b16 %v448, %v444
    %v525 = vpack.c.b16 %v449, %v445
    %v526 = vpack.c.b16 %v454, %v450
    %v527 = vpack.c.b16 %v455, %v451
    %v528 = vpack.c.b16 %v456, %v452
    %v529 = vpack.c.b16 %v457, %v453
    %v530 = vpack.c.b16 %v462, %v458
    %v531 = vpack.c.b16 %v463, %v459
    %v532 = vpack.c.b16 %v464, %v460
    %v533 = vpack.c.b16 %v465, %v461
    %v534 = vpack.c.b16 %v470, %v466
    %v535 = vpack.c.b16 %v471, %v467
    %v536 = vpack.c.b16 %v472, %v468
    %v537 = vpack.c.b16 %v473, %v469
    %602 = vmatpush.bf16.msra.mxu0 %v502
    %603 = vmatpush.bf16.msra.mxu0 %v498
    %604 = vmatpush.bf16.msra.mxu0 %v494
    %605 = vmatpush.bf16.msra.mxu0 %v490
    %606 = vmatpush.bf16.msra.mxu0 %v486
    %607 = vmatpush.bf16.msra.mxu0 %v482
    %608 = vmatpush.bf16.msra.mxu0 %v478
    %609 = vmatpush.bf16.msra.mxu0 %v474
    %610 = vmatmul.bf16.gmra.mxu0 %v278
    %v611 = vpop.f32.mrf.mxu0
    %v612 = vadd.f32 %v271, %v611
    %v613 = vpop.f32.mrf.mxu0
    %614 = vdwg.mxu0
    %615 = vmatpush.bf16.msra.mxu0 %v534
    %616 = vmatpush.bf16.msra.mxu0 %v530
    %617 = vmatpush.bf16.msra.mxu0 %v526
    %618 = vmatpush.bf16.msra.mxu0 %v522
    %619 = vmatpush.bf16.msra.mxu0 %v518
    %620 = vmatpush.bf16.msra.mxu0 %v514
    %621 = vmatpush.bf16.msra.mxu0 %v510
    %622 = vmatpush.bf16.msra.mxu0 %v506
    %623 = vmatmul.bf16.gmra.mxu0 %v279
    %v624 = vpop.f32.mrf.mxu0
    %v625 = vadd.f32 %v612, %v624
    %v626 = vpop.f32.mrf.mxu0
    %627 = vdwg.mxu0
    %628 = vmatpush.bf16.msra.mxu0 %v503
    %629 = vmatpush.bf16.msra.mxu0 %v499
    %630 = vmatpush.bf16.msra.mxu0 %v495
    %631 = vmatpush.bf16.msra.mxu0 %v491
    %632 = vmatpush.bf16.msra.mxu0 %v487
    %633 = vmatpush.bf16.msra.mxu0 %v483
    %634 = vmatpush.bf16.msra.mxu0 %v479
    %635 = vmatpush.bf16.msra.mxu0 %v475
    %636 = vmatmul.bf16.gmra.mxu0 %v278
    %v637 = vpop.f32.mrf.mxu0
    %v638 = vadd.f32 %v272, %v637
    %v639 = vpop.f32.mrf.mxu0
    %640 = vdwg.mxu0
    %641 = vmatpush.bf16.msra.mxu0 %v535
    %642 = vmatpush.bf16.msra.mxu0 %v531
    %643 = vmatpush.bf16.msra.mxu0 %v527
    %644 = vmatpush.bf16.msra.mxu0 %v523
    %645 = vmatpush.bf16.msra.mxu0 %v519
    %646 = vmatpush.bf16.msra.mxu0 %v515
    %647 = vmatpush.bf16.msra.mxu0 %v511
    %648 = vmatpush.bf16.msra.mxu0 %v507
    %649 = vmatmul.bf16.gmra.mxu0 %v279
    %v650 = vpop.f32.mrf.mxu0
    %v651 = vadd.f32 %v638, %v650
    %v652 = vpop.f32.mrf.mxu0
    %653 = vdwg.mxu0
    %654 = vmatpush.bf16.msra.mxu0 %v504
    %655 = vmatpush.bf16.msra.mxu0 %v500
    %656 = vmatpush.bf16.msra.mxu0 %v496
    %657 = vmatpush.bf16.msra.mxu0 %v492
    %658 = vmatpush.bf16.msra.mxu0 %v488
    %659 = vmatpush.bf16.msra.mxu0 %v484
    %660 = vmatpush.bf16.msra.mxu0 %v480
    %661 = vmatpush.bf16.msra.mxu0 %v476
    %662 = vmatmul.bf16.gmra.mxu0 %v278
    %v663 = vpop.f32.mrf.mxu0
    %v664 = vadd.f32 %v273, %v663
    %v665 = vpop.f32.mrf.mxu0
    %666 = vdwg.mxu0
    %667 = vmatpush.bf16.msra.mxu0 %v536
    %668 = vmatpush.bf16.msra.mxu0 %v532
    %669 = vmatpush.bf16.msra.mxu0 %v528
    %670 = vmatpush.bf16.msra.mxu0 %v524
    %671 = vmatpush.bf16.msra.mxu0 %v520
    %672 = vmatpush.bf16.msra.mxu0 %v516
    %673 = vmatpush.bf16.msra.mxu0 %v512
    %674 = vmatpush.bf16.msra.mxu0 %v508
    %675 = vmatmul.bf16.gmra.mxu0 %v279
    %v676 = vpop.f32.mrf.mxu0
    %v677 = vadd.f32 %v664, %v676
    %v678 = vpop.f32.mrf.mxu0
    %679 = vdwg.mxu0
    %680 = vmatpush.bf16.msra.mxu0 %v505
    %681 = vmatpush.bf16.msra.mxu0 %v501
    %682 = vmatpush.bf16.msra.mxu0 %v497
    %683 = vmatpush.bf16.msra.mxu0 %v493
    %684 = vmatpush.bf16.msra.mxu0 %v489
    %685 = vmatpush.bf16.msra.mxu0 %v485
    %686 = vmatpush.bf16.msra.mxu0 %v481
    %687 = vmatpush.bf16.msra.mxu0 %v477
    %688 = vmatmul.bf16.gmra.mxu0 %v278
    %v689 = vpop.f32.mrf.mxu0
    %v690 = vadd.f32 %v274, %v689
    %v691 = vpop.f32.mrf.mxu0
    %692 = vdwg.mxu0
    %693 = vmatpush.bf16.msra.mxu0 %v537
    %694 = vmatpush.bf16.msra.mxu0 %v533
    %695 = vmatpush.bf16.msra.mxu0 %v529
    %696 = vmatpush.bf16.msra.mxu0 %v525
    %697 = vmatpush.bf16.msra.mxu0 %v521
    %698 = vmatpush.bf16.msra.mxu0 %v517
    %699 = vmatpush.bf16.msra.mxu0 %v513
    %700 = vmatpush.bf16.msra.mxu0 %v509
    %701 = vmatmul.bf16.gmra.mxu0 %v279
    %v702 = vpop.f32.mrf.mxu0
    %v703 = vadd.f32 %v690, %v702
    %v704 = vpop.f32.mrf.mxu0
    %705 = vdwg.mxu0
    %v706 = vmax.f32 %v625, 0.0
    %v707 = vmax.f32 %v651, 0.0
    %v708 = vmax.f32 %v677, 0.0
    %v709 = vmax.f32 %v703, 0.0
    %v710 = vpack.c.bf16 %v706, %v706
    %v711 = vpack.c.bf16 %v707, %v707
    %v712 = vpack.c.bf16 %v708, %v708
    %v713 = vpack.c.bf16 %v709, %v709
    %v714 = vld [vmem:[#allocation8] sm:$0xff]
    %v715 = vld [vmem:[#allocation8 + $0x8] sm:$0xff]
    %v716 = vld [vmem:[#allocation8 + $0x10] sm:$0xff]
    %v717 = vld [vmem:[#allocation8 + $0x18] sm:$0xff]
    %v718 = vld [vmem:[#allocation8 + $0x20] sm:$0xff]
    %v719 = vld [vmem:[#allocation8 + $0x28] sm:$0xff]
    %v720 = vld [vmem:[#allocation8 + $0x30] sm:$0xff]
    %v721 = vld [vmem:[#allocation8 + $0x38] sm:$0xff]
    %v722 = vld [vmem:[#allocation8 + $0x40] sm:$0xff]
    %v723 = vld [vmem:[#allocation8 + $0x48] sm:$0xff]
    %v724 = vld [vmem:[#allocation8 + $0x50] sm:$0xff]
    %v725 = vld [vmem:[#allocation8 + $0x58] sm:$0xff]
    %v726 = vld [vmem:[#allocation8 + $0x60] sm:$0xff]
    %v727 = vld [vmem:[#allocation8 + $0x68] sm:$0xff]
    %v728 = vld [vmem:[#allocation8 + $0x70] sm:$0xff]
    %v729 = vld [vmem:[#allocation8 + $0x78] sm:$0xff]
    %v730 = vld [vmem:[#allocation8 + $0x80] sm:$0xff]
    %v731 = vld [vmem:[#allocation8 + $0x88] sm:$0xff]
    %v732 = vld [vmem:[#allocation8 + $0x90] sm:$0xff]
    %v733 = vld [vmem:[#allocation8 + $0x98] sm:$0xff]
    %v734 = vld [vmem:[#allocation8 + $0xa0] sm:$0xff]
    %v735 = vld [vmem:[#allocation8 + $0xa8] sm:$0xff]
    %v736 = vld [vmem:[#allocation8 + $0xb0] sm:$0xff]
    %v737 = vld [vmem:[#allocation8 + $0xb8] sm:$0xff]
    %v738 = vld [vmem:[#allocation8 + $0xc0] sm:$0xff]
    %v739 = vld [vmem:[#allocation8 + $0xc8] sm:$0xff]
    %v740 = vld [vmem:[#allocation8 + $0xd0] sm:$0xff]
    %v741 = vld [vmem:[#allocation8 + $0xd8] sm:$0xff]
    %v742 = vld [vmem:[#allocation8 + $0xe0] sm:$0xff]
    %v743 = vld [vmem:[#allocation8 + $0xe8] sm:$0xff]
    %v744 = vld [vmem:[#allocation8 + $0xf0] sm:$0xff]
    %v745 = vld [vmem:[#allocation8 + $0xf8] sm:$0xff]
    %v746 = vld [vmem:[#allocation8 + $0x100] sm:$0xff]
    %v747 = vld [vmem:[#allocation8 + $0x108] sm:$0xff]
    %v748 = vld [vmem:[#allocation8 + $0x110] sm:$0xff]
    %v749 = vld [vmem:[#allocation8 + $0x118] sm:$0xff]
    %v750 = vld [vmem:[#allocation8 + $0x120] sm:$0xff]
    %v751 = vld [vmem:[#allocation8 + $0x128] sm:$0xff]
    %v752 = vld [vmem:[#allocation8 + $0x130] sm:$0xff]
    %v753 = vld [vmem:[#allocation8 + $0x138] sm:$0xff]
    %v754 = vld [vmem:[#allocation8 + $0x140] sm:$0xff]
    %v755 = vld [vmem:[#allocation8 + $0x148] sm:$0xff]
    %v756 = vld [vmem:[#allocation8 + $0x150] sm:$0xff]
    %v757 = vld [vmem:[#allocation8 + $0x158] sm:$0xff]
    %v758 = vld [vmem:[#allocation8 + $0x160] sm:$0xff]
    %v759 = vld [vmem:[#allocation8 + $0x168] sm:$0xff]
    %v760 = vld [vmem:[#allocation8 + $0x170] sm:$0xff]
    %v761 = vld [vmem:[#allocation8 + $0x178] sm:$0xff]
    %v762 = vld [vmem:[#allocation8 + $0x180] sm:$0xff]
    %v763 = vld [vmem:[#allocation8 + $0x188] sm:$0xff]
    %v764 = vld [vmem:[#allocation8 + $0x190] sm:$0xff]
    %v765 = vld [vmem:[#allocation8 + $0x198] sm:$0xff]
    %v766 = vld [vmem:[#allocation8 + $0x1a0] sm:$0xff]
    %v767 = vld [vmem:[#allocation8 + $0x1a8] sm:$0xff]
    %v768 = vld [vmem:[#allocation8 + $0x1b0] sm:$0xff]
    %v769 = vld [vmem:[#allocation8 + $0x1b8] sm:$0xff]
    %v770 = vld [vmem:[#allocation8 + $0x1c0] sm:$0xff]
    %v771 = vld [vmem:[#allocation8 + $0x1c8] sm:$0xff]
    %v772 = vld [vmem:[#allocation8 + $0x1d0] sm:$0xff]
    %v773 = vld [vmem:[#allocation8 + $0x1d8] sm:$0xff]
    %v774 = vld [vmem:[#allocation8 + $0x1e0] sm:$0xff]
    %v775 = vld [vmem:[#allocation8 + $0x1e8] sm:$0xff]
    %v776 = vld [vmem:[#allocation8 + $0x1f0] sm:$0xff]
    %v777 = vld [vmem:[#allocation8 + $0x1f8] sm:$0xff]
    %v778 = vld [vmem:[#allocation8 + $0x200] sm:$0xff]
    %v779 = vld [vmem:[#allocation8 + $0x208] sm:$0xff]
    %v780 = vld [vmem:[#allocation8 + $0x210] sm:$0xff]
    %v781 = vld [vmem:[#allocation8 + $0x218] sm:$0xff]
    %v782 = vld [vmem:[#allocation8 + $0x220] sm:$0xff]
    %v783 = vld [vmem:[#allocation8 + $0x228] sm:$0xff]
    %v784 = vld [vmem:[#allocation8 + $0x230] sm:$0xff]
    %v785 = vld [vmem:[#allocation8 + $0x238] sm:$0xff]
    %v786 = vld [vmem:[#allocation8 + $0x240] sm:$0xff]
    %v787 = vld [vmem:[#allocation8 + $0x248] sm:$0xff]
    %v788 = vld [vmem:[#allocation8 + $0x250] sm:$0xff]
    %v789 = vld [vmem:[#allocation8 + $0x258] sm:$0xff]
    %v790 = vld [vmem:[#allocation8 + $0x260] sm:$0xff]
    %v791 = vld [vmem:[#allocation8 + $0x268] sm:$0xff]
    %v792 = vld [vmem:[#allocation8 + $0x270] sm:$0xff]
    %v793 = vld [vmem:[#allocation8 + $0x278] sm:$0xff]
    %v794 = vld [vmem:[#allocation8 + $0x280] sm:$0xff]
    %v795 = vld [vmem:[#allocation8 + $0x288] sm:$0xff]
    %v796 = vld [vmem:[#allocation8 + $0x290] sm:$0xff]
    %v797 = vld [vmem:[#allocation8 + $0x298] sm:$0xff]
    %v798 = vld [vmem:[#allocation8 + $0x2a0] sm:$0xff]
    %v799 = vld [vmem:[#allocation8 + $0x2a8] sm:$0xff]
    %v800 = vld [vmem:[#allocation8 + $0x2b0] sm:$0xff]
    %v801 = vld [vmem:[#allocation8 + $0x2b8] sm:$0xff]
    %v802 = vld [vmem:[#allocation8 + $0x2c0] sm:$0xff]
    %v803 = vld [vmem:[#allocation8 + $0x2c8] sm:$0xff]
    %v804 = vld [vmem:[#allocation8 + $0x2d0] sm:$0xff]
    %v805 = vld [vmem:[#allocation8 + $0x2d8] sm:$0xff]
    %v806 = vld [vmem:[#allocation8 + $0x2e0] sm:$0xff]
    %v807 = vld [vmem:[#allocation8 + $0x2e8] sm:$0xff]
    %v808 = vld [vmem:[#allocation8 + $0x2f0] sm:$0xff]
    %v809 = vld [vmem:[#allocation8 + $0x2f8] sm:$0xff]
    %v810 = vld [vmem:[#allocation8 + $0x300] sm:$0xff]
    %v811 = vld [vmem:[#allocation8 + $0x308] sm:$0xff]
    %v812 = vld [vmem:[#allocation8 + $0x310] sm:$0xff]
    %v813 = vld [vmem:[#allocation8 + $0x318] sm:$0xff]
    %v814 = vld [vmem:[#allocation8 + $0x320] sm:$0xff]
    %v815 = vld [vmem:[#allocation8 + $0x328] sm:$0xff]
    %v816 = vld [vmem:[#allocation8 + $0x330] sm:$0xff]
    %v817 = vld [vmem:[#allocation8 + $0x338] sm:$0xff]
    %v818 = vld [vmem:[#allocation8 + $0x340] sm:$0xff]
    %v819 = vld [vmem:[#allocation8 + $0x348] sm:$0xff]
    %v820 = vld [vmem:[#allocation8 + $0x350] sm:$0xff]
    %v821 = vld [vmem:[#allocation8 + $0x358] sm:$0xff]
    %v822 = vld [vmem:[#allocation8 + $0x360] sm:$0xff]
    %v823 = vld [vmem:[#allocation8 + $0x368] sm:$0xff]
    %v824 = vld [vmem:[#allocation8 + $0x370] sm:$0xff]
    %v825 = vld [vmem:[#allocation8 + $0x378] sm:$0xff]
    %v826 = vld [vmem:[#allocation8 + $0x380] sm:$0xff]
    %v827 = vld [vmem:[#allocation8 + $0x388] sm:$0xff]
    %v828 = vld [vmem:[#allocation8 + $0x390] sm:$0xff]
    %v829 = vld [vmem:[#allocation8 + $0x398] sm:$0xff]
    %v830 = vld [vmem:[#allocation8 + $0x3a0] sm:$0xff]
    %v831 = vld [vmem:[#allocation8 + $0x3a8] sm:$0xff]
    %v832 = vld [vmem:[#allocation8 + $0x3b0] sm:$0xff]
    %v833 = vld [vmem:[#allocation8 + $0x3b8] sm:$0xff]
    %v834 = vld [vmem:[#allocation8 + $0x3c0] sm:$0xff]
    %v835 = vld [vmem:[#allocation8 + $0x3c8] sm:$0xff]
    %v836 = vld [vmem:[#allocation8 + $0x3d0] sm:$0xff]
    %v837 = vld [vmem:[#allocation8 + $0x3d8] sm:$0xff]
    %v838 = vld [vmem:[#allocation8 + $0x3e0] sm:$0xff]
    %v839 = vld [vmem:[#allocation8 + $0x3e8] sm:$0xff]
    %v840 = vld [vmem:[#allocation8 + $0x3f0] sm:$0xff]
    %v841 = vld [vmem:[#allocation8 + $0x3f8] sm:$0xff]
    %v842 = vld [vmem:[#allocation10] sm:$0xf]
    %v844 = vperm.slane %v842, 0
    %v845 = vperm.slane %v842, 1
    %v846 = vperm.slane %v842, 2
    %v847 = vperm.slane %v842, 3
    %v980 = vunpack.c.l.b16 %v714
    %v981 = vunpack.c.h.b16 %v714
    %v982 = vunpack.c.l.b16 %v715
    %v983 = vunpack.c.h.b16 %v715
    %v984 = vunpack.c.l.b16 %v716
    %v985 = vunpack.c.h.b16 %v716
    %v986 = vunpack.c.l.b16 %v717
    %v987 = vunpack.c.h.b16 %v717
    %v988 = vunpack.c.l.b16 %v718
    %v989 = vunpack.c.h.b16 %v718
    %v990 = vunpack.c.l.b16 %v719
    %v991 = vunpack.c.h.b16 %v719
    %v992 = vunpack.c.l.b16 %v720
    %v993 = vunpack.c.h.b16 %v720
    %v994 = vunpack.c.l.b16 %v721
    %v995 = vunpack.c.h.b16 %v721
    %v996 = vunpack.c.l.b16 %v722
    %v997 = vunpack.c.h.b16 %v722
    %v998 = vunpack.c.l.b16 %v723
    %v999 = vunpack.c.h.b16 %v723
    %v1000 = vunpack.c.l.b16 %v724
    %v1001 = vunpack.c.h.b16 %v724
    %v1002 = vunpack.c.l.b16 %v725
    %v1003 = vunpack.c.h.b16 %v725
    %v1004 = vunpack.c.l.b16 %v726
    %v1005 = vunpack.c.h.b16 %v726
    %v1006 = vunpack.c.l.b16 %v727
    %v1007 = vunpack.c.h.b16 %v727
    %v1008 = vunpack.c.l.b16 %v728
    %v1009 = vunpack.c.h.b16 %v728
    %v1010 = vunpack.c.l.b16 %v729
    %v1011 = vunpack.c.h.b16 %v729
    %v1012 = vunpack.c.l.b16 %v730
    %v1013 = vunpack.c.h.b16 %v730
    %v1014 = vunpack.c.l.b16 %v731
    %v1015 = vunpack.c.h.b16 %v731
    %v1016 = vunpack.c.l.b16 %v732
    %v1017 = vunpack.c.h.b16 %v732
    %v1018 = vunpack.c.l.b16 %v733
    %v1019 = vunpack.c.h.b16 %v733
    %v1020 = vunpack.c.l.b16 %v734
    %v1021 = vunpack.c.h.b16 %v734
    %v1022 = vunpack.c.l.b16 %v735
    %v1023 = vunpack.c.h.b16 %v735
    %v1024 = vunpack.c.l.b16 %v736
    %v1025 = vunpack.c.h.b16 %v736
    %v1026 = vunpack.c.l.b16 %v737
    %v1027 = vunpack.c.h.b16 %v737
    %v1028 = vunpack.c.l.b16 %v738
    %v1029 = vunpack.c.h.b16 %v738
    %v1030 = vunpack.c.l.b16 %v739
    %v1031 = vunpack.c.h.b16 %v739
    %v1032 = vunpack.c.l.b16 %v740
    %v1033 = vunpack.c.h.b16 %v740
    %v1034 = vunpack.c.l.b16 %v741
    %v1035 = vunpack.c.h.b16 %v741
    %v1036 = vunpack.c.l.b16 %v742
    %v1037 = vunpack.c.h.b16 %v742
    %v1038 = vunpack.c.l.b16 %v743
    %v1039 = vunpack.c.h.b16 %v743
    %v1040 = vunpack.c.l.b16 %v744
    %v1041 = vunpack.c.h.b16 %v744
    %v1042 = vunpack.c.l.b16 %v745
    %v1043 = vunpack.c.h.b16 %v745
    %v1044 = vunpack.c.l.b16 %v746
    %v1045 = vunpack.c.h.b16 %v746
    %v1046 = vunpack.c.l.b16 %v747
    %v1047 = vunpack.c.h.b16 %v747
    %v1048 = vunpack.c.l.b16 %v748
    %v1049 = vunpack.c.h.b16 %v748
    %v1050 = vunpack.c.l.b16 %v749
    %v1051 = vunpack.c.h.b16 %v749
    %v1052 = vunpack.c.l.b16 %v750
    %v1053 = vunpack.c.h.b16 %v750
    %v1054 = vunpack.c.l.b16 %v751
    %v1055 = vunpack.c.h.b16 %v751
    %v1056 = vunpack.c.l.b16 %v752
    %v1057 = vunpack.c.h.b16 %v752
    %v1058 = vunpack.c.l.b16 %v753
    %v1059 = vunpack.c.h.b16 %v753
    %v1060 = vunpack.c.l.b16 %v754
    %v1061 = vunpack.c.h.b16 %v754
    %v1062 = vunpack.c.l.b16 %v755
    %v1063 = vunpack.c.h.b16 %v755
    %v1064 = vunpack.c.l.b16 %v756
    %v1065 = vunpack.c.h.b16 %v756
    %v1066 = vunpack.c.l.b16 %v757
    %v1067 = vunpack.c.h.b16 %v757
    %v1068 = vunpack.c.l.b16 %v758
    %v1069 = vunpack.c.h.b16 %v758
    %v1070 = vunpack.c.l.b16 %v759
    %v1071 = vunpack.c.h.b16 %v759
    %v1072 = vunpack.c.l.b16 %v760
    %v1073 = vunpack.c.h.b16 %v760
    %v1074 = vunpack.c.l.b16 %v761
    %v1075 = vunpack.c.h.b16 %v761
    %v1076 = vunpack.c.l.b16 %v762
    %v1077 = vunpack.c.h.b16 %v762
    %v1078 = vunpack.c.l.b16 %v763
    %v1079 = vunpack.c.h.b16 %v763
    %v1080 = vunpack.c.l.b16 %v764
    %v1081 = vunpack.c.h.b16 %v764
    %v1082 = vunpack.c.l.b16 %v765
    %v1083 = vunpack.c.h.b16 %v765
    %v1084 = vunpack.c.l.b16 %v766
    %v1085 = vunpack.c.h.b16 %v766
    %v1086 = vunpack.c.l.b16 %v767
    %v1087 = vunpack.c.h.b16 %v767
    %v1088 = vunpack.c.l.b16 %v768
    %v1089 = vunpack.c.h.b16 %v768
    %v1090 = vunpack.c.l.b16 %v769
    %v1091 = vunpack.c.h.b16 %v769
    %v1092 = vunpack.c.l.b16 %v770
    %v1093 = vunpack.c.h.b16 %v770
    %v1094 = vunpack.c.l.b16 %v771
    %v1095 = vunpack.c.h.b16 %v771
    %v1096 = vunpack.c.l.b16 %v772
    %v1097 = vunpack.c.h.b16 %v772
    %v1098 = vunpack.c.l.b16 %v773
    %v1099 = vunpack.c.h.b16 %v773
    %v1100 = vunpack.c.l.b16 %v774
    %v1101 = vunpack.c.h.b16 %v774
    %v1102 = vunpack.c.l.b16 %v775
    %v1103 = vunpack.c.h.b16 %v775
    %v1104 = vunpack.c.l.b16 %v776
    %v1105 = vunpack.c.h.b16 %v776
    %v1106 = vunpack.c.l.b16 %v777
    %v1107 = vunpack.c.h.b16 %v777
    %v1108 = vunpack.c.l.b16 %v778
    %v1109 = vunpack.c.h.b16 %v778
    %v1110 = vunpack.c.l.b16 %v779
    %v1111 = vunpack.c.h.b16 %v779
    %v1112 = vunpack.c.l.b16 %v780
    %v1113 = vunpack.c.h.b16 %v780
    %v1114 = vunpack.c.l.b16 %v781
    %v1115 = vunpack.c.h.b16 %v781
    %v1116 = vunpack.c.l.b16 %v782
    %v1117 = vunpack.c.h.b16 %v782
    %v1118 = vunpack.c.l.b16 %v783
    %v1119 = vunpack.c.h.b16 %v783
    %v1120 = vunpack.c.l.b16 %v784
    %v1121 = vunpack.c.h.b16 %v784
    %v1122 = vunpack.c.l.b16 %v785
    %v1123 = vunpack.c.h.b16 %v785
    %v1124 = vunpack.c.l.b16 %v786
    %v1125 = vunpack.c.h.b16 %v786
    %v1126 = vunpack.c.l.b16 %v787
    %v1127 = vunpack.c.h.b16 %v787
    %v1128 = vunpack.c.l.b16 %v788
    %v1129 = vunpack.c.h.b16 %v788
    %v1130 = vunpack.c.l.b16 %v789
    %v1131 = vunpack.c.h.b16 %v789
    %v1132 = vunpack.c.l.b16 %v790
    %v1133 = vunpack.c.h.b16 %v790
    %v1134 = vunpack.c.l.b16 %v791
    %v1135 = vunpack.c.h.b16 %v791
    %v1136 = vunpack.c.l.b16 %v792
    %v1137 = vunpack.c.h.b16 %v792
    %v1138 = vunpack.c.l.b16 %v793
    %v1139 = vunpack.c.h.b16 %v793
    %v1140 = vunpack.c.l.b16 %v794
    %v1141 = vunpack.c.h.b16 %v794
    %v1142 = vunpack.c.l.b16 %v795
    %v1143 = vunpack.c.h.b16 %v795
    %v1144 = vunpack.c.l.b16 %v796
    %v1145 = vunpack.c.h.b16 %v796
    %v1146 = vunpack.c.l.b16 %v797
    %v1147 = vunpack.c.h.b16 %v797
    %v1148 = vunpack.c.l.b16 %v798
    %v1149 = vunpack.c.h.b16 %v798
    %v1150 = vunpack.c.l.b16 %v799
    %v1151 = vunpack.c.h.b16 %v799
    %v1152 = vunpack.c.l.b16 %v800
    %v1153 = vunpack.c.h.b16 %v800
    %v1154 = vunpack.c.l.b16 %v801
    %v1155 = vunpack.c.h.b16 %v801
    %v1156 = vunpack.c.l.b16 %v802
    %v1157 = vunpack.c.h.b16 %v802
    %v1158 = vunpack.c.l.b16 %v803
    %v1159 = vunpack.c.h.b16 %v803
    %v1160 = vunpack.c.l.b16 %v804
    %v1161 = vunpack.c.h.b16 %v804
    %v1162 = vunpack.c.l.b16 %v805
    %v1163 = vunpack.c.h.b16 %v805
    %v1164 = vunpack.c.l.b16 %v806
    %v1165 = vunpack.c.h.b16 %v806
    %v1166 = vunpack.c.l.b16 %v807
    %v1167 = vunpack.c.h.b16 %v807
    %v1168 = vunpack.c.l.b16 %v808
    %v1169 = vunpack.c.h.b16 %v808
    %v1170 = vunpack.c.l.b16 %v809
    %v1171 = vunpack.c.h.b16 %v809
    %v1172 = vunpack.c.l.b16 %v810
    %v1173 = vunpack.c.h.b16 %v810
    %v1174 = vunpack.c.l.b16 %v811
    %v1175 = vunpack.c.h.b16 %v811
    %v1176 = vunpack.c.l.b16 %v812
    %v1177 = vunpack.c.h.b16 %v812
    %v1178 = vunpack.c.l.b16 %v813
    %v1179 = vunpack.c.h.b16 %v813
    %v1180 = vunpack.c.l.b16 %v814
    %v1181 = vunpack.c.h.b16 %v814
    %v1182 = vunpack.c.l.b16 %v815
    %v1183 = vunpack.c.h.b16 %v815
    %v1184 = vunpack.c.l.b16 %v816
    %v1185 = vunpack.c.h.b16 %v816
    %v1186 = vunpack.c.l.b16 %v817
    %v1187 = vunpack.c.h.b16 %v817
    %v1188 = vunpack.c.l.b16 %v818
    %v1189 = vunpack.c.h.b16 %v818
    %v1190 = vunpack.c.l.b16 %v819
    %v1191 = vunpack.c.h.b16 %v819
    %v1192 = vunpack.c.l.b16 %v820
    %v1193 = vunpack.c.h.b16 %v820
    %v1194 = vunpack.c.l.b16 %v821
    %v1195 = vunpack.c.h.b16 %v821
    %v1196 = vunpack.c.l.b16 %v822
    %v1197 = vunpack.c.h.b16 %v822
    %v1198 = vunpack.c.l.b16 %v823
    %v1199 = vunpack.c.h.b16 %v823
    %v1200 = vunpack.c.l.b16 %v824
    %v1201 = vunpack.c.h.b16 %v824
    %v1202 = vunpack.c.l.b16 %v825
    %v1203 = vunpack.c.h.b16 %v825
    %v1204 = vunpack.c.l.b16 %v826
    %v1205 = vunpack.c.h.b16 %v826
    %v1206 = vunpack.c.l.b16 %v827
    %v1207 = vunpack.c.h.b16 %v827
    %v1208 = vunpack.c.l.b16 %v828
    %v1209 = vunpack.c.h.b16 %v828
    %v1210 = vunpack.c.l.b16 %v829
    %v1211 = vunpack.c.h.b16 %v829
    %v1212 = vunpack.c.l.b16 %v830
    %v1213 = vunpack.c.h.b16 %v830
    %v1214 = vunpack.c.l.b16 %v831
    %v1215 = vunpack.c.h.b16 %v831
    %v1216 = vunpack.c.l.b16 %v832
    %v1217 = vunpack.c.h.b16 %v832
    %v1218 = vunpack.c.l.b16 %v833
    %v1219 = vunpack.c.h.b16 %v833
    %v1220 = vunpack.c.l.b16 %v834
    %v1221 = vunpack.c.h.b16 %v834
    %v1222 = vunpack.c.l.b16 %v835
    %v1223 = vunpack.c.h.b16 %v835
    %v1224 = vunpack.c.l.b16 %v836
    %v1225 = vunpack.c.h.b16 %v836
    %v1226 = vunpack.c.l.b16 %v837
    %v1227 = vunpack.c.h.b16 %v837
    %v1228 = vunpack.c.l.b16 %v838
    %v1229 = vunpack.c.h.b16 %v838
    %v1230 = vunpack.c.l.b16 %v839
    %v1231 = vunpack.c.h.b16 %v839
    %v1232 = vunpack.c.l.b16 %v840
    %v1233 = vunpack.c.h.b16 %v840
    %v1234 = vunpack.c.l.b16 %v841
    %v1235 = vunpack.c.h.b16 %v841
    %v1236 = vpack.c.b16 %v984, %v980
    %v1237 = vpack.c.b16 %v985, %v981
    %v1238 = vpack.c.b16 %v986, %v982
    %v1239 = vpack.c.b16 %v987, %v983
    %v1240 = vpack.c.b16 %v992, %v988
    %v1241 = vpack.c.b16 %v993, %v989
    %v1242 = vpack.c.b16 %v994, %v990
    %v1243 = vpack.c.b16 %v995, %v991
    %v1244 = vpack.c.b16 %v1000, %v996
    %v1245 = vpack.c.b16 %v1001, %v997
    %v1246 = vpack.c.b16 %v1002, %v998
    %v1247 = vpack.c.b16 %v1003, %v999
    %v1248 = vpack.c.b16 %v1008, %v1004
    %v1249 = vpack.c.b16 %v1009, %v1005
    %v1250 = vpack.c.b16 %v1010, %v1006
    %v1251 = vpack.c.b16 %v1011, %v1007
    %v1252 = vpack.c.b16 %v1016, %v1012
    %v1253 = vpack.c.b16 %v1017, %v1013
    %v1254 = vpack.c.b16 %v1018, %v1014
    %v1255 = vpack.c.b16 %v1019, %v1015
    %v1256 = vpack.c.b16 %v1024, %v1020
    %v1257 = vpack.c.b16 %v1025, %v1021
    %v1258 = vpack.c.b16 %v1026, %v1022
    %v1259 = vpack.c.b16 %v1027, %v1023
    %v1260 = vpack.c.b16 %v1032, %v1028
    %v1261 = vpack.c.b16 %v1033, %v1029
    %v1262 = vpack.c.b16 %v1034, %v1030
    %v1263 = vpack.c.b16 %v1035, %v1031
    %v1264 = vpack.c.b16 %v1040, %v1036
    %v1265 = vpack.c.b16 %v1041, %v1037
    %v1266 = vpack.c.b16 %v1042, %v1038
    %v1267 = vpack.c.b16 %v1043, %v1039
    %v1268 = vpack.c.b16 %v1048, %v1044
    %v1269 = vpack.c.b16 %v1049, %v1045
    %v1270 = vpack.c.b16 %v1050, %v1046
    %v1271 = vpack.c.b16 %v1051, %v1047
    %v1272 = vpack.c.b16 %v1056, %v1052
    %v1273 = vpack.c.b16 %v1057, %v1053
    %v1274 = vpack.c.b16 %v1058, %v1054
    %v1275 = vpack.c.b16 %v1059, %v1055
    %v1276 = vpack.c.b16 %v1064, %v1060
    %v1277 = vpack.c.b16 %v1065, %v1061
    %v1278 = vpack.c.b16 %v1066, %v1062
    %v1279 = vpack.c.b16 %v1067, %v1063
    %v1280 = vpack.c.b16 %v1072, %v1068
    %v1281 = vpack.c.b16 %v1073, %v1069
    %v1282 = vpack.c.b16 %v1074, %v1070
    %v1283 = vpack.c.b16 %v1075, %v1071
    %v1284 = vpack.c.b16 %v1080, %v1076
    %v1285 = vpack.c.b16 %v1081, %v1077
    %v1286 = vpack.c.b16 %v1082, %v1078
    %v1287 = vpack.c.b16 %v1083, %v1079
    %v1288 = vpack.c.b16 %v1088, %v1084
    %v1289 = vpack.c.b16 %v1089, %v1085
    %v1290 = vpack.c.b16 %v1090, %v1086
    %v1291 = vpack.c.b16 %v1091, %v1087
    %v1292 = vpack.c.b16 %v1096, %v1092
    %v1293 = vpack.c.b16 %v1097, %v1093
    %v1294 = vpack.c.b16 %v1098, %v1094
    %v1295 = vpack.c.b16 %v1099, %v1095
    %v1296 = vpack.c.b16 %v1104, %v1100
    %v1297 = vpack.c.b16 %v1105, %v1101
    %v1298 = vpack.c.b16 %v1106, %v1102
    %v1299 = vpack.c.b16 %v1107, %v1103
    %v1300 = vpack.c.b16 %v1112, %v1108
    %v1301 = vpack.c.b16 %v1113, %v1109
    %v1302 = vpack.c.b16 %v1114, %v1110
    %v1303 = vpack.c.b16 %v1115, %v1111
    %v1304 = vpack.c.b16 %v1120, %v1116
    %v1305 = vpack.c.b16 %v1121, %v1117
    %v1306 = vpack.c.b16 %v1122, %v1118
    %v1307 = vpack.c.b16 %v1123, %v1119
    %v1308 = vpack.c.b16 %v1128, %v1124
    %v1309 = vpack.c.b16 %v1129, %v1125
    %v1310 = vpack.c.b16 %v1130, %v1126
    %v1311 = vpack.c.b16 %v1131, %v1127
    %v1312 = vpack.c.b16 %v1136, %v1132
    %v1313 = vpack.c.b16 %v1137, %v1133
    %v1314 = vpack.c.b16 %v1138, %v1134
    %v1315 = vpack.c.b16 %v1139, %v1135
    %v1316 = vpack.c.b16 %v1144, %v1140
    %v1317 = vpack.c.b16 %v1145, %v1141
    %v1318 = vpack.c.b16 %v1146, %v1142
    %v1319 = vpack.c.b16 %v1147, %v1143
    %v1320 = vpack.c.b16 %v1152, %v1148
    %v1321 = vpack.c.b16 %v1153, %v1149
    %v1322 = vpack.c.b16 %v1154, %v1150
    %v1323 = vpack.c.b16 %v1155, %v1151
    %v1324 = vpack.c.b16 %v1160, %v1156
    %v1325 = vpack.c.b16 %v1161, %v1157
    %v1326 = vpack.c.b16 %v1162, %v1158
    %v1327 = vpack.c.b16 %v1163, %v1159
    %v1328 = vpack.c.b16 %v1168, %v1164
    %v1329 = vpack.c.b16 %v1169, %v1165
    %v1330 = vpack.c.b16 %v1170, %v1166
    %v1331 = vpack.c.b16 %v1171, %v1167
    %v1332 = vpack.c.b16 %v1176, %v1172
    %v1333 = vpack.c.b16 %v1177, %v1173
    %v1334 = vpack.c.b16 %v1178, %v1174
    %v1335 = vpack.c.b16 %v1179, %v1175
    %v1336 = vpack.c.b16 %v1184, %v1180
    %v1337 = vpack.c.b16 %v1185, %v1181
    %v1338 = vpack.c.b16 %v1186, %v1182
    %v1339 = vpack.c.b16 %v1187, %v1183
    %v1340 = vpack.c.b16 %v1192, %v1188
    %v1341 = vpack.c.b16 %v1193, %v1189
    %v1342 = vpack.c.b16 %v1194, %v1190
    %v1343 = vpack.c.b16 %v1195, %v1191
    %v1344 = vpack.c.b16 %v1200, %v1196
    %v1345 = vpack.c.b16 %v1201, %v1197
    %v1346 = vpack.c.b16 %v1202, %v1198
    %v1347 = vpack.c.b16 %v1203, %v1199
    %v1348 = vpack.c.b16 %v1208, %v1204
    %v1349 = vpack.c.b16 %v1209, %v1205
    %v1350 = vpack.c.b16 %v1210, %v1206
    %v1351 = vpack.c.b16 %v1211, %v1207
    %v1352 = vpack.c.b16 %v1216, %v1212
    %v1353 = vpack.c.b16 %v1217, %v1213
    %v1354 = vpack.c.b16 %v1218, %v1214
    %v1355 = vpack.c.b16 %v1219, %v1215
    %v1356 = vpack.c.b16 %v1224, %v1220
    %v1357 = vpack.c.b16 %v1225, %v1221
    %v1358 = vpack.c.b16 %v1226, %v1222
    %v1359 = vpack.c.b16 %v1227, %v1223
    %v1360 = vpack.c.b16 %v1232, %v1228
    %v1361 = vpack.c.b16 %v1233, %v1229
    %v1362 = vpack.c.b16 %v1234, %v1230
    %v1363 = vpack.c.b16 %v1235, %v1231
    %1492 = vmatpush.bf16.msra.mxu0 %v1264
    %1493 = vmatpush.bf16.msra.mxu0 %v1260
    %1494 = vmatpush.bf16.msra.mxu0 %v1256
    %1495 = vmatpush.bf16.msra.mxu0 %v1252
    %1496 = vmatpush.bf16.msra.mxu0 %v1248
    %1497 = vmatpush.bf16.msra.mxu0 %v1244
    %1498 = vmatpush.bf16.msra.mxu0 %v1240
    %1499 = vmatpush.bf16.msra.mxu0 %v1236
    %1500 = vmatmul.bf16.gmra.mxu0 %v710
    %v1501 = vpop.f32.mrf.mxu0
    %v1502 = vadd.f32 %v844, %v1501
    %v1503 = vpop.f32.mrf.mxu0
    %1504 = vdwg.mxu0
    %1505 = vmatpush.bf16.msra.mxu0 %v1296
    %1506 = vmatpush.bf16.msra.mxu0 %v1292
    %1507 = vmatpush.bf16.msra.mxu0 %v1288
    %1508 = vmatpush.bf16.msra.mxu0 %v1284
    %1509 = vmatpush.bf16.msra.mxu0 %v1280
    %1510 = vmatpush.bf16.msra.mxu0 %v1276
    %1511 = vmatpush.bf16.msra.mxu0 %v1272
    %1512 = vmatpush.bf16.msra.mxu0 %v1268
    %1513 = vmatmul.bf16.gmra.mxu0 %v711
    %v1514 = vpop.f32.mrf.mxu0
    %v1515 = vadd.f32 %v1502, %v1514
    %v1516 = vpop.f32.mrf.mxu0
    %1517 = vdwg.mxu0
    %1518 = vmatpush.bf16.msra.mxu0 %v1328
    %1519 = vmatpush.bf16.msra.mxu0 %v1324
    %1520 = vmatpush.bf16.msra.mxu0 %v1320
    %1521 = vmatpush.bf16.msra.mxu0 %v1316
    %1522 = vmatpush.bf16.msra.mxu0 %v1312
    %1523 = vmatpush.bf16.msra.mxu0 %v1308
    %1524 = vmatpush.bf16.msra.mxu0 %v1304
    %1525 = vmatpush.bf16.msra.mxu0 %v1300
    %1526 = vmatmul.bf16.gmra.mxu0 %v712
    %v1527 = vpop.f32.mrf.mxu0
    %v1528 = vadd.f32 %v1515, %v1527
    %v1529 = vpop.f32.mrf.mxu0
    %1530 = vdwg.mxu0
    %1531 = vmatpush.bf16.msra.mxu0 %v1360
    %1532 = vmatpush.bf16.msra.mxu0 %v1356
    %1533 = vmatpush.bf16.msra.mxu0 %v1352
    %1534 = vmatpush.bf16.msra.mxu0 %v1348
    %1535 = vmatpush.bf16.msra.mxu0 %v1344
    %1536 = vmatpush.bf16.msra.mxu0 %v1340
    %1537 = vmatpush.bf16.msra.mxu0 %v1336
    %1538 = vmatpush.bf16.msra.mxu0 %v1332
    %1539 = vmatmul.bf16.gmra.mxu0 %v713
    %v1540 = vpop.f32.mrf.mxu0
    %v1541 = vadd.f32 %v1528, %v1540
    %v1542 = vpop.f32.mrf.mxu0
    %1543 = vdwg.mxu0
    %1544 = vmatpush.bf16.msra.mxu0 %v1265
    %1545 = vmatpush.bf16.msra.mxu0 %v1261
    %1546 = vmatpush.bf16.msra.mxu0 %v1257
    %1547 = vmatpush.bf16.msra.mxu0 %v1253
    %1548 = vmatpush.bf16.msra.mxu0 %v1249
    %1549 = vmatpush.bf16.msra.mxu0 %v1245
    %1550 = vmatpush.bf16.msra.mxu0 %v1241
    %1551 = vmatpush.bf16.msra.mxu0 %v1237
    %1552 = vmatmul.bf16.gmra.mxu0 %v710
    %v1553 = vpop.f32.mrf.mxu0
    %v1554 = vadd.f32 %v845, %v1553
    %v1555 = vpop.f32.mrf.mxu0
    %1556 = vdwg.mxu0
    %1557 = vmatpush.bf16.msra.mxu0 %v1297
    %1558 = vmatpush.bf16.msra.mxu0 %v1293
    %1559 = vmatpush.bf16.msra.mxu0 %v1289
    %1560 = vmatpush.bf16.msra.mxu0 %v1285
    %1561 = vmatpush.bf16.msra.mxu0 %v1281
    %1562 = vmatpush.bf16.msra.mxu0 %v1277
    %1563 = vmatpush.bf16.msra.mxu0 %v1273
    %1564 = vmatpush.bf16.msra.mxu0 %v1269
    %1565 = vmatmul.bf16.gmra.mxu0 %v711
    %v1566 = vpop.f32.mrf.mxu0
    %v1567 = vadd.f32 %v1554, %v1566
    %v1568 = vpop.f32.mrf.mxu0
    %1569 = vdwg.mxu0
    %1570 = vmatpush.bf16.msra.mxu0 %v1329
    %1571 = vmatpush.bf16.msra.mxu0 %v1325
    %1572 = vmatpush.bf16.msra.mxu0 %v1321
    %1573 = vmatpush.bf16.msra.mxu0 %v1317
    %1574 = vmatpush.bf16.msra.mxu0 %v1313
    %1575 = vmatpush.bf16.msra.mxu0 %v1309
    %1576 = vmatpush.bf16.msra.mxu0 %v1305
    %1577 = vmatpush.bf16.msra.mxu0 %v1301
    %1578 = vmatmul.bf16.gmra.mxu0 %v712
    %v1579 = vpop.f32.mrf.mxu0
    %v1580 = vadd.f32 %v1567, %v1579
    %v1581 = vpop.f32.mrf.mxu0
    %1582 = vdwg.mxu0
    %1583 = vmatpush.bf16.msra.mxu0 %v1361
    %1584 = vmatpush.bf16.msra.mxu0 %v1357
    %1585 = vmatpush.bf16.msra.mxu0 %v1353
    %1586 = vmatpush.bf16.msra.mxu0 %v1349
    %1587 = vmatpush.bf16.msra.mxu0 %v1345
    %1588 = vmatpush.bf16.msra.mxu0 %v1341
    %1589 = vmatpush.bf16.msra.mxu0 %v1337
    %1590 = vmatpush.bf16.msra.mxu0 %v1333
    %1591 = vmatmul.bf16.gmra.mxu0 %v713
    %v1592 = vpop.f32.mrf.mxu0
    %v1593 = vadd.f32 %v1580, %v1592
    %v1594 = vpop.f32.mrf.mxu0
    %1595 = vdwg.mxu0
    %1596 = vmatpush.bf16.msra.mxu0 %v1266
    %1597 = vmatpush.bf16.msra.mxu0 %v1262
    %1598 = vmatpush.bf16.msra.mxu0 %v1258
    %1599 = vmatpush.bf16.msra.mxu0 %v1254
    %1600 = vmatpush.bf16.msra.mxu0 %v1250
    %1601 = vmatpush.bf16.msra.mxu0 %v1246
    %1602 = vmatpush.bf16.msra.mxu0 %v1242
    %1603 = vmatpush.bf16.msra.mxu0 %v1238
    %1604 = vmatmul.bf16.gmra.mxu0 %v710
    %v1605 = vpop.f32.mrf.mxu0
    %v1606 = vadd.f32 %v846, %v1605
    %v1607 = vpop.f32.mrf.mxu0
    %1608 = vdwg.mxu0
    %1609 = vmatpush.bf16.msra.mxu0 %v1298
    %1610 = vmatpush.bf16.msra.mxu0 %v1294
    %1611 = vmatpush.bf16.msra.mxu0 %v1290
    %1612 = vmatpush.bf16.msra.mxu0 %v1286
    %1613 = vmatpush.bf16.msra.mxu0 %v1282
    %1614 = vmatpush.bf16.msra.mxu0 %v1278
    %1615 = vmatpush.bf16.msra.mxu0 %v1274
    %1616 = vmatpush.bf16.msra.mxu0 %v1270
    %1617 = vmatmul.bf16.gmra.mxu0 %v711
    %v1618 = vpop.f32.mrf.mxu0
    %v1619 = vadd.f32 %v1606, %v1618
    %v1620 = vpop.f32.mrf.mxu0
    %1621 = vdwg.mxu0
    %1622 = vmatpush.bf16.msra.mxu0 %v1330
    %1623 = vmatpush.bf16.msra.mxu0 %v1326
    %1624 = vmatpush.bf16.msra.mxu0 %v1322
    %1625 = vmatpush.bf16.msra.mxu0 %v1318
    %1626 = vmatpush.bf16.msra.mxu0 %v1314
    %1627 = vmatpush.bf16.msra.mxu0 %v1310
    %1628 = vmatpush.bf16.msra.mxu0 %v1306
    %1629 = vmatpush.bf16.msra.mxu0 %v1302
    %1630 = vmatmul.bf16.gmra.mxu0 %v712
    %v1631 = vpop.f32.mrf.mxu0
    %v1632 = vadd.f32 %v1619, %v1631
    %v1633 = vpop.f32.mrf.mxu0
    %1634 = vdwg.mxu0
    %1635 = vmatpush.bf16.msra.mxu0 %v1362
    %1636 = vmatpush.bf16.msra.mxu0 %v1358
    %1637 = vmatpush.bf16.msra.mxu0 %v1354
    %1638 = vmatpush.bf16.msra.mxu0 %v1350
    %1639 = vmatpush.bf16.msra.mxu0 %v1346
    %1640 = vmatpush.bf16.msra.mxu0 %v1342
    %1641 = vmatpush.bf16.msra.mxu0 %v1338
    %1642 = vmatpush.bf16.msra.mxu0 %v1334
    %1643 = vmatmul.bf16.gmra.mxu0 %v713
    %v1644 = vpop.f32.mrf.mxu0
    %v1645 = vadd.f32 %v1632, %v1644
    %v1646 = vpop.f32.mrf.mxu0
    %1647 = vdwg.mxu0
    %1648 = vmatpush.bf16.msra.mxu0 %v1267
    %1649 = vmatpush.bf16.msra.mxu0 %v1263
    %1650 = vmatpush.bf16.msra.mxu0 %v1259
    %1651 = vmatpush.bf16.msra.mxu0 %v1255
    %1652 = vmatpush.bf16.msra.mxu0 %v1251
    %1653 = vmatpush.bf16.msra.mxu0 %v1247
    %1654 = vmatpush.bf16.msra.mxu0 %v1243
    %1655 = vmatpush.bf16.msra.mxu0 %v1239
    %1656 = vmatmul.bf16.gmra.mxu0 %v710
    %v1657 = vpop.f32.mrf.mxu0
    %v1658 = vadd.f32 %v847, %v1657
    %v1659 = vpop.f32.mrf.mxu0
    %1660 = vdwg.mxu0
    %1661 = vmatpush.bf16.msra.mxu0 %v1299
    %1662 = vmatpush.bf16.msra.mxu0 %v1295
    %1663 = vmatpush.bf16.msra.mxu0 %v1291
    %1664 = vmatpush.bf16.msra.mxu0 %v1287
    %1665 = vmatpush.bf16.msra.mxu0 %v1283
    %1666 = vmatpush.bf16.msra.mxu0 %v1279
    %1667 = vmatpush.bf16.msra.mxu0 %v1275
    %1668 = vmatpush.bf16.msra.mxu0 %v1271
    %1669 = vmatmul.bf16.gmra.mxu0 %v711
    %v1670 = vpop.f32.mrf.mxu0
    %v1671 = vadd.f32 %v1658, %v1670
    %v1672 = vpop.f32.mrf.mxu0
    %1673 = vdwg.mxu0
    %1674 = vmatpush.bf16.msra.mxu0 %v1331
    %1675 = vmatpush.bf16.msra.mxu0 %v1327
    %1676 = vmatpush.bf16.msra.mxu0 %v1323
    %1677 = vmatpush.bf16.msra.mxu0 %v1319
    %1678 = vmatpush.bf16.msra.mxu0 %v1315
    %1679 = vmatpush.bf16.msra.mxu0 %v1311
    %1680 = vmatpush.bf16.msra.mxu0 %v1307
    %1681 = vmatpush.bf16.msra.mxu0 %v1303
    %1682 = vmatmul.bf16.gmra.mxu0 %v712
    %v1683 = vpop.f32.mrf.mxu0
    %v1684 = vadd.f32 %v1671, %v1683
    %v1685 = vpop.f32.mrf.mxu0
    %1686 = vdwg.mxu0
    %1687 = vmatpush.bf16.msra.mxu0 %v1363
    %1688 = vmatpush.bf16.msra.mxu0 %v1359
    %1689 = vmatpush.bf16.msra.mxu0 %v1355
    %1690 = vmatpush.bf16.msra.mxu0 %v1351
    %1691 = vmatpush.bf16.msra.mxu0 %v1347
    %1692 = vmatpush.bf16.msra.mxu0 %v1343
    %1693 = vmatpush.bf16.msra.mxu0 %v1339
    %1694 = vmatpush.bf16.msra.mxu0 %v1335
    %1695 = vmatmul.bf16.gmra.mxu0 %v713
    %v1696 = vpop.f32.mrf.mxu0
    %v1697 = vadd.f32 %v1684, %v1696
    %v1698 = vpop.f32.mrf.mxu0
    %1699 = vdwg.mxu0
    %v1700 = vmax.f32 %v1541, 0.0
    %v1701 = vmax.f32 %v1593, 0.0
    %v1702 = vmax.f32 %v1645, 0.0
    %v1703 = vmax.f32 %v1697, 0.0
    %v1704 = vpack.c.bf16 %v1700, %v1700
    %v1705 = vpack.c.bf16 %v1701, %v1701
    %v1706 = vpack.c.bf16 %v1702, %v1702
    %v1707 = vpack.c.bf16 %v1703, %v1703
    %v1708 = vld [vmem:[#allocation11] sm:$0xff]
    %v1709 = vld [vmem:[#allocation11 + $0x8] sm:$0xff]
    %v1710 = vld [vmem:[#allocation11 + $0x10] sm:$0xff]
    %v1711 = vld [vmem:[#allocation11 + $0x18] sm:$0xff]
    %v1712 = vld [vmem:[#allocation11 + $0x20] sm:$0xff]
    %v1713 = vld [vmem:[#allocation11 + $0x28] sm:$0xff]
    %v1714 = vld [vmem:[#allocation11 + $0x30] sm:$0xff]
    %v1715 = vld [vmem:[#allocation11 + $0x38] sm:$0xff]
    %v1716 = vld [vmem:[#allocation11 + $0x40] sm:$0xff]
    %v1717 = vld [vmem:[#allocation11 + $0x48] sm:$0xff]
    %v1718 = vld [vmem:[#allocation11 + $0x50] sm:$0xff]
    %v1719 = vld [vmem:[#allocation11 + $0x58] sm:$0xff]
    %v1720 = vld [vmem:[#allocation11 + $0x60] sm:$0xff]
    %v1721 = vld [vmem:[#allocation11 + $0x68] sm:$0xff]
    %v1722 = vld [vmem:[#allocation11 + $0x70] sm:$0xff]
    %v1723 = vld [vmem:[#allocation11 + $0x78] sm:$0xff]
    %v1724 = vld [vmem:[#allocation11 + $0x80] sm:$0xff]
    %v1725 = vld [vmem:[#allocation11 + $0x88] sm:$0xff]
    %v1726 = vld [vmem:[#allocation11 + $0x90] sm:$0xff]
    %v1727 = vld [vmem:[#allocation11 + $0x98] sm:$0xff]
    %v1728 = vld [vmem:[#allocation11 + $0xa0] sm:$0xff]
    %v1729 = vld [vmem:[#allocation11 + $0xa8] sm:$0xff]
    %v1730 = vld [vmem:[#allocation11 + $0xb0] sm:$0xff]
    %v1731 = vld [vmem:[#allocation11 + $0xb8] sm:$0xff]
    %v1732 = vld [vmem:[#allocation11 + $0xc0] sm:$0xff]
    %v1733 = vld [vmem:[#allocation11 + $0xc8] sm:$0xff]
    %v1734 = vld [vmem:[#allocation11 + $0xd0] sm:$0xff]
    %v1735 = vld [vmem:[#allocation11 + $0xd8] sm:$0xff]
    %v1736 = vld [vmem:[#allocation11 + $0xe0] sm:$0xff]
    %v1737 = vld [vmem:[#allocation11 + $0xe8] sm:$0xff]
    %v1738 = vld [vmem:[#allocation11 + $0xf0] sm:$0xff]
    %v1739 = vld [vmem:[#allocation11 + $0xf8] sm:$0xff]
    %v1740 = vld [vmem:[#allocation11 + $0x100] sm:$0xff]
    %v1741 = vld [vmem:[#allocation11 + $0x108] sm:$0xff]
    %v1742 = vld [vmem:[#allocation11 + $0x110] sm:$0xff]
    %v1743 = vld [vmem:[#allocation11 + $0x118] sm:$0xff]
    %v1744 = vld [vmem:[#allocation11 + $0x120] sm:$0xff]
    %v1745 = vld [vmem:[#allocation11 + $0x128] sm:$0xff]
    %v1746 = vld [vmem:[#allocation11 + $0x130] sm:$0xff]
    %v1747 = vld [vmem:[#allocation11 + $0x138] sm:$0xff]
    %v1748 = vld [vmem:[#allocation11 + $0x140] sm:$0xff]
    %v1749 = vld [vmem:[#allocation11 + $0x148] sm:$0xff]
    %v1750 = vld [vmem:[#allocation11 + $0x150] sm:$0xff]
    %v1751 = vld [vmem:[#allocation11 + $0x158] sm:$0xff]
    %v1752 = vld [vmem:[#allocation11 + $0x160] sm:$0xff]
    %v1753 = vld [vmem:[#allocation11 + $0x168] sm:$0xff]
    %v1754 = vld [vmem:[#allocation11 + $0x170] sm:$0xff]
    %v1755 = vld [vmem:[#allocation11 + $0x178] sm:$0xff]
    %v1756 = vld [vmem:[#allocation11 + $0x180] sm:$0xff]
    %v1757 = vld [vmem:[#allocation11 + $0x188] sm:$0xff]
    %v1758 = vld [vmem:[#allocation11 + $0x190] sm:$0xff]
    %v1759 = vld [vmem:[#allocation11 + $0x198] sm:$0xff]
    %v1760 = vld [vmem:[#allocation11 + $0x1a0] sm:$0xff]
    %v1761 = vld [vmem:[#allocation11 + $0x1a8] sm:$0xff]
    %v1762 = vld [vmem:[#allocation11 + $0x1b0] sm:$0xff]
    %v1763 = vld [vmem:[#allocation11 + $0x1b8] sm:$0xff]
    %v1764 = vld [vmem:[#allocation11 + $0x1c0] sm:$0xff]
    %v1765 = vld [vmem:[#allocation11 + $0x1c8] sm:$0xff]
    %v1766 = vld [vmem:[#allocation11 + $0x1d0] sm:$0xff]
    %v1767 = vld [vmem:[#allocation11 + $0x1d8] sm:$0xff]
    %v1768 = vld [vmem:[#allocation11 + $0x1e0] sm:$0xff]
    %v1769 = vld [vmem:[#allocation11 + $0x1e8] sm:$0xff]
    %v1770 = vld [vmem:[#allocation11 + $0x1f0] sm:$0xff]
    %v1771 = vld [vmem:[#allocation11 + $0x1f8] sm:$0xff]
    %v1772 = vld [vmem:[#allocation11 + $0x200] sm:$0xff]
    %v1773 = vld [vmem:[#allocation11 + $0x208] sm:$0xff]
    %v1774 = vld [vmem:[#allocation11 + $0x210] sm:$0xff]
    %v1775 = vld [vmem:[#allocation11 + $0x218] sm:$0xff]
    %v1776 = vld [vmem:[#allocation11 + $0x220] sm:$0xff]
    %v1777 = vld [vmem:[#allocation11 + $0x228] sm:$0xff]
    %v1778 = vld [vmem:[#allocation11 + $0x230] sm:$0xff]
    %v1779 = vld [vmem:[#allocation11 + $0x238] sm:$0xff]
    %v1780 = vld [vmem:[#allocation11 + $0x240] sm:$0xff]
    %v1781 = vld [vmem:[#allocation11 + $0x248] sm:$0xff]
    %v1782 = vld [vmem:[#allocation11 + $0x250] sm:$0xff]
    %v1783 = vld [vmem:[#allocation11 + $0x258] sm:$0xff]
    %v1784 = vld [vmem:[#allocation11 + $0x260] sm:$0xff]
    %v1785 = vld [vmem:[#allocation11 + $0x268] sm:$0xff]
    %v1786 = vld [vmem:[#allocation11 + $0x270] sm:$0xff]
    %v1787 = vld [vmem:[#allocation11 + $0x278] sm:$0xff]
    %v1788 = vld [vmem:[#allocation11 + $0x280] sm:$0xff]
    %v1789 = vld [vmem:[#allocation11 + $0x288] sm:$0xff]
    %v1790 = vld [vmem:[#allocation11 + $0x290] sm:$0xff]
    %v1791 = vld [vmem:[#allocation11 + $0x298] sm:$0xff]
    %v1792 = vld [vmem:[#allocation11 + $0x2a0] sm:$0xff]
    %v1793 = vld [vmem:[#allocation11 + $0x2a8] sm:$0xff]
    %v1794 = vld [vmem:[#allocation11 + $0x2b0] sm:$0xff]
    %v1795 = vld [vmem:[#allocation11 + $0x2b8] sm:$0xff]
    %v1796 = vld [vmem:[#allocation11 + $0x2c0] sm:$0xff]
    %v1797 = vld [vmem:[#allocation11 + $0x2c8] sm:$0xff]
    %v1798 = vld [vmem:[#allocation11 + $0x2d0] sm:$0xff]
    %v1799 = vld [vmem:[#allocation11 + $0x2d8] sm:$0xff]
    %v1800 = vld [vmem:[#allocation11 + $0x2e0] sm:$0xff]
    %v1801 = vld [vmem:[#allocation11 + $0x2e8] sm:$0xff]
    %v1802 = vld [vmem:[#allocation11 + $0x2f0] sm:$0xff]
    %v1803 = vld [vmem:[#allocation11 + $0x2f8] sm:$0xff]
    %v1804 = vld [vmem:[#allocation11 + $0x300] sm:$0xff]
    %v1805 = vld [vmem:[#allocation11 + $0x308] sm:$0xff]
    %v1806 = vld [vmem:[#allocation11 + $0x310] sm:$0xff]
    %v1807 = vld [vmem:[#allocation11 + $0x318] sm:$0xff]
    %v1808 = vld [vmem:[#allocation11 + $0x320] sm:$0xff]
    %v1809 = vld [vmem:[#allocation11 + $0x328] sm:$0xff]
    %v1810 = vld [vmem:[#allocation11 + $0x330] sm:$0xff]
    %v1811 = vld [vmem:[#allocation11 + $0x338] sm:$0xff]
    %v1812 = vld [vmem:[#allocation11 + $0x340] sm:$0xff]
    %v1813 = vld [vmem:[#allocation11 + $0x348] sm:$0xff]
    %v1814 = vld [vmem:[#allocation11 + $0x350] sm:$0xff]
    %v1815 = vld [vmem:[#allocation11 + $0x358] sm:$0xff]
    %v1816 = vld [vmem:[#allocation11 + $0x360] sm:$0xff]
    %v1817 = vld [vmem:[#allocation11 + $0x368] sm:$0xff]
    %v1818 = vld [vmem:[#allocation11 + $0x370] sm:$0xff]
    %v1819 = vld [vmem:[#allocation11 + $0x378] sm:$0xff]
    %v1820 = vld [vmem:[#allocation11 + $0x380] sm:$0xff]
    %v1821 = vld [vmem:[#allocation11 + $0x388] sm:$0xff]
    %v1822 = vld [vmem:[#allocation11 + $0x390] sm:$0xff]
    %v1823 = vld [vmem:[#allocation11 + $0x398] sm:$0xff]
    %v1824 = vld [vmem:[#allocation11 + $0x3a0] sm:$0xff]
    %v1825 = vld [vmem:[#allocation11 + $0x3a8] sm:$0xff]
    %v1826 = vld [vmem:[#allocation11 + $0x3b0] sm:$0xff]
    %v1827 = vld [vmem:[#allocation11 + $0x3b8] sm:$0xff]
    %v1828 = vld [vmem:[#allocation11 + $0x3c0] sm:$0xff]
    %v1829 = vld [vmem:[#allocation11 + $0x3c8] sm:$0xff]
    %v1830 = vld [vmem:[#allocation11 + $0x3d0] sm:$0xff]
    %v1831 = vld [vmem:[#allocation11 + $0x3d8] sm:$0xff]
    %v1832 = vld [vmem:[#allocation11 + $0x3e0] sm:$0xff]
    %v1833 = vld [vmem:[#allocation11 + $0x3e8] sm:$0xff]
    %v1834 = vld [vmem:[#allocation11 + $0x3f0] sm:$0xff]
    %v1835 = vld [vmem:[#allocation11 + $0x3f8] sm:$0xff]
    %v1836 = vld [vmem:[%s6] sm:$0xf]
    %v1838 = vperm.slane %v1836, 0
    %v1839 = vperm.slane %v1836, 1
    %v1840 = vperm.slane %v1836, 2
    %v1841 = vperm.slane %v1836, 3
    %v1974 = vunpack.c.l.b16 %v1708
    %v1975 = vunpack.c.h.b16 %v1708
    %v1976 = vunpack.c.l.b16 %v1709
    %v1977 = vunpack.c.h.b16 %v1709
    %v1978 = vunpack.c.l.b16 %v1710
    %v1979 = vunpack.c.h.b16 %v1710
    %v1980 = vunpack.c.l.b16 %v1711
    %v1981 = vunpack.c.h.b16 %v1711
    %v1982 = vunpack.c.l.b16 %v1712
    %v1983 = vunpack.c.h.b16 %v1712
    %v1984 = vunpack.c.l.b16 %v1713
    %v1985 = vunpack.c.h.b16 %v1713
    %v1986 = vunpack.c.l.b16 %v1714
    %v1987 = vunpack.c.h.b16 %v1714
    %v1988 = vunpack.c.l.b16 %v1715
    %v1989 = vunpack.c.h.b16 %v1715
    %v1990 = vunpack.c.l.b16 %v1716
    %v1991 = vunpack.c.h.b16 %v1716
    %v1992 = vunpack.c.l.b16 %v1717
    %v1993 = vunpack.c.h.b16 %v1717
    %v1994 = vunpack.c.l.b16 %v1718
    %v1995 = vunpack.c.h.b16 %v1718
    %v1996 = vunpack.c.l.b16 %v1719
    %v1997 = vunpack.c.h.b16 %v1719
    %v1998 = vunpack.c.l.b16 %v1720
    %v1999 = vunpack.c.h.b16 %v1720
    %v2000 = vunpack.c.l.b16 %v1721
    %v2001 = vunpack.c.h.b16 %v1721
    %v2002 = vunpack.c.l.b16 %v1722
    %v2003 = vunpack.c.h.b16 %v1722
    %v2004 = vunpack.c.l.b16 %v1723
    %v2005 = vunpack.c.h.b16 %v1723
    %v2006 = vunpack.c.l.b16 %v1724
    %v2007 = vunpack.c.h.b16 %v1724
    %v2008 = vunpack.c.l.b16 %v1725
    %v2009 = vunpack.c.h.b16 %v1725
    %v2010 = vunpack.c.l.b16 %v1726
    %v2011 = vunpack.c.h.b16 %v1726
    %v2012 = vunpack.c.l.b16 %v1727
    %v2013 = vunpack.c.h.b16 %v1727
    %v2014 = vunpack.c.l.b16 %v1728
    %v2015 = vunpack.c.h.b16 %v1728
    %v2016 = vunpack.c.l.b16 %v1729
    %v2017 = vunpack.c.h.b16 %v1729
    %v2018 = vunpack.c.l.b16 %v1730
    %v2019 = vunpack.c.h.b16 %v1730
    %v2020 = vunpack.c.l.b16 %v1731
    %v2021 = vunpack.c.h.b16 %v1731
    %v2022 = vunpack.c.l.b16 %v1732
    %v2023 = vunpack.c.h.b16 %v1732
    %v2024 = vunpack.c.l.b16 %v1733
    %v2025 = vunpack.c.h.b16 %v1733
    %v2026 = vunpack.c.l.b16 %v1734
    %v2027 = vunpack.c.h.b16 %v1734
    %v2028 = vunpack.c.l.b16 %v1735
    %v2029 = vunpack.c.h.b16 %v1735
    %v2030 = vunpack.c.l.b16 %v1736
    %v2031 = vunpack.c.h.b16 %v1736
    %v2032 = vunpack.c.l.b16 %v1737
    %v2033 = vunpack.c.h.b16 %v1737
    %v2034 = vunpack.c.l.b16 %v1738
    %v2035 = vunpack.c.h.b16 %v1738
    %v2036 = vunpack.c.l.b16 %v1739
    %v2037 = vunpack.c.h.b16 %v1739
    %v2038 = vunpack.c.l.b16 %v1740
    %v2039 = vunpack.c.h.b16 %v1740
    %v2040 = vunpack.c.l.b16 %v1741
    %v2041 = vunpack.c.h.b16 %v1741
    %v2042 = vunpack.c.l.b16 %v1742
    %v2043 = vunpack.c.h.b16 %v1742
    %v2044 = vunpack.c.l.b16 %v1743
    %v2045 = vunpack.c.h.b16 %v1743
    %v2046 = vunpack.c.l.b16 %v1744
    %v2047 = vunpack.c.h.b16 %v1744
    %v2048 = vunpack.c.l.b16 %v1745
    %v2049 = vunpack.c.h.b16 %v1745
    %v2050 = vunpack.c.l.b16 %v1746
    %v2051 = vunpack.c.h.b16 %v1746
    %v2052 = vunpack.c.l.b16 %v1747
    %v2053 = vunpack.c.h.b16 %v1747
    %v2054 = vunpack.c.l.b16 %v1748
    %v2055 = vunpack.c.h.b16 %v1748
    %v2056 = vunpack.c.l.b16 %v1749
    %v2057 = vunpack.c.h.b16 %v1749
    %v2058 = vunpack.c.l.b16 %v1750
    %v2059 = vunpack.c.h.b16 %v1750
    %v2060 = vunpack.c.l.b16 %v1751
    %v2061 = vunpack.c.h.b16 %v1751
    %v2062 = vunpack.c.l.b16 %v1752
    %v2063 = vunpack.c.h.b16 %v1752
    %v2064 = vunpack.c.l.b16 %v1753
    %v2065 = vunpack.c.h.b16 %v1753
    %v2066 = vunpack.c.l.b16 %v1754
    %v2067 = vunpack.c.h.b16 %v1754
    %v2068 = vunpack.c.l.b16 %v1755
    %v2069 = vunpack.c.h.b16 %v1755
    %v2070 = vunpack.c.l.b16 %v1756
    %v2071 = vunpack.c.h.b16 %v1756
    %v2072 = vunpack.c.l.b16 %v1757
    %v2073 = vunpack.c.h.b16 %v1757
    %v2074 = vunpack.c.l.b16 %v1758
    %v2075 = vunpack.c.h.b16 %v1758
    %v2076 = vunpack.c.l.b16 %v1759
    %v2077 = vunpack.c.h.b16 %v1759
    %v2078 = vunpack.c.l.b16 %v1760
    %v2079 = vunpack.c.h.b16 %v1760
    %v2080 = vunpack.c.l.b16 %v1761
    %v2081 = vunpack.c.h.b16 %v1761
    %v2082 = vunpack.c.l.b16 %v1762
    %v2083 = vunpack.c.h.b16 %v1762
    %v2084 = vunpack.c.l.b16 %v1763
    %v2085 = vunpack.c.h.b16 %v1763
    %v2086 = vunpack.c.l.b16 %v1764
    %v2087 = vunpack.c.h.b16 %v1764
    %v2088 = vunpack.c.l.b16 %v1765
    %v2089 = vunpack.c.h.b16 %v1765
    %v2090 = vunpack.c.l.b16 %v1766
    %v2091 = vunpack.c.h.b16 %v1766
    %v2092 = vunpack.c.l.b16 %v1767
    %v2093 = vunpack.c.h.b16 %v1767
    %v2094 = vunpack.c.l.b16 %v1768
    %v2095 = vunpack.c.h.b16 %v1768
    %v2096 = vunpack.c.l.b16 %v1769
    %v2097 = vunpack.c.h.b16 %v1769
    %v2098 = vunpack.c.l.b16 %v1770
    %v2099 = vunpack.c.h.b16 %v1770
    %v2100 = vunpack.c.l.b16 %v1771
    %v2101 = vunpack.c.h.b16 %v1771
    %v2102 = vunpack.c.l.b16 %v1772
    %v2103 = vunpack.c.h.b16 %v1772
    %v2104 = vunpack.c.l.b16 %v1773
    %v2105 = vunpack.c.h.b16 %v1773
    %v2106 = vunpack.c.l.b16 %v1774
    %v2107 = vunpack.c.h.b16 %v1774
    %v2108 = vunpack.c.l.b16 %v1775
    %v2109 = vunpack.c.h.b16 %v1775
    %v2110 = vunpack.c.l.b16 %v1776
    %v2111 = vunpack.c.h.b16 %v1776
    %v2112 = vunpack.c.l.b16 %v1777
    %v2113 = vunpack.c.h.b16 %v1777
    %v2114 = vunpack.c.l.b16 %v1778
    %v2115 = vunpack.c.h.b16 %v1778
    %v2116 = vunpack.c.l.b16 %v1779
    %v2117 = vunpack.c.h.b16 %v1779
    %v2118 = vunpack.c.l.b16 %v1780
    %v2119 = vunpack.c.h.b16 %v1780
    %v2120 = vunpack.c.l.b16 %v1781
    %v2121 = vunpack.c.h.b16 %v1781
    %v2122 = vunpack.c.l.b16 %v1782
    %v2123 = vunpack.c.h.b16 %v1782
    %v2124 = vunpack.c.l.b16 %v1783
    %v2125 = vunpack.c.h.b16 %v1783
    %v2126 = vunpack.c.l.b16 %v1784
    %v2127 = vunpack.c.h.b16 %v1784
    %v2128 = vunpack.c.l.b16 %v1785
    %v2129 = vunpack.c.h.b16 %v1785
    %v2130 = vunpack.c.l.b16 %v1786
    %v2131 = vunpack.c.h.b16 %v1786
    %v2132 = vunpack.c.l.b16 %v1787
    %v2133 = vunpack.c.h.b16 %v1787
    %v2134 = vunpack.c.l.b16 %v1788
    %v2135 = vunpack.c.h.b16 %v1788
    %v2136 = vunpack.c.l.b16 %v1789
    %v2137 = vunpack.c.h.b16 %v1789
    %v2138 = vunpack.c.l.b16 %v1790
    %v2139 = vunpack.c.h.b16 %v1790
    %v2140 = vunpack.c.l.b16 %v1791
    %v2141 = vunpack.c.h.b16 %v1791
    %v2142 = vunpack.c.l.b16 %v1792
    %v2143 = vunpack.c.h.b16 %v1792
    %v2144 = vunpack.c.l.b16 %v1793
    %v2145 = vunpack.c.h.b16 %v1793
    %v2146 = vunpack.c.l.b16 %v1794
    %v2147 = vunpack.c.h.b16 %v1794
    %v2148 = vunpack.c.l.b16 %v1795
    %v2149 = vunpack.c.h.b16 %v1795
    %v2150 = vunpack.c.l.b16 %v1796
    %v2151 = vunpack.c.h.b16 %v1796
    %v2152 = vunpack.c.l.b16 %v1797
    %v2153 = vunpack.c.h.b16 %v1797
    %v2154 = vunpack.c.l.b16 %v1798
    %v2155 = vunpack.c.h.b16 %v1798
    %v2156 = vunpack.c.l.b16 %v1799
    %v2157 = vunpack.c.h.b16 %v1799
    %v2158 = vunpack.c.l.b16 %v1800
    %v2159 = vunpack.c.h.b16 %v1800
    %v2160 = vunpack.c.l.b16 %v1801
    %v2161 = vunpack.c.h.b16 %v1801
    %v2162 = vunpack.c.l.b16 %v1802
    %v2163 = vunpack.c.h.b16 %v1802
    %v2164 = vunpack.c.l.b16 %v1803
    %v2165 = vunpack.c.h.b16 %v1803
    %v2166 = vunpack.c.l.b16 %v1804
    %v2167 = vunpack.c.h.b16 %v1804
    %v2168 = vunpack.c.l.b16 %v1805
    %v2169 = vunpack.c.h.b16 %v1805
    %v2170 = vunpack.c.l.b16 %v1806
    %v2171 = vunpack.c.h.b16 %v1806
    %v2172 = vunpack.c.l.b16 %v1807
    %v2173 = vunpack.c.h.b16 %v1807
    %v2174 = vunpack.c.l.b16 %v1808
    %v2175 = vunpack.c.h.b16 %v1808
    %v2176 = vunpack.c.l.b16 %v1809
    %v2177 = vunpack.c.h.b16 %v1809
    %v2178 = vunpack.c.l.b16 %v1810
    %v2179 = vunpack.c.h.b16 %v1810
    %v2180 = vunpack.c.l.b16 %v1811
    %v2181 = vunpack.c.h.b16 %v1811
    %v2182 = vunpack.c.l.b16 %v1812
    %v2183 = vunpack.c.h.b16 %v1812
    %v2184 = vunpack.c.l.b16 %v1813
    %v2185 = vunpack.c.h.b16 %v1813
    %v2186 = vunpack.c.l.b16 %v1814
    %v2187 = vunpack.c.h.b16 %v1814
    %v2188 = vunpack.c.l.b16 %v1815
    %v2189 = vunpack.c.h.b16 %v1815
    %v2190 = vunpack.c.l.b16 %v1816
    %v2191 = vunpack.c.h.b16 %v1816
    %v2192 = vunpack.c.l.b16 %v1817
    %v2193 = vunpack.c.h.b16 %v1817
    %v2194 = vunpack.c.l.b16 %v1818
    %v2195 = vunpack.c.h.b16 %v1818
    %v2196 = vunpack.c.l.b16 %v1819
    %v2197 = vunpack.c.h.b16 %v1819
    %v2198 = vunpack.c.l.b16 %v1820
    %v2199 = vunpack.c.h.b16 %v1820
    %v2200 = vunpack.c.l.b16 %v1821
    %v2201 = vunpack.c.h.b16 %v1821
    %v2202 = vunpack.c.l.b16 %v1822
    %v2203 = vunpack.c.h.b16 %v1822
    %v2204 = vunpack.c.l.b16 %v1823
    %v2205 = vunpack.c.h.b16 %v1823
    %v2206 = vunpack.c.l.b16 %v1824
    %v2207 = vunpack.c.h.b16 %v1824
    %v2208 = vunpack.c.l.b16 %v1825
    %v2209 = vunpack.c.h.b16 %v1825
    %v2210 = vunpack.c.l.b16 %v1826
    %v2211 = vunpack.c.h.b16 %v1826
    %v2212 = vunpack.c.l.b16 %v1827
    %v2213 = vunpack.c.h.b16 %v1827
    %v2214 = vunpack.c.l.b16 %v1828
    %v2215 = vunpack.c.h.b16 %v1828
    %v2216 = vunpack.c.l.b16 %v1829
    %v2217 = vunpack.c.h.b16 %v1829
    %v2218 = vunpack.c.l.b16 %v1830
    %v2219 = vunpack.c.h.b16 %v1830
    %v2220 = vunpack.c.l.b16 %v1831
    %v2221 = vunpack.c.h.b16 %v1831
    %v2222 = vunpack.c.l.b16 %v1832
    %v2223 = vunpack.c.h.b16 %v1832
    %v2224 = vunpack.c.l.b16 %v1833
    %v2225 = vunpack.c.h.b16 %v1833
    %v2226 = vunpack.c.l.b16 %v1834
    %v2227 = vunpack.c.h.b16 %v1834
    %v2228 = vunpack.c.l.b16 %v1835
    %v2229 = vunpack.c.h.b16 %v1835
    %v2230 = vpack.c.b16 %v1978, %v1974
    %v2231 = vpack.c.b16 %v1979, %v1975
    %v2232 = vpack.c.b16 %v1980, %v1976
    %v2233 = vpack.c.b16 %v1981, %v1977
    %v2234 = vpack.c.b16 %v1986, %v1982
    %v2235 = vpack.c.b16 %v1987, %v1983
    %v2236 = vpack.c.b16 %v1988, %v1984
    %v2237 = vpack.c.b16 %v1989, %v1985
    %v2238 = vpack.c.b16 %v1994, %v1990
    %v2239 = vpack.c.b16 %v1995, %v1991
    %v2240 = vpack.c.b16 %v1996, %v1992
    %v2241 = vpack.c.b16 %v1997, %v1993
    %v2242 = vpack.c.b16 %v2002, %v1998
    %v2243 = vpack.c.b16 %v2003, %v1999
    %v2244 = vpack.c.b16 %v2004, %v2000
    %v2245 = vpack.c.b16 %v2005, %v2001
    %v2246 = vpack.c.b16 %v2010, %v2006
    %v2247 = vpack.c.b16 %v2011, %v2007
    %v2248 = vpack.c.b16 %v2012, %v2008
    %v2249 = vpack.c.b16 %v2013, %v2009
    %v2250 = vpack.c.b16 %v2018, %v2014
    %v2251 = vpack.c.b16 %v2019, %v2015
    %v2252 = vpack.c.b16 %v2020, %v2016
    %v2253 = vpack.c.b16 %v2021, %v2017
    %v2254 = vpack.c.b16 %v2026, %v2022
    %v2255 = vpack.c.b16 %v2027, %v2023
    %v2256 = vpack.c.b16 %v2028, %v2024
    %v2257 = vpack.c.b16 %v2029, %v2025
    %v2258 = vpack.c.b16 %v2034, %v2030
    %v2259 = vpack.c.b16 %v2035, %v2031
    %v2260 = vpack.c.b16 %v2036, %v2032
    %v2261 = vpack.c.b16 %v2037, %v2033
    %v2262 = vpack.c.b16 %v2042, %v2038
    %v2263 = vpack.c.b16 %v2043, %v2039
    %v2264 = vpack.c.b16 %v2044, %v2040
    %v2265 = vpack.c.b16 %v2045, %v2041
    %v2266 = vpack.c.b16 %v2050, %v2046
    %v2267 = vpack.c.b16 %v2051, %v2047
    %v2268 = vpack.c.b16 %v2052, %v2048
    %v2269 = vpack.c.b16 %v2053, %v2049
    %v2270 = vpack.c.b16 %v2058, %v2054
    %v2271 = vpack.c.b16 %v2059, %v2055
    %v2272 = vpack.c.b16 %v2060, %v2056
    %v2273 = vpack.c.b16 %v2061, %v2057
    %v2274 = vpack.c.b16 %v2066, %v2062
    %v2275 = vpack.c.b16 %v2067, %v2063
    %v2276 = vpack.c.b16 %v2068, %v2064
    %v2277 = vpack.c.b16 %v2069, %v2065
    %v2278 = vpack.c.b16 %v2074, %v2070
    %v2279 = vpack.c.b16 %v2075, %v2071
    %v2280 = vpack.c.b16 %v2076, %v2072
    %v2281 = vpack.c.b16 %v2077, %v2073
    %v2282 = vpack.c.b16 %v2082, %v2078
    %v2283 = vpack.c.b16 %v2083, %v2079
    %v2284 = vpack.c.b16 %v2084, %v2080
    %v2285 = vpack.c.b16 %v2085, %v2081
    %v2286 = vpack.c.b16 %v2090, %v2086
    %v2287 = vpack.c.b16 %v2091, %v2087
    %v2288 = vpack.c.b16 %v2092, %v2088
    %v2289 = vpack.c.b16 %v2093, %v2089
    %v2290 = vpack.c.b16 %v2098, %v2094
    %v2291 = vpack.c.b16 %v2099, %v2095
    %v2292 = vpack.c.b16 %v2100, %v2096
    %v2293 = vpack.c.b16 %v2101, %v2097
    %v2294 = vpack.c.b16 %v2106, %v2102
    %v2295 = vpack.c.b16 %v2107, %v2103
    %v2296 = vpack.c.b16 %v2108, %v2104
    %v2297 = vpack.c.b16 %v2109, %v2105
    %v2298 = vpack.c.b16 %v2114, %v2110
    %v2299 = vpack.c.b16 %v2115, %v2111
    %v2300 = vpack.c.b16 %v2116, %v2112
    %v2301 = vpack.c.b16 %v2117, %v2113
    %v2302 = vpack.c.b16 %v2122, %v2118
    %v2303 = vpack.c.b16 %v2123, %v2119
    %v2304 = vpack.c.b16 %v2124, %v2120
    %v2305 = vpack.c.b16 %v2125, %v2121
    %v2306 = vpack.c.b16 %v2130, %v2126
    %v2307 = vpack.c.b16 %v2131, %v2127
    %v2308 = vpack.c.b16 %v2132, %v2128
    %v2309 = vpack.c.b16 %v2133, %v2129
    %v2310 = vpack.c.b16 %v2138, %v2134
    %v2311 = vpack.c.b16 %v2139, %v2135
    %v2312 = vpack.c.b16 %v2140, %v2136
    %v2313 = vpack.c.b16 %v2141, %v2137
    %v2314 = vpack.c.b16 %v2146, %v2142
    %v2315 = vpack.c.b16 %v2147, %v2143
    %v2316 = vpack.c.b16 %v2148, %v2144
    %v2317 = vpack.c.b16 %v2149, %v2145
    %v2318 = vpack.c.b16 %v2154, %v2150
    %v2319 = vpack.c.b16 %v2155, %v2151
    %v2320 = vpack.c.b16 %v2156, %v2152
    %v2321 = vpack.c.b16 %v2157, %v2153
    %v2322 = vpack.c.b16 %v2162, %v2158
    %v2323 = vpack.c.b16 %v2163, %v2159
    %v2324 = vpack.c.b16 %v2164, %v2160
    %v2325 = vpack.c.b16 %v2165, %v2161
    %v2326 = vpack.c.b16 %v2170, %v2166
    %v2327 = vpack.c.b16 %v2171, %v2167
    %v2328 = vpack.c.b16 %v2172, %v2168
    %v2329 = vpack.c.b16 %v2173, %v2169
    %v2330 = vpack.c.b16 %v2178, %v2174
    %v2331 = vpack.c.b16 %v2179, %v2175
    %v2332 = vpack.c.b16 %v2180, %v2176
    %v2333 = vpack.c.b16 %v2181, %v2177
    %v2334 = vpack.c.b16 %v2186, %v2182
    %v2335 = vpack.c.b16 %v2187, %v2183
    %v2336 = vpack.c.b16 %v2188, %v2184
    %v2337 = vpack.c.b16 %v2189, %v2185
    %v2338 = vpack.c.b16 %v2194, %v2190
    %v2339 = vpack.c.b16 %v2195, %v2191
    %v2340 = vpack.c.b16 %v2196, %v2192
    %v2341 = vpack.c.b16 %v2197, %v2193
    %v2342 = vpack.c.b16 %v2202, %v2198
    %v2343 = vpack.c.b16 %v2203, %v2199
    %v2344 = vpack.c.b16 %v2204, %v2200
    %v2345 = vpack.c.b16 %v2205, %v2201
    %v2346 = vpack.c.b16 %v2210, %v2206
    %v2347 = vpack.c.b16 %v2211, %v2207
    %v2348 = vpack.c.b16 %v2212, %v2208
    %v2349 = vpack.c.b16 %v2213, %v2209
    %v2350 = vpack.c.b16 %v2218, %v2214
    %v2351 = vpack.c.b16 %v2219, %v2215
    %v2352 = vpack.c.b16 %v2220, %v2216
    %v2353 = vpack.c.b16 %v2221, %v2217
    %v2354 = vpack.c.b16 %v2226, %v2222
    %v2355 = vpack.c.b16 %v2227, %v2223
    %v2356 = vpack.c.b16 %v2228, %v2224
    %v2357 = vpack.c.b16 %v2229, %v2225
    %2486 = vmatpush.bf16.msra.mxu0 %v2258
    %2487 = vmatpush.bf16.msra.mxu0 %v2254
    %2488 = vmatpush.bf16.msra.mxu0 %v2250
    %2489 = vmatpush.bf16.msra.mxu0 %v2246
    %2490 = vmatpush.bf16.msra.mxu0 %v2242
    %2491 = vmatpush.bf16.msra.mxu0 %v2238
    %2492 = vmatpush.bf16.msra.mxu0 %v2234
    %2493 = vmatpush.bf16.msra.mxu0 %v2230
    %2494 = vmatmul.bf16.gmra.mxu0 %v1704
    %v2495 = vpop.f32.mrf.mxu0
    %v2496 = vadd.f32 %v1838, %v2495
    %v2497 = vpop.f32.mrf.mxu0
    %2498 = vdwg.mxu0
    %2499 = vmatpush.bf16.msra.mxu0 %v2290
    %2500 = vmatpush.bf16.msra.mxu0 %v2286
    %2501 = vmatpush.bf16.msra.mxu0 %v2282
    %2502 = vmatpush.bf16.msra.mxu0 %v2278
    %2503 = vmatpush.bf16.msra.mxu0 %v2274
    %2504 = vmatpush.bf16.msra.mxu0 %v2270
    %2505 = vmatpush.bf16.msra.mxu0 %v2266
    %2506 = vmatpush.bf16.msra.mxu0 %v2262
    %2507 = vmatmul.bf16.gmra.mxu0 %v1705
    %v2508 = vpop.f32.mrf.mxu0
    %v2509 = vadd.f32 %v2496, %v2508
    %v2510 = vpop.f32.mrf.mxu0
    %2511 = vdwg.mxu0
    %2512 = vmatpush.bf16.msra.mxu0 %v2322
    %2513 = vmatpush.bf16.msra.mxu0 %v2318
    %2514 = vmatpush.bf16.msra.mxu0 %v2314
    %2515 = vmatpush.bf16.msra.mxu0 %v2310
    %2516 = vmatpush.bf16.msra.mxu0 %v2306
    %2517 = vmatpush.bf16.msra.mxu0 %v2302
    %2518 = vmatpush.bf16.msra.mxu0 %v2298
    %2519 = vmatpush.bf16.msra.mxu0 %v2294
    %2520 = vmatmul.bf16.gmra.mxu0 %v1706
    %v2521 = vpop.f32.mrf.mxu0
    %v2522 = vadd.f32 %v2509, %v2521
    %v2523 = vpop.f32.mrf.mxu0
    %2524 = vdwg.mxu0
    %2525 = vmatpush.bf16.msra.mxu0 %v2354
    %2526 = vmatpush.bf16.msra.mxu0 %v2350
    %2527 = vmatpush.bf16.msra.mxu0 %v2346
    %2528 = vmatpush.bf16.msra.mxu0 %v2342
    %2529 = vmatpush.bf16.msra.mxu0 %v2338
    %2530 = vmatpush.bf16.msra.mxu0 %v2334
    %2531 = vmatpush.bf16.msra.mxu0 %v2330
    %2532 = vmatpush.bf16.msra.mxu0 %v2326
    %2533 = vmatmul.bf16.gmra.mxu0 %v1707
    %v2534 = vpop.f32.mrf.mxu0
    %v2535 = vadd.f32 %v2522, %v2534
    %v2536 = vpop.f32.mrf.mxu0
    %2537 = vdwg.mxu0
    %2538 = vmatpush.bf16.msra.mxu0 %v2259
    %2539 = vmatpush.bf16.msra.mxu0 %v2255
    %2540 = vmatpush.bf16.msra.mxu0 %v2251
    %2541 = vmatpush.bf16.msra.mxu0 %v2247
    %2542 = vmatpush.bf16.msra.mxu0 %v2243
    %2543 = vmatpush.bf16.msra.mxu0 %v2239
    %2544 = vmatpush.bf16.msra.mxu0 %v2235
    %2545 = vmatpush.bf16.msra.mxu0 %v2231
    %2546 = vmatmul.bf16.gmra.mxu0 %v1704
    %v2547 = vpop.f32.mrf.mxu0
    %v2548 = vadd.f32 %v1839, %v2547
    %v2549 = vpop.f32.mrf.mxu0
    %2550 = vdwg.mxu0
    %2551 = vmatpush.bf16.msra.mxu0 %v2291
    %2552 = vmatpush.bf16.msra.mxu0 %v2287
    %2553 = vmatpush.bf16.msra.mxu0 %v2283
    %2554 = vmatpush.bf16.msra.mxu0 %v2279
    %2555 = vmatpush.bf16.msra.mxu0 %v2275
    %2556 = vmatpush.bf16.msra.mxu0 %v2271
    %2557 = vmatpush.bf16.msra.mxu0 %v2267
    %2558 = vmatpush.bf16.msra.mxu0 %v2263
    %2559 = vmatmul.bf16.gmra.mxu0 %v1705
    %v2560 = vpop.f32.mrf.mxu0
    %v2561 = vadd.f32 %v2548, %v2560
    %v2562 = vpop.f32.mrf.mxu0
    %2563 = vdwg.mxu0
    %2564 = vmatpush.bf16.msra.mxu0 %v2323
    %2565 = vmatpush.bf16.msra.mxu0 %v2319
    %2566 = vmatpush.bf16.msra.mxu0 %v2315
    %2567 = vmatpush.bf16.msra.mxu0 %v2311
    %2568 = vmatpush.bf16.msra.mxu0 %v2307
    %2569 = vmatpush.bf16.msra.mxu0 %v2303
    %2570 = vmatpush.bf16.msra.mxu0 %v2299
    %2571 = vmatpush.bf16.msra.mxu0 %v2295
    %2572 = vmatmul.bf16.gmra.mxu0 %v1706
    %v2573 = vpop.f32.mrf.mxu0
    %v2574 = vadd.f32 %v2561, %v2573
    %v2575 = vpop.f32.mrf.mxu0
    %2576 = vdwg.mxu0
    %2577 = vmatpush.bf16.msra.mxu0 %v2355
    %2578 = vmatpush.bf16.msra.mxu0 %v2351
    %2579 = vmatpush.bf16.msra.mxu0 %v2347
    %2580 = vmatpush.bf16.msra.mxu0 %v2343
    %2581 = vmatpush.bf16.msra.mxu0 %v2339
    %2582 = vmatpush.bf16.msra.mxu0 %v2335
    %2583 = vmatpush.bf16.msra.mxu0 %v2331
    %2584 = vmatpush.bf16.msra.mxu0 %v2327
    %2585 = vmatmul.bf16.gmra.mxu0 %v1707
    %v2586 = vpop.f32.mrf.mxu0
    %v2587 = vadd.f32 %v2574, %v2586
    %v2588 = vpop.f32.mrf.mxu0
    %2589 = vdwg.mxu0
    %2590 = vmatpush.bf16.msra.mxu0 %v2260
    %2591 = vmatpush.bf16.msra.mxu0 %v2256
    %2592 = vmatpush.bf16.msra.mxu0 %v2252
    %2593 = vmatpush.bf16.msra.mxu0 %v2248
    %2594 = vmatpush.bf16.msra.mxu0 %v2244
    %2595 = vmatpush.bf16.msra.mxu0 %v2240
    %2596 = vmatpush.bf16.msra.mxu0 %v2236
    %2597 = vmatpush.bf16.msra.mxu0 %v2232
    %2598 = vmatmul.bf16.gmra.mxu0 %v1704
    %v2599 = vpop.f32.mrf.mxu0
    %v2600 = vadd.f32 %v1840, %v2599
    %v2601 = vpop.f32.mrf.mxu0
    %2602 = vdwg.mxu0
    %2603 = vmatpush.bf16.msra.mxu0 %v2292
    %2604 = vmatpush.bf16.msra.mxu0 %v2288
    %2605 = vmatpush.bf16.msra.mxu0 %v2284
    %2606 = vmatpush.bf16.msra.mxu0 %v2280
    %2607 = vmatpush.bf16.msra.mxu0 %v2276
    %2608 = vmatpush.bf16.msra.mxu0 %v2272
    %2609 = vmatpush.bf16.msra.mxu0 %v2268
    %2610 = vmatpush.bf16.msra.mxu0 %v2264
    %2611 = vmatmul.bf16.gmra.mxu0 %v1705
    %v2612 = vpop.f32.mrf.mxu0
    %v2613 = vadd.f32 %v2600, %v2612
    %v2614 = vpop.f32.mrf.mxu0
    %2615 = vdwg.mxu0
    %2616 = vmatpush.bf16.msra.mxu0 %v2324
    %2617 = vmatpush.bf16.msra.mxu0 %v2320
    %2618 = vmatpush.bf16.msra.mxu0 %v2316
    %2619 = vmatpush.bf16.msra.mxu0 %v2312
    %2620 = vmatpush.bf16.msra.mxu0 %v2308
    %2621 = vmatpush.bf16.msra.mxu0 %v2304
    %2622 = vmatpush.bf16.msra.mxu0 %v2300
    %2623 = vmatpush.bf16.msra.mxu0 %v2296
    %2624 = vmatmul.bf16.gmra.mxu0 %v1706
    %v2625 = vpop.f32.mrf.mxu0
    %v2626 = vadd.f32 %v2613, %v2625
    %v2627 = vpop.f32.mrf.mxu0
    %2628 = vdwg.mxu0
    %2629 = vmatpush.bf16.msra.mxu0 %v2356
    %2630 = vmatpush.bf16.msra.mxu0 %v2352
    %2631 = vmatpush.bf16.msra.mxu0 %v2348
    %2632 = vmatpush.bf16.msra.mxu0 %v2344
    %2633 = vmatpush.bf16.msra.mxu0 %v2340
    %2634 = vmatpush.bf16.msra.mxu0 %v2336
    %2635 = vmatpush.bf16.msra.mxu0 %v2332
    %2636 = vmatpush.bf16.msra.mxu0 %v2328
    %2637 = vmatmul.bf16.gmra.mxu0 %v1707
    %v2638 = vpop.f32.mrf.mxu0
    %v2639 = vadd.f32 %v2626, %v2638
    %v2640 = vpop.f32.mrf.mxu0
    %2641 = vdwg.mxu0
    %2642 = vmatpush.bf16.msra.mxu0 %v2261
    %2643 = vmatpush.bf16.msra.mxu0 %v2257
    %2644 = vmatpush.bf16.msra.mxu0 %v2253
    %2645 = vmatpush.bf16.msra.mxu0 %v2249
    %2646 = vmatpush.bf16.msra.mxu0 %v2245
    %2647 = vmatpush.bf16.msra.mxu0 %v2241
    %2648 = vmatpush.bf16.msra.mxu0 %v2237
    %2649 = vmatpush.bf16.msra.mxu0 %v2233
    %2650 = vmatmul.bf16.gmra.mxu0 %v1704
    %v2651 = vpop.f32.mrf.mxu0
    %v2652 = vadd.f32 %v1841, %v2651
    %v2653 = vpop.f32.mrf.mxu0
    %2654 = vdwg.mxu0
    %2655 = vmatpush.bf16.msra.mxu0 %v2293
    %2656 = vmatpush.bf16.msra.mxu0 %v2289
    %2657 = vmatpush.bf16.msra.mxu0 %v2285
    %2658 = vmatpush.bf16.msra.mxu0 %v2281
    %2659 = vmatpush.bf16.msra.mxu0 %v2277
    %2660 = vmatpush.bf16.msra.mxu0 %v2273
    %2661 = vmatpush.bf16.msra.mxu0 %v2269
    %2662 = vmatpush.bf16.msra.mxu0 %v2265
    %2663 = vmatmul.bf16.gmra.mxu0 %v1705
    %v2664 = vpop.f32.mrf.mxu0
    %v2665 = vadd.f32 %v2652, %v2664
    %v2666 = vpop.f32.mrf.mxu0
    %2667 = vdwg.mxu0
    %2668 = vmatpush.bf16.msra.mxu0 %v2325
    %2669 = vmatpush.bf16.msra.mxu0 %v2321
    %2670 = vmatpush.bf16.msra.mxu0 %v2317
    %2671 = vmatpush.bf16.msra.mxu0 %v2313
    %2672 = vmatpush.bf16.msra.mxu0 %v2309
    %2673 = vmatpush.bf16.msra.mxu0 %v2305
    %2674 = vmatpush.bf16.msra.mxu0 %v2301
    %2675 = vmatpush.bf16.msra.mxu0 %v2297
    %2676 = vmatmul.bf16.gmra.mxu0 %v1706
    %v2677 = vpop.f32.mrf.mxu0
    %v2678 = vadd.f32 %v2665, %v2677
    %v2679 = vpop.f32.mrf.mxu0
    %2680 = vdwg.mxu0
    %2681 = vmatpush.bf16.msra.mxu0 %v2357
    %2682 = vmatpush.bf16.msra.mxu0 %v2353
    %2683 = vmatpush.bf16.msra.mxu0 %v2349
    %2684 = vmatpush.bf16.msra.mxu0 %v2345
    %2685 = vmatpush.bf16.msra.mxu0 %v2341
    %2686 = vmatpush.bf16.msra.mxu0 %v2337
    %2687 = vmatpush.bf16.msra.mxu0 %v2333
    %2688 = vmatpush.bf16.msra.mxu0 %v2329
    %2689 = vmatmul.bf16.gmra.mxu0 %v1707
    %v2690 = vpop.f32.mrf.mxu0
    %v2691 = vadd.f32 %v2678, %v2690
    %v2692 = vpop.f32.mrf.mxu0
    %2693 = vdwg.mxu0
    %v2694 = vmax.f32 %v2535, 0.0
    %v2695 = vmax.f32 %v2587, 0.0
    %v2696 = vmax.f32 %v2639, 0.0
    %v2697 = vmax.f32 %v2691, 0.0
    %v2698 = vpack.c.bf16 %v2694, %v2694
    %v2699 = vpack.c.bf16 %v2695, %v2695
    %v2700 = vpack.c.bf16 %v2696, %v2696
    %v2701 = vpack.c.bf16 %v2697, %v2697
    %v2702 = vld [vmem:[#allocation13] sm:$0xff]
    %v2703 = vld [vmem:[#allocation13 + $0x8] sm:$0xff]
    %v2704 = vld [vmem:[#allocation13 + $0x10] sm:$0xff]
    %v2705 = vld [vmem:[#allocation13 + $0x18] sm:$0xff]
    %v2706 = vld [vmem:[#allocation13 + $0x20] sm:$0xff]
    %v2707 = vld [vmem:[#allocation13 + $0x28] sm:$0xff]
    %v2708 = vld [vmem:[#allocation13 + $0x30] sm:$0xff]
    %v2709 = vld [vmem:[#allocation13 + $0x38] sm:$0xff]
    %v2710 = vld [vmem:[#allocation13 + $0x40] sm:$0xff]
    %v2711 = vld [vmem:[#allocation13 + $0x48] sm:$0xff]
    %v2712 = vld [vmem:[#allocation13 + $0x50] sm:$0xff]
    %v2713 = vld [vmem:[#allocation13 + $0x58] sm:$0xff]
    %v2714 = vld [vmem:[#allocation13 + $0x60] sm:$0xff]
    %v2715 = vld [vmem:[#allocation13 + $0x68] sm:$0xff]
    %v2716 = vld [vmem:[#allocation13 + $0x70] sm:$0xff]
    %v2717 = vld [vmem:[#allocation13 + $0x78] sm:$0xff]
    %v2718 = vld [vmem:[#allocation13 + $0x80] sm:$0xff]
    %v2719 = vld [vmem:[#allocation13 + $0x88] sm:$0xff]
    %v2720 = vld [vmem:[#allocation13 + $0x90] sm:$0xff]
    %v2721 = vld [vmem:[#allocation13 + $0x98] sm:$0xff]
    %v2722 = vld [vmem:[#allocation13 + $0xa0] sm:$0xff]
    %v2723 = vld [vmem:[#allocation13 + $0xa8] sm:$0xff]
    %v2724 = vld [vmem:[#allocation13 + $0xb0] sm:$0xff]
    %v2725 = vld [vmem:[#allocation13 + $0xb8] sm:$0xff]
    %v2726 = vld [vmem:[#allocation13 + $0xc0] sm:$0xff]
    %v2727 = vld [vmem:[#allocation13 + $0xc8] sm:$0xff]
    %v2728 = vld [vmem:[#allocation13 + $0xd0] sm:$0xff]
    %v2729 = vld [vmem:[#allocation13 + $0xd8] sm:$0xff]
    %v2730 = vld [vmem:[#allocation13 + $0xe0] sm:$0xff]
    %v2731 = vld [vmem:[#allocation13 + $0xe8] sm:$0xff]
    %v2732 = vld [vmem:[#allocation13 + $0xf0] sm:$0xff]
    %v2733 = vld [vmem:[#allocation13 + $0xf8] sm:$0xff]
    %v2734 = vld [vmem:[#allocation13 + $0x100] sm:$0xff]
    %v2735 = vld [vmem:[#allocation13 + $0x108] sm:$0xff]
    %v2736 = vld [vmem:[#allocation13 + $0x110] sm:$0xff]
    %v2737 = vld [vmem:[#allocation13 + $0x118] sm:$0xff]
    %v2738 = vld [vmem:[#allocation13 + $0x120] sm:$0xff]
    %v2739 = vld [vmem:[#allocation13 + $0x128] sm:$0xff]
    %v2740 = vld [vmem:[#allocation13 + $0x130] sm:$0xff]
    %v2741 = vld [vmem:[#allocation13 + $0x138] sm:$0xff]
    %v2742 = vld [vmem:[#allocation13 + $0x140] sm:$0xff]
    %v2743 = vld [vmem:[#allocation13 + $0x148] sm:$0xff]
    %v2744 = vld [vmem:[#allocation13 + $0x150] sm:$0xff]
    %v2745 = vld [vmem:[#allocation13 + $0x158] sm:$0xff]
    %v2746 = vld [vmem:[#allocation13 + $0x160] sm:$0xff]
    %v2747 = vld [vmem:[#allocation13 + $0x168] sm:$0xff]
    %v2748 = vld [vmem:[#allocation13 + $0x170] sm:$0xff]
    %v2749 = vld [vmem:[#allocation13 + $0x178] sm:$0xff]
    %v2750 = vld [vmem:[#allocation13 + $0x180] sm:$0xff]
    %v2751 = vld [vmem:[#allocation13 + $0x188] sm:$0xff]
    %v2752 = vld [vmem:[#allocation13 + $0x190] sm:$0xff]
    %v2753 = vld [vmem:[#allocation13 + $0x198] sm:$0xff]
    %v2754 = vld [vmem:[#allocation13 + $0x1a0] sm:$0xff]
    %v2755 = vld [vmem:[#allocation13 + $0x1a8] sm:$0xff]
    %v2756 = vld [vmem:[#allocation13 + $0x1b0] sm:$0xff]
    %v2757 = vld [vmem:[#allocation13 + $0x1b8] sm:$0xff]
    %v2758 = vld [vmem:[#allocation13 + $0x1c0] sm:$0xff]
    %v2759 = vld [vmem:[#allocation13 + $0x1c8] sm:$0xff]
    %v2760 = vld [vmem:[#allocation13 + $0x1d0] sm:$0xff]
    %v2761 = vld [vmem:[#allocation13 + $0x1d8] sm:$0xff]
    %v2762 = vld [vmem:[#allocation13 + $0x1e0] sm:$0xff]
    %v2763 = vld [vmem:[#allocation13 + $0x1e8] sm:$0xff]
    %v2764 = vld [vmem:[#allocation13 + $0x1f0] sm:$0xff]
    %v2765 = vld [vmem:[#allocation13 + $0x1f8] sm:$0xff]
    %v2766 = vld [vmem:[#allocation13 + $0x200] sm:$0xff]
    %v2767 = vld [vmem:[#allocation13 + $0x208] sm:$0xff]
    %v2768 = vld [vmem:[#allocation13 + $0x210] sm:$0xff]
    %v2769 = vld [vmem:[#allocation13 + $0x218] sm:$0xff]
    %v2770 = vld [vmem:[#allocation13 + $0x220] sm:$0xff]
    %v2771 = vld [vmem:[#allocation13 + $0x228] sm:$0xff]
    %v2772 = vld [vmem:[#allocation13 + $0x230] sm:$0xff]
    %v2773 = vld [vmem:[#allocation13 + $0x238] sm:$0xff]
    %v2774 = vld [vmem:[#allocation13 + $0x240] sm:$0xff]
    %v2775 = vld [vmem:[#allocation13 + $0x248] sm:$0xff]
    %v2776 = vld [vmem:[#allocation13 + $0x250] sm:$0xff]
    %v2777 = vld [vmem:[#allocation13 + $0x258] sm:$0xff]
    %v2778 = vld [vmem:[#allocation13 + $0x260] sm:$0xff]
    %v2779 = vld [vmem:[#allocation13 + $0x268] sm:$0xff]
    %v2780 = vld [vmem:[#allocation13 + $0x270] sm:$0xff]
    %v2781 = vld [vmem:[#allocation13 + $0x278] sm:$0xff]
    %v2782 = vld [vmem:[#allocation13 + $0x280] sm:$0xff]
    %v2783 = vld [vmem:[#allocation13 + $0x288] sm:$0xff]
    %v2784 = vld [vmem:[#allocation13 + $0x290] sm:$0xff]
    %v2785 = vld [vmem:[#allocation13 + $0x298] sm:$0xff]
    %v2786 = vld [vmem:[#allocation13 + $0x2a0] sm:$0xff]
    %v2787 = vld [vmem:[#allocation13 + $0x2a8] sm:$0xff]
    %v2788 = vld [vmem:[#allocation13 + $0x2b0] sm:$0xff]
    %v2789 = vld [vmem:[#allocation13 + $0x2b8] sm:$0xff]
    %v2790 = vld [vmem:[#allocation13 + $0x2c0] sm:$0xff]
    %v2791 = vld [vmem:[#allocation13 + $0x2c8] sm:$0xff]
    %v2792 = vld [vmem:[#allocation13 + $0x2d0] sm:$0xff]
    %v2793 = vld [vmem:[#allocation13 + $0x2d8] sm:$0xff]
    %v2794 = vld [vmem:[#allocation13 + $0x2e0] sm:$0xff]
    %v2795 = vld [vmem:[#allocation13 + $0x2e8] sm:$0xff]
    %v2796 = vld [vmem:[#allocation13 + $0x2f0] sm:$0xff]
    %v2797 = vld [vmem:[#allocation13 + $0x2f8] sm:$0xff]
    %v2798 = vld [vmem:[#allocation13 + $0x300] sm:$0xff]
    %v2799 = vld [vmem:[#allocation13 + $0x308] sm:$0xff]
    %v2800 = vld [vmem:[#allocation13 + $0x310] sm:$0xff]
    %v2801 = vld [vmem:[#allocation13 + $0x318] sm:$0xff]
    %v2802 = vld [vmem:[#allocation13 + $0x320] sm:$0xff]
    %v2803 = vld [vmem:[#allocation13 + $0x328] sm:$0xff]
    %v2804 = vld [vmem:[#allocation13 + $0x330] sm:$0xff]
    %v2805 = vld [vmem:[#allocation13 + $0x338] sm:$0xff]
    %v2806 = vld [vmem:[#allocation13 + $0x340] sm:$0xff]
    %v2807 = vld [vmem:[#allocation13 + $0x348] sm:$0xff]
    %v2808 = vld [vmem:[#allocation13 + $0x350] sm:$0xff]
    %v2809 = vld [vmem:[#allocation13 + $0x358] sm:$0xff]
    %v2810 = vld [vmem:[#allocation13 + $0x360] sm:$0xff]
    %v2811 = vld [vmem:[#allocation13 + $0x368] sm:$0xff]
    %v2812 = vld [vmem:[#allocation13 + $0x370] sm:$0xff]
    %v2813 = vld [vmem:[#allocation13 + $0x378] sm:$0xff]
    %v2814 = vld [vmem:[#allocation13 + $0x380] sm:$0xff]
    %v2815 = vld [vmem:[#allocation13 + $0x388] sm:$0xff]
    %v2816 = vld [vmem:[#allocation13 + $0x390] sm:$0xff]
    %v2817 = vld [vmem:[#allocation13 + $0x398] sm:$0xff]
    %v2818 = vld [vmem:[#allocation13 + $0x3a0] sm:$0xff]
    %v2819 = vld [vmem:[#allocation13 + $0x3a8] sm:$0xff]
    %v2820 = vld [vmem:[#allocation13 + $0x3b0] sm:$0xff]
    %v2821 = vld [vmem:[#allocation13 + $0x3b8] sm:$0xff]
    %v2822 = vld [vmem:[#allocation13 + $0x3c0] sm:$0xff]
    %v2823 = vld [vmem:[#allocation13 + $0x3c8] sm:$0xff]
    %v2824 = vld [vmem:[#allocation13 + $0x3d0] sm:$0xff]
    %v2825 = vld [vmem:[#allocation13 + $0x3d8] sm:$0xff]
    %v2826 = vld [vmem:[#allocation13 + $0x3e0] sm:$0xff]
    %v2827 = vld [vmem:[#allocation13 + $0x3e8] sm:$0xff]
    %v2828 = vld [vmem:[#allocation13 + $0x3f0] sm:$0xff]
    %v2829 = vld [vmem:[#allocation13 + $0x3f8] sm:$0xff]
    %v2830 = vld [vmem:[#allocation14] sm:$0xf]
    %v2832 = vperm.slane %v2830, 0
    %v2833 = vperm.slane %v2830, 1
    %v2834 = vperm.slane %v2830, 2
    %v2835 = vperm.slane %v2830, 3
    %v2968 = vunpack.c.l.b16 %v2702
    %v2969 = vunpack.c.h.b16 %v2702
    %v2970 = vunpack.c.l.b16 %v2703
    %v2971 = vunpack.c.h.b16 %v2703
    %v2972 = vunpack.c.l.b16 %v2704
    %v2973 = vunpack.c.h.b16 %v2704
    %v2974 = vunpack.c.l.b16 %v2705
    %v2975 = vunpack.c.h.b16 %v2705
    %v2976 = vunpack.c.l.b16 %v2706
    %v2977 = vunpack.c.h.b16 %v2706
    %v2978 = vunpack.c.l.b16 %v2707
    %v2979 = vunpack.c.h.b16 %v2707
    %v2980 = vunpack.c.l.b16 %v2708
    %v2981 = vunpack.c.h.b16 %v2708
    %v2982 = vunpack.c.l.b16 %v2709
    %v2983 = vunpack.c.h.b16 %v2709
    %v2984 = vunpack.c.l.b16 %v2710
    %v2985 = vunpack.c.h.b16 %v2710
    %v2986 = vunpack.c.l.b16 %v2711
    %v2987 = vunpack.c.h.b16 %v2711
    %v2988 = vunpack.c.l.b16 %v2712
    %v2989 = vunpack.c.h.b16 %v2712
    %v2990 = vunpack.c.l.b16 %v2713
    %v2991 = vunpack.c.h.b16 %v2713
    %v2992 = vunpack.c.l.b16 %v2714
    %v2993 = vunpack.c.h.b16 %v2714
    %v2994 = vunpack.c.l.b16 %v2715
    %v2995 = vunpack.c.h.b16 %v2715
    %v2996 = vunpack.c.l.b16 %v2716
    %v2997 = vunpack.c.h.b16 %v2716
    %v2998 = vunpack.c.l.b16 %v2717
    %v2999 = vunpack.c.h.b16 %v2717
    %v3000 = vunpack.c.l.b16 %v2718
    %v3001 = vunpack.c.h.b16 %v2718
    %v3002 = vunpack.c.l.b16 %v2719
    %v3003 = vunpack.c.h.b16 %v2719
    %v3004 = vunpack.c.l.b16 %v2720
    %v3005 = vunpack.c.h.b16 %v2720
    %v3006 = vunpack.c.l.b16 %v2721
    %v3007 = vunpack.c.h.b16 %v2721
    %v3008 = vunpack.c.l.b16 %v2722
    %v3009 = vunpack.c.h.b16 %v2722
    %v3010 = vunpack.c.l.b16 %v2723
    %v3011 = vunpack.c.h.b16 %v2723
    %v3012 = vunpack.c.l.b16 %v2724
    %v3013 = vunpack.c.h.b16 %v2724
    %v3014 = vunpack.c.l.b16 %v2725
    %v3015 = vunpack.c.h.b16 %v2725
    %v3016 = vunpack.c.l.b16 %v2726
    %v3017 = vunpack.c.h.b16 %v2726
    %v3018 = vunpack.c.l.b16 %v2727
    %v3019 = vunpack.c.h.b16 %v2727
    %v3020 = vunpack.c.l.b16 %v2728
    %v3021 = vunpack.c.h.b16 %v2728
    %v3022 = vunpack.c.l.b16 %v2729
    %v3023 = vunpack.c.h.b16 %v2729
    %v3024 = vunpack.c.l.b16 %v2730
    %v3025 = vunpack.c.h.b16 %v2730
    %v3026 = vunpack.c.l.b16 %v2731
    %v3027 = vunpack.c.h.b16 %v2731
    %v3028 = vunpack.c.l.b16 %v2732
    %v3029 = vunpack.c.h.b16 %v2732
    %v3030 = vunpack.c.l.b16 %v2733
    %v3031 = vunpack.c.h.b16 %v2733
    %v3032 = vunpack.c.l.b16 %v2734
    %v3033 = vunpack.c.h.b16 %v2734
    %v3034 = vunpack.c.l.b16 %v2735
    %v3035 = vunpack.c.h.b16 %v2735
    %v3036 = vunpack.c.l.b16 %v2736
    %v3037 = vunpack.c.h.b16 %v2736
    %v3038 = vunpack.c.l.b16 %v2737
    %v3039 = vunpack.c.h.b16 %v2737
    %v3040 = vunpack.c.l.b16 %v2738
    %v3041 = vunpack.c.h.b16 %v2738
    %v3042 = vunpack.c.l.b16 %v2739
    %v3043 = vunpack.c.h.b16 %v2739
    %v3044 = vunpack.c.l.b16 %v2740
    %v3045 = vunpack.c.h.b16 %v2740
    %v3046 = vunpack.c.l.b16 %v2741
    %v3047 = vunpack.c.h.b16 %v2741
    %v3048 = vunpack.c.l.b16 %v2742
    %v3049 = vunpack.c.h.b16 %v2742
    %v3050 = vunpack.c.l.b16 %v2743
    %v3051 = vunpack.c.h.b16 %v2743
    %v3052 = vunpack.c.l.b16 %v2744
    %v3053 = vunpack.c.h.b16 %v2744
    %v3054 = vunpack.c.l.b16 %v2745
    %v3055 = vunpack.c.h.b16 %v2745
    %v3056 = vunpack.c.l.b16 %v2746
    %v3057 = vunpack.c.h.b16 %v2746
    %v3058 = vunpack.c.l.b16 %v2747
    %v3059 = vunpack.c.h.b16 %v2747
    %v3060 = vunpack.c.l.b16 %v2748
    %v3061 = vunpack.c.h.b16 %v2748
    %v3062 = vunpack.c.l.b16 %v2749
    %v3063 = vunpack.c.h.b16 %v2749
    %v3064 = vunpack.c.l.b16 %v2750
    %v3065 = vunpack.c.h.b16 %v2750
    %v3066 = vunpack.c.l.b16 %v2751
    %v3067 = vunpack.c.h.b16 %v2751
    %v3068 = vunpack.c.l.b16 %v2752
    %v3069 = vunpack.c.h.b16 %v2752
    %v3070 = vunpack.c.l.b16 %v2753
    %v3071 = vunpack.c.h.b16 %v2753
    %v3072 = vunpack.c.l.b16 %v2754
    %v3073 = vunpack.c.h.b16 %v2754
    %v3074 = vunpack.c.l.b16 %v2755
    %v3075 = vunpack.c.h.b16 %v2755
    %v3076 = vunpack.c.l.b16 %v2756
    %v3077 = vunpack.c.h.b16 %v2756
    %v3078 = vunpack.c.l.b16 %v2757
    %v3079 = vunpack.c.h.b16 %v2757
    %v3080 = vunpack.c.l.b16 %v2758
    %v3081 = vunpack.c.h.b16 %v2758
    %v3082 = vunpack.c.l.b16 %v2759
    %v3083 = vunpack.c.h.b16 %v2759
    %v3084 = vunpack.c.l.b16 %v2760
    %v3085 = vunpack.c.h.b16 %v2760
    %v3086 = vunpack.c.l.b16 %v2761
    %v3087 = vunpack.c.h.b16 %v2761
    %v3088 = vunpack.c.l.b16 %v2762
    %v3089 = vunpack.c.h.b16 %v2762
    %v3090 = vunpack.c.l.b16 %v2763
    %v3091 = vunpack.c.h.b16 %v2763
    %v3092 = vunpack.c.l.b16 %v2764
    %v3093 = vunpack.c.h.b16 %v2764
    %v3094 = vunpack.c.l.b16 %v2765
    %v3095 = vunpack.c.h.b16 %v2765
    %v3096 = vunpack.c.l.b16 %v2766
    %v3097 = vunpack.c.h.b16 %v2766
    %v3098 = vunpack.c.l.b16 %v2767
    %v3099 = vunpack.c.h.b16 %v2767
    %v3100 = vunpack.c.l.b16 %v2768
    %v3101 = vunpack.c.h.b16 %v2768
    %v3102 = vunpack.c.l.b16 %v2769
    %v3103 = vunpack.c.h.b16 %v2769
    %v3104 = vunpack.c.l.b16 %v2770
    %v3105 = vunpack.c.h.b16 %v2770
    %v3106 = vunpack.c.l.b16 %v2771
    %v3107 = vunpack.c.h.b16 %v2771
    %v3108 = vunpack.c.l.b16 %v2772
    %v3109 = vunpack.c.h.b16 %v2772
    %v3110 = vunpack.c.l.b16 %v2773
    %v3111 = vunpack.c.h.b16 %v2773
    %v3112 = vunpack.c.l.b16 %v2774
    %v3113 = vunpack.c.h.b16 %v2774
    %v3114 = vunpack.c.l.b16 %v2775
    %v3115 = vunpack.c.h.b16 %v2775
    %v3116 = vunpack.c.l.b16 %v2776
    %v3117 = vunpack.c.h.b16 %v2776
    %v3118 = vunpack.c.l.b16 %v2777
    %v3119 = vunpack.c.h.b16 %v2777
    %v3120 = vunpack.c.l.b16 %v2778
    %v3121 = vunpack.c.h.b16 %v2778
    %v3122 = vunpack.c.l.b16 %v2779
    %v3123 = vunpack.c.h.b16 %v2779
    %v3124 = vunpack.c.l.b16 %v2780
    %v3125 = vunpack.c.h.b16 %v2780
    %v3126 = vunpack.c.l.b16 %v2781
    %v3127 = vunpack.c.h.b16 %v2781
    %v3128 = vunpack.c.l.b16 %v2782
    %v3129 = vunpack.c.h.b16 %v2782
    %v3130 = vunpack.c.l.b16 %v2783
    %v3131 = vunpack.c.h.b16 %v2783
    %v3132 = vunpack.c.l.b16 %v2784
    %v3133 = vunpack.c.h.b16 %v2784
    %v3134 = vunpack.c.l.b16 %v2785
    %v3135 = vunpack.c.h.b16 %v2785
    %v3136 = vunpack.c.l.b16 %v2786
    %v3137 = vunpack.c.h.b16 %v2786
    %v3138 = vunpack.c.l.b16 %v2787
    %v3139 = vunpack.c.h.b16 %v2787
    %v3140 = vunpack.c.l.b16 %v2788
    %v3141 = vunpack.c.h.b16 %v2788
    %v3142 = vunpack.c.l.b16 %v2789
    %v3143 = vunpack.c.h.b16 %v2789
    %v3144 = vunpack.c.l.b16 %v2790
    %v3145 = vunpack.c.h.b16 %v2790
    %v3146 = vunpack.c.l.b16 %v2791
    %v3147 = vunpack.c.h.b16 %v2791
    %v3148 = vunpack.c.l.b16 %v2792
    %v3149 = vunpack.c.h.b16 %v2792
    %v3150 = vunpack.c.l.b16 %v2793
    %v3151 = vunpack.c.h.b16 %v2793
    %v3152 = vunpack.c.l.b16 %v2794
    %v3153 = vunpack.c.h.b16 %v2794
    %v3154 = vunpack.c.l.b16 %v2795
    %v3155 = vunpack.c.h.b16 %v2795
    %v3156 = vunpack.c.l.b16 %v2796
    %v3157 = vunpack.c.h.b16 %v2796
    %v3158 = vunpack.c.l.b16 %v2797
    %v3159 = vunpack.c.h.b16 %v2797
    %v3160 = vunpack.c.l.b16 %v2798
    %v3161 = vunpack.c.h.b16 %v2798
    %v3162 = vunpack.c.l.b16 %v2799
    %v3163 = vunpack.c.h.b16 %v2799
    %v3164 = vunpack.c.l.b16 %v2800
    %v3165 = vunpack.c.h.b16 %v2800
    %v3166 = vunpack.c.l.b16 %v2801
    %v3167 = vunpack.c.h.b16 %v2801
    %v3168 = vunpack.c.l.b16 %v2802
    %v3169 = vunpack.c.h.b16 %v2802
    %v3170 = vunpack.c.l.b16 %v2803
    %v3171 = vunpack.c.h.b16 %v2803
    %v3172 = vunpack.c.l.b16 %v2804
    %v3173 = vunpack.c.h.b16 %v2804
    %v3174 = vunpack.c.l.b16 %v2805
    %v3175 = vunpack.c.h.b16 %v2805
    %v3176 = vunpack.c.l.b16 %v2806
    %v3177 = vunpack.c.h.b16 %v2806
    %v3178 = vunpack.c.l.b16 %v2807
    %v3179 = vunpack.c.h.b16 %v2807
    %v3180 = vunpack.c.l.b16 %v2808
    %v3181 = vunpack.c.h.b16 %v2808
    %v3182 = vunpack.c.l.b16 %v2809
    %v3183 = vunpack.c.h.b16 %v2809
    %v3184 = vunpack.c.l.b16 %v2810
    %v3185 = vunpack.c.h.b16 %v2810
    %v3186 = vunpack.c.l.b16 %v2811
    %v3187 = vunpack.c.h.b16 %v2811
    %v3188 = vunpack.c.l.b16 %v2812
    %v3189 = vunpack.c.h.b16 %v2812
    %v3190 = vunpack.c.l.b16 %v2813
    %v3191 = vunpack.c.h.b16 %v2813
    %v3192 = vunpack.c.l.b16 %v2814
    %v3193 = vunpack.c.h.b16 %v2814
    %v3194 = vunpack.c.l.b16 %v2815
    %v3195 = vunpack.c.h.b16 %v2815
    %v3196 = vunpack.c.l.b16 %v2816
    %v3197 = vunpack.c.h.b16 %v2816
    %v3198 = vunpack.c.l.b16 %v2817
    %v3199 = vunpack.c.h.b16 %v2817
    %v3200 = vunpack.c.l.b16 %v2818
    %v3201 = vunpack.c.h.b16 %v2818
    %v3202 = vunpack.c.l.b16 %v2819
    %v3203 = vunpack.c.h.b16 %v2819
    %v3204 = vunpack.c.l.b16 %v2820
    %v3205 = vunpack.c.h.b16 %v2820
    %v3206 = vunpack.c.l.b16 %v2821
    %v3207 = vunpack.c.h.b16 %v2821
    %v3208 = vunpack.c.l.b16 %v2822
    %v3209 = vunpack.c.h.b16 %v2822
    %v3210 = vunpack.c.l.b16 %v2823
    %v3211 = vunpack.c.h.b16 %v2823
    %v3212 = vunpack.c.l.b16 %v2824
    %v3213 = vunpack.c.h.b16 %v2824
    %v3214 = vunpack.c.l.b16 %v2825
    %v3215 = vunpack.c.h.b16 %v2825
    %v3216 = vunpack.c.l.b16 %v2826
    %v3217 = vunpack.c.h.b16 %v2826
    %v3218 = vunpack.c.l.b16 %v2827
    %v3219 = vunpack.c.h.b16 %v2827
    %v3220 = vunpack.c.l.b16 %v2828
    %v3221 = vunpack.c.h.b16 %v2828
    %v3222 = vunpack.c.l.b16 %v2829
    %v3223 = vunpack.c.h.b16 %v2829
    %v3224 = vpack.c.b16 %v2972, %v2968
    %v3225 = vpack.c.b16 %v2973, %v2969
    %v3226 = vpack.c.b16 %v2974, %v2970
    %v3227 = vpack.c.b16 %v2975, %v2971
    %v3228 = vpack.c.b16 %v2980, %v2976
    %v3229 = vpack.c.b16 %v2981, %v2977
    %v3230 = vpack.c.b16 %v2982, %v2978
    %v3231 = vpack.c.b16 %v2983, %v2979
    %v3232 = vpack.c.b16 %v2988, %v2984
    %v3233 = vpack.c.b16 %v2989, %v2985
    %v3234 = vpack.c.b16 %v2990, %v2986
    %v3235 = vpack.c.b16 %v2991, %v2987
    %v3236 = vpack.c.b16 %v2996, %v2992
    %v3237 = vpack.c.b16 %v2997, %v2993
    %v3238 = vpack.c.b16 %v2998, %v2994
    %v3239 = vpack.c.b16 %v2999, %v2995
    %v3240 = vpack.c.b16 %v3004, %v3000
    %v3241 = vpack.c.b16 %v3005, %v3001
    %v3242 = vpack.c.b16 %v3006, %v3002
    %v3243 = vpack.c.b16 %v3007, %v3003
    %v3244 = vpack.c.b16 %v3012, %v3008
    %v3245 = vpack.c.b16 %v3013, %v3009
    %v3246 = vpack.c.b16 %v3014, %v3010
    %v3247 = vpack.c.b16 %v3015, %v3011
    %v3248 = vpack.c.b16 %v3020, %v3016
    %v3249 = vpack.c.b16 %v3021, %v3017
    %v3250 = vpack.c.b16 %v3022, %v3018
    %v3251 = vpack.c.b16 %v3023, %v3019
    %v3252 = vpack.c.b16 %v3028, %v3024
    %v3253 = vpack.c.b16 %v3029, %v3025
    %v3254 = vpack.c.b16 %v3030, %v3026
    %v3255 = vpack.c.b16 %v3031, %v3027
    %v3256 = vpack.c.b16 %v3036, %v3032
    %v3257 = vpack.c.b16 %v3037, %v3033
    %v3258 = vpack.c.b16 %v3038, %v3034
    %v3259 = vpack.c.b16 %v3039, %v3035
    %v3260 = vpack.c.b16 %v3044, %v3040
    %v3261 = vpack.c.b16 %v3045, %v3041
    %v3262 = vpack.c.b16 %v3046, %v3042
    %v3263 = vpack.c.b16 %v3047, %v3043
    %v3264 = vpack.c.b16 %v3052, %v3048
    %v3265 = vpack.c.b16 %v3053, %v3049
    %v3266 = vpack.c.b16 %v3054, %v3050
    %v3267 = vpack.c.b16 %v3055, %v3051
    %v3268 = vpack.c.b16 %v3060, %v3056
    %v3269 = vpack.c.b16 %v3061, %v3057
    %v3270 = vpack.c.b16 %v3062, %v3058
    %v3271 = vpack.c.b16 %v3063, %v3059
    %v3272 = vpack.c.b16 %v3068, %v3064
    %v3273 = vpack.c.b16 %v3069, %v3065
    %v3274 = vpack.c.b16 %v3070, %v3066
    %v3275 = vpack.c.b16 %v3071, %v3067
    %v3276 = vpack.c.b16 %v3076, %v3072
    %v3277 = vpack.c.b16 %v3077, %v3073
    %v3278 = vpack.c.b16 %v3078, %v3074
    %v3279 = vpack.c.b16 %v3079, %v3075
    %v3280 = vpack.c.b16 %v3084, %v3080
    %v3281 = vpack.c.b16 %v3085, %v3081
    %v3282 = vpack.c.b16 %v3086, %v3082
    %v3283 = vpack.c.b16 %v3087, %v3083
    %v3284 = vpack.c.b16 %v3092, %v3088
    %v3285 = vpack.c.b16 %v3093, %v3089
    %v3286 = vpack.c.b16 %v3094, %v3090
    %v3287 = vpack.c.b16 %v3095, %v3091
    %v3288 = vpack.c.b16 %v3100, %v3096
    %v3289 = vpack.c.b16 %v3101, %v3097
    %v3290 = vpack.c.b16 %v3102, %v3098
    %v3291 = vpack.c.b16 %v3103, %v3099
    %v3292 = vpack.c.b16 %v3108, %v3104
    %v3293 = vpack.c.b16 %v3109, %v3105
    %v3294 = vpack.c.b16 %v3110, %v3106
    %v3295 = vpack.c.b16 %v3111, %v3107
    %v3296 = vpack.c.b16 %v3116, %v3112
    %v3297 = vpack.c.b16 %v3117, %v3113
    %v3298 = vpack.c.b16 %v3118, %v3114
    %v3299 = vpack.c.b16 %v3119, %v3115
    %v3300 = vpack.c.b16 %v3124, %v3120
    %v3301 = vpack.c.b16 %v3125, %v3121
    %v3302 = vpack.c.b16 %v3126, %v3122
    %v3303 = vpack.c.b16 %v3127, %v3123
    %v3304 = vpack.c.b16 %v3132, %v3128
    %v3305 = vpack.c.b16 %v3133, %v3129
    %v3306 = vpack.c.b16 %v3134, %v3130
    %v3307 = vpack.c.b16 %v3135, %v3131
    %v3308 = vpack.c.b16 %v3140, %v3136
    %v3309 = vpack.c.b16 %v3141, %v3137
    %v3310 = vpack.c.b16 %v3142, %v3138
    %v3311 = vpack.c.b16 %v3143, %v3139
    %v3312 = vpack.c.b16 %v3148, %v3144
    %v3313 = vpack.c.b16 %v3149, %v3145
    %v3314 = vpack.c.b16 %v3150, %v3146
    %v3315 = vpack.c.b16 %v3151, %v3147
    %v3316 = vpack.c.b16 %v3156, %v3152
    %v3317 = vpack.c.b16 %v3157, %v3153
    %v3318 = vpack.c.b16 %v3158, %v3154
    %v3319 = vpack.c.b16 %v3159, %v3155
    %v3320 = vpack.c.b16 %v3164, %v3160
    %v3321 = vpack.c.b16 %v3165, %v3161
    %v3322 = vpack.c.b16 %v3166, %v3162
    %v3323 = vpack.c.b16 %v3167, %v3163
    %v3324 = vpack.c.b16 %v3172, %v3168
    %v3325 = vpack.c.b16 %v3173, %v3169
    %v3326 = vpack.c.b16 %v3174, %v3170
    %v3327 = vpack.c.b16 %v3175, %v3171
    %v3328 = vpack.c.b16 %v3180, %v3176
    %v3329 = vpack.c.b16 %v3181, %v3177
    %v3330 = vpack.c.b16 %v3182, %v3178
    %v3331 = vpack.c.b16 %v3183, %v3179
    %v3332 = vpack.c.b16 %v3188, %v3184
    %v3333 = vpack.c.b16 %v3189, %v3185
    %v3334 = vpack.c.b16 %v3190, %v3186
    %v3335 = vpack.c.b16 %v3191, %v3187
    %v3336 = vpack.c.b16 %v3196, %v3192
    %v3337 = vpack.c.b16 %v3197, %v3193
    %v3338 = vpack.c.b16 %v3198, %v3194
    %v3339 = vpack.c.b16 %v3199, %v3195
    %v3340 = vpack.c.b16 %v3204, %v3200
    %v3341 = vpack.c.b16 %v3205, %v3201
    %v3342 = vpack.c.b16 %v3206, %v3202
    %v3343 = vpack.c.b16 %v3207, %v3203
    %v3344 = vpack.c.b16 %v3212, %v3208
    %v3345 = vpack.c.b16 %v3213, %v3209
    %v3346 = vpack.c.b16 %v3214, %v3210
    %v3347 = vpack.c.b16 %v3215, %v3211
    %v3348 = vpack.c.b16 %v3220, %v3216
    %v3349 = vpack.c.b16 %v3221, %v3217
    %v3350 = vpack.c.b16 %v3222, %v3218
    %v3351 = vpack.c.b16 %v3223, %v3219
    %3480 = vmatpush.bf16.msra.mxu0 %v3252
    %3481 = vmatpush.bf16.msra.mxu0 %v3248
    %3482 = vmatpush.bf16.msra.mxu0 %v3244
    %3483 = vmatpush.bf16.msra.mxu0 %v3240
    %3484 = vmatpush.bf16.msra.mxu0 %v3236
    %3485 = vmatpush.bf16.msra.mxu0 %v3232
    %3486 = vmatpush.bf16.msra.mxu0 %v3228
    %3487 = vmatpush.bf16.msra.mxu0 %v3224
    %3488 = vmatmul.bf16.gmra.mxu0 %v2698
    %v3489 = vpop.f32.mrf.mxu0
    %v3490 = vadd.f32 %v2832, %v3489
    %v3491 = vpop.f32.mrf.mxu0
    %3492 = vdwg.mxu0
    %3493 = vmatpush.bf16.msra.mxu0 %v3284
    %3494 = vmatpush.bf16.msra.mxu0 %v3280
    %3495 = vmatpush.bf16.msra.mxu0 %v3276
    %3496 = vmatpush.bf16.msra.mxu0 %v3272
    %3497 = vmatpush.bf16.msra.mxu0 %v3268
    %3498 = vmatpush.bf16.msra.mxu0 %v3264
    %3499 = vmatpush.bf16.msra.mxu0 %v3260
    %3500 = vmatpush.bf16.msra.mxu0 %v3256
    %3501 = vmatmul.bf16.gmra.mxu0 %v2699
    %v3502 = vpop.f32.mrf.mxu0
    %v3503 = vadd.f32 %v3490, %v3502
    %v3504 = vpop.f32.mrf.mxu0
    %3505 = vdwg.mxu0
    %3506 = vmatpush.bf16.msra.mxu0 %v3316
    %3507 = vmatpush.bf16.msra.mxu0 %v3312
    %3508 = vmatpush.bf16.msra.mxu0 %v3308
    %3509 = vmatpush.bf16.msra.mxu0 %v3304
    %3510 = vmatpush.bf16.msra.mxu0 %v3300
    %3511 = vmatpush.bf16.msra.mxu0 %v3296
    %3512 = vmatpush.bf16.msra.mxu0 %v3292
    %3513 = vmatpush.bf16.msra.mxu0 %v3288
    %3514 = vmatmul.bf16.gmra.mxu0 %v2700
    %v3515 = vpop.f32.mrf.mxu0
    %v3516 = vadd.f32 %v3503, %v3515
    %v3517 = vpop.f32.mrf.mxu0
    %3518 = vdwg.mxu0
    %3519 = vmatpush.bf16.msra.mxu0 %v3348
    %3520 = vmatpush.bf16.msra.mxu0 %v3344
    %3521 = vmatpush.bf16.msra.mxu0 %v3340
    %3522 = vmatpush.bf16.msra.mxu0 %v3336
    %3523 = vmatpush.bf16.msra.mxu0 %v3332
    %3524 = vmatpush.bf16.msra.mxu0 %v3328
    %3525 = vmatpush.bf16.msra.mxu0 %v3324
    %3526 = vmatpush.bf16.msra.mxu0 %v3320
    %3527 = vmatmul.bf16.gmra.mxu0 %v2701
    %v3528 = vpop.f32.mrf.mxu0
    %v3529 = vadd.f32 %v3516, %v3528
    %v3530 = vpop.f32.mrf.mxu0
    %3531 = vdwg.mxu0
    %3532 = vmatpush.bf16.msra.mxu0 %v3253
    %3533 = vmatpush.bf16.msra.mxu0 %v3249
    %3534 = vmatpush.bf16.msra.mxu0 %v3245
    %3535 = vmatpush.bf16.msra.mxu0 %v3241
    %3536 = vmatpush.bf16.msra.mxu0 %v3237
    %3537 = vmatpush.bf16.msra.mxu0 %v3233
    %3538 = vmatpush.bf16.msra.mxu0 %v3229
    %3539 = vmatpush.bf16.msra.mxu0 %v3225
    %3540 = vmatmul.bf16.gmra.mxu0 %v2698
    %v3541 = vpop.f32.mrf.mxu0
    %v3542 = vadd.f32 %v2833, %v3541
    %v3543 = vpop.f32.mrf.mxu0
    %3544 = vdwg.mxu0
    %3545 = vmatpush.bf16.msra.mxu0 %v3285
    %3546 = vmatpush.bf16.msra.mxu0 %v3281
    %3547 = vmatpush.bf16.msra.mxu0 %v3277
    %3548 = vmatpush.bf16.msra.mxu0 %v3273
    %3549 = vmatpush.bf16.msra.mxu0 %v3269
    %3550 = vmatpush.bf16.msra.mxu0 %v3265
    %3551 = vmatpush.bf16.msra.mxu0 %v3261
    %3552 = vmatpush.bf16.msra.mxu0 %v3257
    %3553 = vmatmul.bf16.gmra.mxu0 %v2699
    %v3554 = vpop.f32.mrf.mxu0
    %v3555 = vadd.f32 %v3542, %v3554
    %v3556 = vpop.f32.mrf.mxu0
    %3557 = vdwg.mxu0
    %3558 = vmatpush.bf16.msra.mxu0 %v3317
    %3559 = vmatpush.bf16.msra.mxu0 %v3313
    %3560 = vmatpush.bf16.msra.mxu0 %v3309
    %3561 = vmatpush.bf16.msra.mxu0 %v3305
    %3562 = vmatpush.bf16.msra.mxu0 %v3301
    %3563 = vmatpush.bf16.msra.mxu0 %v3297
    %3564 = vmatpush.bf16.msra.mxu0 %v3293
    %3565 = vmatpush.bf16.msra.mxu0 %v3289
    %3566 = vmatmul.bf16.gmra.mxu0 %v2700
    %v3567 = vpop.f32.mrf.mxu0
    %v3568 = vadd.f32 %v3555, %v3567
    %v3569 = vpop.f32.mrf.mxu0
    %3570 = vdwg.mxu0
    %3571 = vmatpush.bf16.msra.mxu0 %v3349
    %3572 = vmatpush.bf16.msra.mxu0 %v3345
    %3573 = vmatpush.bf16.msra.mxu0 %v3341
    %3574 = vmatpush.bf16.msra.mxu0 %v3337
    %3575 = vmatpush.bf16.msra.mxu0 %v3333
    %3576 = vmatpush.bf16.msra.mxu0 %v3329
    %3577 = vmatpush.bf16.msra.mxu0 %v3325
    %3578 = vmatpush.bf16.msra.mxu0 %v3321
    %3579 = vmatmul.bf16.gmra.mxu0 %v2701
    %v3580 = vpop.f32.mrf.mxu0
    %v3581 = vadd.f32 %v3568, %v3580
    %v3582 = vpop.f32.mrf.mxu0
    %3583 = vdwg.mxu0
    %3584 = vmatpush.bf16.msra.mxu0 %v3254
    %3585 = vmatpush.bf16.msra.mxu0 %v3250
    %3586 = vmatpush.bf16.msra.mxu0 %v3246
    %3587 = vmatpush.bf16.msra.mxu0 %v3242
    %3588 = vmatpush.bf16.msra.mxu0 %v3238
    %3589 = vmatpush.bf16.msra.mxu0 %v3234
    %3590 = vmatpush.bf16.msra.mxu0 %v3230
    %3591 = vmatpush.bf16.msra.mxu0 %v3226
    %3592 = vmatmul.bf16.gmra.mxu0 %v2698
    %v3593 = vpop.f32.mrf.mxu0
    %v3594 = vadd.f32 %v2834, %v3593
    %v3595 = vpop.f32.mrf.mxu0
    %3596 = vdwg.mxu0
    %3597 = vmatpush.bf16.msra.mxu0 %v3286
    %3598 = vmatpush.bf16.msra.mxu0 %v3282
    %3599 = vmatpush.bf16.msra.mxu0 %v3278
    %3600 = vmatpush.bf16.msra.mxu0 %v3274
    %3601 = vmatpush.bf16.msra.mxu0 %v3270
    %3602 = vmatpush.bf16.msra.mxu0 %v3266
    %3603 = vmatpush.bf16.msra.mxu0 %v3262
    %3604 = vmatpush.bf16.msra.mxu0 %v3258
    %3605 = vmatmul.bf16.gmra.mxu0 %v2699
    %v3606 = vpop.f32.mrf.mxu0
    %v3607 = vadd.f32 %v3594, %v3606
    %v3608 = vpop.f32.mrf.mxu0
    %3609 = vdwg.mxu0
    %3610 = vmatpush.bf16.msra.mxu0 %v3318
    %3611 = vmatpush.bf16.msra.mxu0 %v3314
    %3612 = vmatpush.bf16.msra.mxu0 %v3310
    %3613 = vmatpush.bf16.msra.mxu0 %v3306
    %3614 = vmatpush.bf16.msra.mxu0 %v3302
    %3615 = vmatpush.bf16.msra.mxu0 %v3298
    %3616 = vmatpush.bf16.msra.mxu0 %v3294
    %3617 = vmatpush.bf16.msra.mxu0 %v3290
    %3618 = vmatmul.bf16.gmra.mxu0 %v2700
    %v3619 = vpop.f32.mrf.mxu0
    %v3620 = vadd.f32 %v3607, %v3619
    %v3621 = vpop.f32.mrf.mxu0
    %3622 = vdwg.mxu0
    %3623 = vmatpush.bf16.msra.mxu0 %v3350
    %3624 = vmatpush.bf16.msra.mxu0 %v3346
    %3625 = vmatpush.bf16.msra.mxu0 %v3342
    %3626 = vmatpush.bf16.msra.mxu0 %v3338
    %3627 = vmatpush.bf16.msra.mxu0 %v3334
    %3628 = vmatpush.bf16.msra.mxu0 %v3330
    %3629 = vmatpush.bf16.msra.mxu0 %v3326
    %3630 = vmatpush.bf16.msra.mxu0 %v3322
    %3631 = vmatmul.bf16.gmra.mxu0 %v2701
    %v3632 = vpop.f32.mrf.mxu0
    %v3633 = vadd.f32 %v3620, %v3632
    %v3634 = vpop.f32.mrf.mxu0
    %3635 = vdwg.mxu0
    %3636 = vmatpush.bf16.msra.mxu0 %v3255
    %3637 = vmatpush.bf16.msra.mxu0 %v3251
    %3638 = vmatpush.bf16.msra.mxu0 %v3247
    %3639 = vmatpush.bf16.msra.mxu0 %v3243
    %3640 = vmatpush.bf16.msra.mxu0 %v3239
    %3641 = vmatpush.bf16.msra.mxu0 %v3235
    %3642 = vmatpush.bf16.msra.mxu0 %v3231
    %3643 = vmatpush.bf16.msra.mxu0 %v3227
    %3644 = vmatmul.bf16.gmra.mxu0 %v2698
    %v3645 = vpop.f32.mrf.mxu0
    %v3646 = vadd.f32 %v2835, %v3645
    %v3647 = vpop.f32.mrf.mxu0
    %3648 = vdwg.mxu0
    %3649 = vmatpush.bf16.msra.mxu0 %v3287
    %3650 = vmatpush.bf16.msra.mxu0 %v3283
    %3651 = vmatpush.bf16.msra.mxu0 %v3279
    %3652 = vmatpush.bf16.msra.mxu0 %v3275
    %3653 = vmatpush.bf16.msra.mxu0 %v3271
    %3654 = vmatpush.bf16.msra.mxu0 %v3267
    %3655 = vmatpush.bf16.msra.mxu0 %v3263
    %3656 = vmatpush.bf16.msra.mxu0 %v3259
    %3657 = vmatmul.bf16.gmra.mxu0 %v2699
    %v3658 = vpop.f32.mrf.mxu0
    %v3659 = vadd.f32 %v3646, %v3658
    %v3660 = vpop.f32.mrf.mxu0
    %3661 = vdwg.mxu0
    %3662 = vmatpush.bf16.msra.mxu0 %v3319
    %3663 = vmatpush.bf16.msra.mxu0 %v3315
    %3664 = vmatpush.bf16.msra.mxu0 %v3311
    %3665 = vmatpush.bf16.msra.mxu0 %v3307
    %3666 = vmatpush.bf16.msra.mxu0 %v3303
    %3667 = vmatpush.bf16.msra.mxu0 %v3299
    %3668 = vmatpush.bf16.msra.mxu0 %v3295
    %3669 = vmatpush.bf16.msra.mxu0 %v3291
    %3670 = vmatmul.bf16.gmra.mxu0 %v2700
    %v3671 = vpop.f32.mrf.mxu0
    %v3672 = vadd.f32 %v3659, %v3671
    %v3673 = vpop.f32.mrf.mxu0
    %3674 = vdwg.mxu0
    %3675 = vmatpush.bf16.msra.mxu0 %v3351
    %3676 = vmatpush.bf16.msra.mxu0 %v3347
    %3677 = vmatpush.bf16.msra.mxu0 %v3343
    %3678 = vmatpush.bf16.msra.mxu0 %v3339
    %3679 = vmatpush.bf16.msra.mxu0 %v3335
    %3680 = vmatpush.bf16.msra.mxu0 %v3331
    %3681 = vmatpush.bf16.msra.mxu0 %v3327
    %3682 = vmatpush.bf16.msra.mxu0 %v3323
    %3683 = vmatmul.bf16.gmra.mxu0 %v2701
    %v3684 = vpop.f32.mrf.mxu0
    %v3685 = vadd.f32 %v3672, %v3684
    %v3686 = vpop.f32.mrf.mxu0
    %3687 = vdwg.mxu0
    %v3688 = vmax.f32 %v3529, 0.0
    %v3689 = vmax.f32 %v3581, 0.0
    %v3690 = vmax.f32 %v3633, 0.0
    %v3691 = vmax.f32 %v3685, 0.0
    %v3692 = vpack.c.bf16 %v3688, %v3688
    %v3693 = vpack.c.bf16 %v3689, %v3689
    %v3694 = vpack.c.bf16 %v3690, %v3690
    %v3695 = vpack.c.bf16 %v3691, %v3691
    %v3696 = vld [vmem:[#allocation16] sm:$0xff]
    %v3697 = vld [vmem:[#allocation16 + $0x8] sm:$0xff]
    %v3698 = vld [vmem:[#allocation16 + $0x10] sm:$0xff]
    %v3699 = vld [vmem:[#allocation16 + $0x18] sm:$0xff]
    %v3700 = vld [vmem:[#allocation16 + $0x20] sm:$0xff]
    %v3701 = vld [vmem:[#allocation16 + $0x28] sm:$0xff]
    %v3702 = vld [vmem:[#allocation16 + $0x30] sm:$0xff]
    %v3703 = vld [vmem:[#allocation16 + $0x38] sm:$0xff]
    %v3704 = vld [vmem:[#allocation16 + $0x40] sm:$0xff]
    %v3705 = vld [vmem:[#allocation16 + $0x48] sm:$0xff]
    %v3706 = vld [vmem:[#allocation16 + $0x50] sm:$0xff]
    %v3707 = vld [vmem:[#allocation16 + $0x58] sm:$0xff]
    %v3708 = vld [vmem:[#allocation16 + $0x60] sm:$0xff]
    %v3709 = vld [vmem:[#allocation16 + $0x68] sm:$0xff]
    %v3710 = vld [vmem:[#allocation16 + $0x70] sm:$0xff]
    %v3711 = vld [vmem:[#allocation16 + $0x78] sm:$0xff]
    %v3712 = vld [vmem:[#allocation16 + $0x80] sm:$0xff]
    %v3713 = vld [vmem:[#allocation16 + $0x88] sm:$0xff]
    %v3714 = vld [vmem:[#allocation16 + $0x90] sm:$0xff]
    %v3715 = vld [vmem:[#allocation16 + $0x98] sm:$0xff]
    %v3716 = vld [vmem:[#allocation16 + $0xa0] sm:$0xff]
    %v3717 = vld [vmem:[#allocation16 + $0xa8] sm:$0xff]
    %v3718 = vld [vmem:[#allocation16 + $0xb0] sm:$0xff]
    %v3719 = vld [vmem:[#allocation16 + $0xb8] sm:$0xff]
    %v3720 = vld [vmem:[#allocation16 + $0xc0] sm:$0xff]
    %v3721 = vld [vmem:[#allocation16 + $0xc8] sm:$0xff]
    %v3722 = vld [vmem:[#allocation16 + $0xd0] sm:$0xff]
    %v3723 = vld [vmem:[#allocation16 + $0xd8] sm:$0xff]
    %v3724 = vld [vmem:[#allocation16 + $0xe0] sm:$0xff]
    %v3725 = vld [vmem:[#allocation16 + $0xe8] sm:$0xff]
    %v3726 = vld [vmem:[#allocation16 + $0xf0] sm:$0xff]
    %v3727 = vld [vmem:[#allocation16 + $0xf8] sm:$0xff]
    %v3728 = vld [vmem:[#allocation16 + $0x100] sm:$0xff]
    %v3729 = vld [vmem:[#allocation16 + $0x108] sm:$0xff]
    %v3730 = vld [vmem:[#allocation16 + $0x110] sm:$0xff]
    %v3731 = vld [vmem:[#allocation16 + $0x118] sm:$0xff]
    %v3732 = vld [vmem:[#allocation16 + $0x120] sm:$0xff]
    %v3733 = vld [vmem:[#allocation16 + $0x128] sm:$0xff]
    %v3734 = vld [vmem:[#allocation16 + $0x130] sm:$0xff]
    %v3735 = vld [vmem:[#allocation16 + $0x138] sm:$0xff]
    %v3736 = vld [vmem:[#allocation16 + $0x140] sm:$0xff]
    %v3737 = vld [vmem:[#allocation16 + $0x148] sm:$0xff]
    %v3738 = vld [vmem:[#allocation16 + $0x150] sm:$0xff]
    %v3739 = vld [vmem:[#allocation16 + $0x158] sm:$0xff]
    %v3740 = vld [vmem:[#allocation16 + $0x160] sm:$0xff]
    %v3741 = vld [vmem:[#allocation16 + $0x168] sm:$0xff]
    %v3742 = vld [vmem:[#allocation16 + $0x170] sm:$0xff]
    %v3743 = vld [vmem:[#allocation16 + $0x178] sm:$0xff]
    %v3744 = vld [vmem:[#allocation16 + $0x180] sm:$0xff]
    %v3745 = vld [vmem:[#allocation16 + $0x188] sm:$0xff]
    %v3746 = vld [vmem:[#allocation16 + $0x190] sm:$0xff]
    %v3747 = vld [vmem:[#allocation16 + $0x198] sm:$0xff]
    %v3748 = vld [vmem:[#allocation16 + $0x1a0] sm:$0xff]
    %v3749 = vld [vmem:[#allocation16 + $0x1a8] sm:$0xff]
    %v3750 = vld [vmem:[#allocation16 + $0x1b0] sm:$0xff]
    %v3751 = vld [vmem:[#allocation16 + $0x1b8] sm:$0xff]
    %v3752 = vld [vmem:[#allocation16 + $0x1c0] sm:$0xff]
    %v3753 = vld [vmem:[#allocation16 + $0x1c8] sm:$0xff]
    %v3754 = vld [vmem:[#allocation16 + $0x1d0] sm:$0xff]
    %v3755 = vld [vmem:[#allocation16 + $0x1d8] sm:$0xff]
    %v3756 = vld [vmem:[#allocation16 + $0x1e0] sm:$0xff]
    %v3757 = vld [vmem:[#allocation16 + $0x1e8] sm:$0xff]
    %v3758 = vld [vmem:[#allocation16 + $0x1f0] sm:$0xff]
    %v3759 = vld [vmem:[#allocation16 + $0x1f8] sm:$0xff]
    %v3760 = vld [vmem:[#allocation16 + $0x200] sm:$0xff]
    %v3761 = vld [vmem:[#allocation16 + $0x208] sm:$0xff]
    %v3762 = vld [vmem:[#allocation16 + $0x210] sm:$0xff]
    %v3763 = vld [vmem:[#allocation16 + $0x218] sm:$0xff]
    %v3764 = vld [vmem:[#allocation16 + $0x220] sm:$0xff]
    %v3765 = vld [vmem:[#allocation16 + $0x228] sm:$0xff]
    %v3766 = vld [vmem:[#allocation16 + $0x230] sm:$0xff]
    %v3767 = vld [vmem:[#allocation16 + $0x238] sm:$0xff]
    %v3768 = vld [vmem:[#allocation16 + $0x240] sm:$0xff]
    %v3769 = vld [vmem:[#allocation16 + $0x248] sm:$0xff]
    %v3770 = vld [vmem:[#allocation16 + $0x250] sm:$0xff]
    %v3771 = vld [vmem:[#allocation16 + $0x258] sm:$0xff]
    %v3772 = vld [vmem:[#allocation16 + $0x260] sm:$0xff]
    %v3773 = vld [vmem:[#allocation16 + $0x268] sm:$0xff]
    %v3774 = vld [vmem:[#allocation16 + $0x270] sm:$0xff]
    %v3775 = vld [vmem:[#allocation16 + $0x278] sm:$0xff]
    %v3776 = vld [vmem:[#allocation16 + $0x280] sm:$0xff]
    %v3777 = vld [vmem:[#allocation16 + $0x288] sm:$0xff]
    %v3778 = vld [vmem:[#allocation16 + $0x290] sm:$0xff]
    %v3779 = vld [vmem:[#allocation16 + $0x298] sm:$0xff]
    %v3780 = vld [vmem:[#allocation16 + $0x2a0] sm:$0xff]
    %v3781 = vld [vmem:[#allocation16 + $0x2a8] sm:$0xff]
    %v3782 = vld [vmem:[#allocation16 + $0x2b0] sm:$0xff]
    %v3783 = vld [vmem:[#allocation16 + $0x2b8] sm:$0xff]
    %v3784 = vld [vmem:[#allocation16 + $0x2c0] sm:$0xff]
    %v3785 = vld [vmem:[#allocation16 + $0x2c8] sm:$0xff]
    %v3786 = vld [vmem:[#allocation16 + $0x2d0] sm:$0xff]
    %v3787 = vld [vmem:[#allocation16 + $0x2d8] sm:$0xff]
    %v3788 = vld [vmem:[#allocation16 + $0x2e0] sm:$0xff]
    %v3789 = vld [vmem:[#allocation16 + $0x2e8] sm:$0xff]
    %v3790 = vld [vmem:[#allocation16 + $0x2f0] sm:$0xff]
    %v3791 = vld [vmem:[#allocation16 + $0x2f8] sm:$0xff]
    %v3792 = vld [vmem:[#allocation16 + $0x300] sm:$0xff]
    %v3793 = vld [vmem:[#allocation16 + $0x308] sm:$0xff]
    %v3794 = vld [vmem:[#allocation16 + $0x310] sm:$0xff]
    %v3795 = vld [vmem:[#allocation16 + $0x318] sm:$0xff]
    %v3796 = vld [vmem:[#allocation16 + $0x320] sm:$0xff]
    %v3797 = vld [vmem:[#allocation16 + $0x328] sm:$0xff]
    %v3798 = vld [vmem:[#allocation16 + $0x330] sm:$0xff]
    %v3799 = vld [vmem:[#allocation16 + $0x338] sm:$0xff]
    %v3800 = vld [vmem:[#allocation16 + $0x340] sm:$0xff]
    %v3801 = vld [vmem:[#allocation16 + $0x348] sm:$0xff]
    %v3802 = vld [vmem:[#allocation16 + $0x350] sm:$0xff]
    %v3803 = vld [vmem:[#allocation16 + $0x358] sm:$0xff]
    %v3804 = vld [vmem:[#allocation16 + $0x360] sm:$0xff]
    %v3805 = vld [vmem:[#allocation16 + $0x368] sm:$0xff]
    %v3806 = vld [vmem:[#allocation16 + $0x370] sm:$0xff]
    %v3807 = vld [vmem:[#allocation16 + $0x378] sm:$0xff]
    %v3808 = vld [vmem:[#allocation16 + $0x380] sm:$0xff]
    %v3809 = vld [vmem:[#allocation16 + $0x388] sm:$0xff]
    %v3810 = vld [vmem:[#allocation16 + $0x390] sm:$0xff]
    %v3811 = vld [vmem:[#allocation16 + $0x398] sm:$0xff]
    %v3812 = vld [vmem:[#allocation16 + $0x3a0] sm:$0xff]
    %v3813 = vld [vmem:[#allocation16 + $0x3a8] sm:$0xff]
    %v3814 = vld [vmem:[#allocation16 + $0x3b0] sm:$0xff]
    %v3815 = vld [vmem:[#allocation16 + $0x3b8] sm:$0xff]
    %v3816 = vld [vmem:[#allocation16 + $0x3c0] sm:$0xff]
    %v3817 = vld [vmem:[#allocation16 + $0x3c8] sm:$0xff]
    %v3818 = vld [vmem:[#allocation16 + $0x3d0] sm:$0xff]
    %v3819 = vld [vmem:[#allocation16 + $0x3d8] sm:$0xff]
    %v3820 = vld [vmem:[#allocation16 + $0x3e0] sm:$0xff]
    %v3821 = vld [vmem:[#allocation16 + $0x3e8] sm:$0xff]
    %v3822 = vld [vmem:[#allocation16 + $0x3f0] sm:$0xff]
    %v3823 = vld [vmem:[#allocation16 + $0x3f8] sm:$0xff]
    %v3824 = vld [vmem:[%s10] sm:$0xf]
    %v3826 = vperm.slane %v3824, 0
    %v3827 = vperm.slane %v3824, 1
    %v3828 = vperm.slane %v3824, 2
    %v3829 = vperm.slane %v3824, 3
    %v3962 = vunpack.c.l.b16 %v3696
    %v3963 = vunpack.c.h.b16 %v3696
    %v3964 = vunpack.c.l.b16 %v3697
    %v3965 = vunpack.c.h.b16 %v3697
    %v3966 = vunpack.c.l.b16 %v3698
    %v3967 = vunpack.c.h.b16 %v3698
    %v3968 = vunpack.c.l.b16 %v3699
    %v3969 = vunpack.c.h.b16 %v3699
    %v3970 = vunpack.c.l.b16 %v3700
    %v3971 = vunpack.c.h.b16 %v3700
    %v3972 = vunpack.c.l.b16 %v3701
    %v3973 = vunpack.c.h.b16 %v3701
    %v3974 = vunpack.c.l.b16 %v3702
    %v3975 = vunpack.c.h.b16 %v3702
    %v3976 = vunpack.c.l.b16 %v3703
    %v3977 = vunpack.c.h.b16 %v3703
    %v3978 = vunpack.c.l.b16 %v3704
    %v3979 = vunpack.c.h.b16 %v3704
    %v3980 = vunpack.c.l.b16 %v3705
    %v3981 = vunpack.c.h.b16 %v3705
    %v3982 = vunpack.c.l.b16 %v3706
    %v3983 = vunpack.c.h.b16 %v3706
    %v3984 = vunpack.c.l.b16 %v3707
    %v3985 = vunpack.c.h.b16 %v3707
    %v3986 = vunpack.c.l.b16 %v3708
    %v3987 = vunpack.c.h.b16 %v3708
    %v3988 = vunpack.c.l.b16 %v3709
    %v3989 = vunpack.c.h.b16 %v3709
    %v3990 = vunpack.c.l.b16 %v3710
    %v3991 = vunpack.c.h.b16 %v3710
    %v3992 = vunpack.c.l.b16 %v3711
    %v3993 = vunpack.c.h.b16 %v3711
    %v3994 = vunpack.c.l.b16 %v3712
    %v3995 = vunpack.c.h.b16 %v3712
    %v3996 = vunpack.c.l.b16 %v3713
    %v3997 = vunpack.c.h.b16 %v3713
    %v3998 = vunpack.c.l.b16 %v3714
    %v3999 = vunpack.c.h.b16 %v3714
    %v4000 = vunpack.c.l.b16 %v3715
    %v4001 = vunpack.c.h.b16 %v3715
    %v4002 = vunpack.c.l.b16 %v3716
    %v4003 = vunpack.c.h.b16 %v3716
    %v4004 = vunpack.c.l.b16 %v3717
    %v4005 = vunpack.c.h.b16 %v3717
    %v4006 = vunpack.c.l.b16 %v3718
    %v4007 = vunpack.c.h.b16 %v3718
    %v4008 = vunpack.c.l.b16 %v3719
    %v4009 = vunpack.c.h.b16 %v3719
    %v4010 = vunpack.c.l.b16 %v3720
    %v4011 = vunpack.c.h.b16 %v3720
    %v4012 = vunpack.c.l.b16 %v3721
    %v4013 = vunpack.c.h.b16 %v3721
    %v4014 = vunpack.c.l.b16 %v3722
    %v4015 = vunpack.c.h.b16 %v3722
    %v4016 = vunpack.c.l.b16 %v3723
    %v4017 = vunpack.c.h.b16 %v3723
    %v4018 = vunpack.c.l.b16 %v3724
    %v4019 = vunpack.c.h.b16 %v3724
    %v4020 = vunpack.c.l.b16 %v3725
    %v4021 = vunpack.c.h.b16 %v3725
    %v4022 = vunpack.c.l.b16 %v3726
    %v4023 = vunpack.c.h.b16 %v3726
    %v4024 = vunpack.c.l.b16 %v3727
    %v4025 = vunpack.c.h.b16 %v3727
    %v4026 = vunpack.c.l.b16 %v3728
    %v4027 = vunpack.c.h.b16 %v3728
    %v4028 = vunpack.c.l.b16 %v3729
    %v4029 = vunpack.c.h.b16 %v3729
    %v4030 = vunpack.c.l.b16 %v3730
    %v4031 = vunpack.c.h.b16 %v3730
    %v4032 = vunpack.c.l.b16 %v3731
    %v4033 = vunpack.c.h.b16 %v3731
    %v4034 = vunpack.c.l.b16 %v3732
    %v4035 = vunpack.c.h.b16 %v3732
    %v4036 = vunpack.c.l.b16 %v3733
    %v4037 = vunpack.c.h.b16 %v3733
    %v4038 = vunpack.c.l.b16 %v3734
    %v4039 = vunpack.c.h.b16 %v3734
    %v4040 = vunpack.c.l.b16 %v3735
    %v4041 = vunpack.c.h.b16 %v3735
    %v4042 = vunpack.c.l.b16 %v3736
    %v4043 = vunpack.c.h.b16 %v3736
    %v4044 = vunpack.c.l.b16 %v3737
    %v4045 = vunpack.c.h.b16 %v3737
    %v4046 = vunpack.c.l.b16 %v3738
    %v4047 = vunpack.c.h.b16 %v3738
    %v4048 = vunpack.c.l.b16 %v3739
    %v4049 = vunpack.c.h.b16 %v3739
    %v4050 = vunpack.c.l.b16 %v3740
    %v4051 = vunpack.c.h.b16 %v3740
    %v4052 = vunpack.c.l.b16 %v3741
    %v4053 = vunpack.c.h.b16 %v3741
    %v4054 = vunpack.c.l.b16 %v3742
    %v4055 = vunpack.c.h.b16 %v3742
    %v4056 = vunpack.c.l.b16 %v3743
    %v4057 = vunpack.c.h.b16 %v3743
    %v4058 = vunpack.c.l.b16 %v3744
    %v4059 = vunpack.c.h.b16 %v3744
    %v4060 = vunpack.c.l.b16 %v3745
    %v4061 = vunpack.c.h.b16 %v3745
    %v4062 = vunpack.c.l.b16 %v3746
    %v4063 = vunpack.c.h.b16 %v3746
    %v4064 = vunpack.c.l.b16 %v3747
    %v4065 = vunpack.c.h.b16 %v3747
    %v4066 = vunpack.c.l.b16 %v3748
    %v4067 = vunpack.c.h.b16 %v3748
    %v4068 = vunpack.c.l.b16 %v3749
    %v4069 = vunpack.c.h.b16 %v3749
    %v4070 = vunpack.c.l.b16 %v3750
    %v4071 = vunpack.c.h.b16 %v3750
    %v4072 = vunpack.c.l.b16 %v3751
    %v4073 = vunpack.c.h.b16 %v3751
    %v4074 = vunpack.c.l.b16 %v3752
    %v4075 = vunpack.c.h.b16 %v3752
    %v4076 = vunpack.c.l.b16 %v3753
    %v4077 = vunpack.c.h.b16 %v3753
    %v4078 = vunpack.c.l.b16 %v3754
    %v4079 = vunpack.c.h.b16 %v3754
    %v4080 = vunpack.c.l.b16 %v3755
    %v4081 = vunpack.c.h.b16 %v3755
    %v4082 = vunpack.c.l.b16 %v3756
    %v4083 = vunpack.c.h.b16 %v3756
    %v4084 = vunpack.c.l.b16 %v3757
    %v4085 = vunpack.c.h.b16 %v3757
    %v4086 = vunpack.c.l.b16 %v3758
    %v4087 = vunpack.c.h.b16 %v3758
    %v4088 = vunpack.c.l.b16 %v3759
    %v4089 = vunpack.c.h.b16 %v3759
    %v4090 = vunpack.c.l.b16 %v3760
    %v4091 = vunpack.c.h.b16 %v3760
    %v4092 = vunpack.c.l.b16 %v3761
    %v4093 = vunpack.c.h.b16 %v3761
    %v4094 = vunpack.c.l.b16 %v3762
    %v4095 = vunpack.c.h.b16 %v3762
    %v4096 = vunpack.c.l.b16 %v3763
    %v4097 = vunpack.c.h.b16 %v3763
    %v4098 = vunpack.c.l.b16 %v3764
    %v4099 = vunpack.c.h.b16 %v3764
    %v4100 = vunpack.c.l.b16 %v3765
    %v4101 = vunpack.c.h.b16 %v3765
    %v4102 = vunpack.c.l.b16 %v3766
    %v4103 = vunpack.c.h.b16 %v3766
    %v4104 = vunpack.c.l.b16 %v3767
    %v4105 = vunpack.c.h.b16 %v3767
    %v4106 = vunpack.c.l.b16 %v3768
    %v4107 = vunpack.c.h.b16 %v3768
    %v4108 = vunpack.c.l.b16 %v3769
    %v4109 = vunpack.c.h.b16 %v3769
    %v4110 = vunpack.c.l.b16 %v3770
    %v4111 = vunpack.c.h.b16 %v3770
    %v4112 = vunpack.c.l.b16 %v3771
    %v4113 = vunpack.c.h.b16 %v3771
    %v4114 = vunpack.c.l.b16 %v3772
    %v4115 = vunpack.c.h.b16 %v3772
    %v4116 = vunpack.c.l.b16 %v3773
    %v4117 = vunpack.c.h.b16 %v3773
    %v4118 = vunpack.c.l.b16 %v3774
    %v4119 = vunpack.c.h.b16 %v3774
    %v4120 = vunpack.c.l.b16 %v3775
    %v4121 = vunpack.c.h.b16 %v3775
    %v4122 = vunpack.c.l.b16 %v3776
    %v4123 = vunpack.c.h.b16 %v3776
    %v4124 = vunpack.c.l.b16 %v3777
    %v4125 = vunpack.c.h.b16 %v3777
    %v4126 = vunpack.c.l.b16 %v3778
    %v4127 = vunpack.c.h.b16 %v3778
    %v4128 = vunpack.c.l.b16 %v3779
    %v4129 = vunpack.c.h.b16 %v3779
    %v4130 = vunpack.c.l.b16 %v3780
    %v4131 = vunpack.c.h.b16 %v3780
    %v4132 = vunpack.c.l.b16 %v3781
    %v4133 = vunpack.c.h.b16 %v3781
    %v4134 = vunpack.c.l.b16 %v3782
    %v4135 = vunpack.c.h.b16 %v3782
    %v4136 = vunpack.c.l.b16 %v3783
    %v4137 = vunpack.c.h.b16 %v3783
    %v4138 = vunpack.c.l.b16 %v3784
    %v4139 = vunpack.c.h.b16 %v3784
    %v4140 = vunpack.c.l.b16 %v3785
    %v4141 = vunpack.c.h.b16 %v3785
    %v4142 = vunpack.c.l.b16 %v3786
    %v4143 = vunpack.c.h.b16 %v3786
    %v4144 = vunpack.c.l.b16 %v3787
    %v4145 = vunpack.c.h.b16 %v3787
    %v4146 = vunpack.c.l.b16 %v3788
    %v4147 = vunpack.c.h.b16 %v3788
    %v4148 = vunpack.c.l.b16 %v3789
    %v4149 = vunpack.c.h.b16 %v3789
    %v4150 = vunpack.c.l.b16 %v3790
    %v4151 = vunpack.c.h.b16 %v3790
    %v4152 = vunpack.c.l.b16 %v3791
    %v4153 = vunpack.c.h.b16 %v3791
    %v4154 = vunpack.c.l.b16 %v3792
    %v4155 = vunpack.c.h.b16 %v3792
    %v4156 = vunpack.c.l.b16 %v3793
    %v4157 = vunpack.c.h.b16 %v3793
    %v4158 = vunpack.c.l.b16 %v3794
    %v4159 = vunpack.c.h.b16 %v3794
    %v4160 = vunpack.c.l.b16 %v3795
    %v4161 = vunpack.c.h.b16 %v3795
    %v4162 = vunpack.c.l.b16 %v3796
    %v4163 = vunpack.c.h.b16 %v3796
    %v4164 = vunpack.c.l.b16 %v3797
    %v4165 = vunpack.c.h.b16 %v3797
    %v4166 = vunpack.c.l.b16 %v3798
    %v4167 = vunpack.c.h.b16 %v3798
    %v4168 = vunpack.c.l.b16 %v3799
    %v4169 = vunpack.c.h.b16 %v3799
    %v4170 = vunpack.c.l.b16 %v3800
    %v4171 = vunpack.c.h.b16 %v3800
    %v4172 = vunpack.c.l.b16 %v3801
    %v4173 = vunpack.c.h.b16 %v3801
    %v4174 = vunpack.c.l.b16 %v3802
    %v4175 = vunpack.c.h.b16 %v3802
    %v4176 = vunpack.c.l.b16 %v3803
    %v4177 = vunpack.c.h.b16 %v3803
    %v4178 = vunpack.c.l.b16 %v3804
    %v4179 = vunpack.c.h.b16 %v3804
    %v4180 = vunpack.c.l.b16 %v3805
    %v4181 = vunpack.c.h.b16 %v3805
    %v4182 = vunpack.c.l.b16 %v3806
    %v4183 = vunpack.c.h.b16 %v3806
    %v4184 = vunpack.c.l.b16 %v3807
    %v4185 = vunpack.c.h.b16 %v3807
    %v4186 = vunpack.c.l.b16 %v3808
    %v4187 = vunpack.c.h.b16 %v3808
    %v4188 = vunpack.c.l.b16 %v3809
    %v4189 = vunpack.c.h.b16 %v3809
    %v4190 = vunpack.c.l.b16 %v3810
    %v4191 = vunpack.c.h.b16 %v3810
    %v4192 = vunpack.c.l.b16 %v3811
    %v4193 = vunpack.c.h.b16 %v3811
    %v4194 = vunpack.c.l.b16 %v3812
    %v4195 = vunpack.c.h.b16 %v3812
    %v4196 = vunpack.c.l.b16 %v3813
    %v4197 = vunpack.c.h.b16 %v3813
    %v4198 = vunpack.c.l.b16 %v3814
    %v4199 = vunpack.c.h.b16 %v3814
    %v4200 = vunpack.c.l.b16 %v3815
    %v4201 = vunpack.c.h.b16 %v3815
    %v4202 = vunpack.c.l.b16 %v3816
    %v4203 = vunpack.c.h.b16 %v3816
    %v4204 = vunpack.c.l.b16 %v3817
    %v4205 = vunpack.c.h.b16 %v3817
    %v4206 = vunpack.c.l.b16 %v3818
    %v4207 = vunpack.c.h.b16 %v3818
    %v4208 = vunpack.c.l.b16 %v3819
    %v4209 = vunpack.c.h.b16 %v3819
    %v4210 = vunpack.c.l.b16 %v3820
    %v4211 = vunpack.c.h.b16 %v3820
    %v4212 = vunpack.c.l.b16 %v3821
    %v4213 = vunpack.c.h.b16 %v3821
    %v4214 = vunpack.c.l.b16 %v3822
    %v4215 = vunpack.c.h.b16 %v3822
    %v4216 = vunpack.c.l.b16 %v3823
    %v4217 = vunpack.c.h.b16 %v3823
    %v4218 = vpack.c.b16 %v3966, %v3962
    %v4219 = vpack.c.b16 %v3967, %v3963
    %v4220 = vpack.c.b16 %v3968, %v3964
    %v4221 = vpack.c.b16 %v3969, %v3965
    %v4222 = vpack.c.b16 %v3974, %v3970
    %v4223 = vpack.c.b16 %v3975, %v3971
    %v4224 = vpack.c.b16 %v3976, %v3972
    %v4225 = vpack.c.b16 %v3977, %v3973
    %v4226 = vpack.c.b16 %v3982, %v3978
    %v4227 = vpack.c.b16 %v3983, %v3979
    %v4228 = vpack.c.b16 %v3984, %v3980
    %v4229 = vpack.c.b16 %v3985, %v3981
    %v4230 = vpack.c.b16 %v3990, %v3986
    %v4231 = vpack.c.b16 %v3991, %v3987
    %v4232 = vpack.c.b16 %v3992, %v3988
    %v4233 = vpack.c.b16 %v3993, %v3989
    %v4234 = vpack.c.b16 %v3998, %v3994
    %v4235 = vpack.c.b16 %v3999, %v3995
    %v4236 = vpack.c.b16 %v4000, %v3996
    %v4237 = vpack.c.b16 %v4001, %v3997
    %v4238 = vpack.c.b16 %v4006, %v4002
    %v4239 = vpack.c.b16 %v4007, %v4003
    %v4240 = vpack.c.b16 %v4008, %v4004
    %v4241 = vpack.c.b16 %v4009, %v4005
    %v4242 = vpack.c.b16 %v4014, %v4010
    %v4243 = vpack.c.b16 %v4015, %v4011
    %v4244 = vpack.c.b16 %v4016, %v4012
    %v4245 = vpack.c.b16 %v4017, %v4013
    %v4246 = vpack.c.b16 %v4022, %v4018
    %v4247 = vpack.c.b16 %v4023, %v4019
    %v4248 = vpack.c.b16 %v4024, %v4020
    %v4249 = vpack.c.b16 %v4025, %v4021
    %v4250 = vpack.c.b16 %v4030, %v4026
    %v4251 = vpack.c.b16 %v4031, %v4027
    %v4252 = vpack.c.b16 %v4032, %v4028
    %v4253 = vpack.c.b16 %v4033, %v4029
    %v4254 = vpack.c.b16 %v4038, %v4034
    %v4255 = vpack.c.b16 %v4039, %v4035
    %v4256 = vpack.c.b16 %v4040, %v4036
    %v4257 = vpack.c.b16 %v4041, %v4037
    %v4258 = vpack.c.b16 %v4046, %v4042
    %v4259 = vpack.c.b16 %v4047, %v4043
    %v4260 = vpack.c.b16 %v4048, %v4044
    %v4261 = vpack.c.b16 %v4049, %v4045
    %v4262 = vpack.c.b16 %v4054, %v4050
    %v4263 = vpack.c.b16 %v4055, %v4051
    %v4264 = vpack.c.b16 %v4056, %v4052
    %v4265 = vpack.c.b16 %v4057, %v4053
    %v4266 = vpack.c.b16 %v4062, %v4058
    %v4267 = vpack.c.b16 %v4063, %v4059
    %v4268 = vpack.c.b16 %v4064, %v4060
    %v4269 = vpack.c.b16 %v4065, %v4061
    %v4270 = vpack.c.b16 %v4070, %v4066
    %v4271 = vpack.c.b16 %v4071, %v4067
    %v4272 = vpack.c.b16 %v4072, %v4068
    %v4273 = vpack.c.b16 %v4073, %v4069
    %v4274 = vpack.c.b16 %v4078, %v4074
    %v4275 = vpack.c.b16 %v4079, %v4075
    %v4276 = vpack.c.b16 %v4080, %v4076
    %v4277 = vpack.c.b16 %v4081, %v4077
    %v4278 = vpack.c.b16 %v4086, %v4082
    %v4279 = vpack.c.b16 %v4087, %v4083
    %v4280 = vpack.c.b16 %v4088, %v4084
    %v4281 = vpack.c.b16 %v4089, %v4085
    %v4282 = vpack.c.b16 %v4094, %v4090
    %v4283 = vpack.c.b16 %v4095, %v4091
    %v4284 = vpack.c.b16 %v4096, %v4092
    %v4285 = vpack.c.b16 %v4097, %v4093
    %v4286 = vpack.c.b16 %v4102, %v4098
    %v4287 = vpack.c.b16 %v4103, %v4099
    %v4288 = vpack.c.b16 %v4104, %v4100
    %v4289 = vpack.c.b16 %v4105, %v4101
    %v4290 = vpack.c.b16 %v4110, %v4106
    %v4291 = vpack.c.b16 %v4111, %v4107
    %v4292 = vpack.c.b16 %v4112, %v4108
    %v4293 = vpack.c.b16 %v4113, %v4109
    %v4294 = vpack.c.b16 %v4118, %v4114
    %v4295 = vpack.c.b16 %v4119, %v4115
    %v4296 = vpack.c.b16 %v4120, %v4116
    %v4297 = vpack.c.b16 %v4121, %v4117
    %v4298 = vpack.c.b16 %v4126, %v4122
    %v4299 = vpack.c.b16 %v4127, %v4123
    %v4300 = vpack.c.b16 %v4128, %v4124
    %v4301 = vpack.c.b16 %v4129, %v4125
    %v4302 = vpack.c.b16 %v4134, %v4130
    %v4303 = vpack.c.b16 %v4135, %v4131
    %v4304 = vpack.c.b16 %v4136, %v4132
    %v4305 = vpack.c.b16 %v4137, %v4133
    %v4306 = vpack.c.b16 %v4142, %v4138
    %v4307 = vpack.c.b16 %v4143, %v4139
    %v4308 = vpack.c.b16 %v4144, %v4140
    %v4309 = vpack.c.b16 %v4145, %v4141
    %v4310 = vpack.c.b16 %v4150, %v4146
    %v4311 = vpack.c.b16 %v4151, %v4147
    %v4312 = vpack.c.b16 %v4152, %v4148
    %v4313 = vpack.c.b16 %v4153, %v4149
    %v4314 = vpack.c.b16 %v4158, %v4154
    %v4315 = vpack.c.b16 %v4159, %v4155
    %v4316 = vpack.c.b16 %v4160, %v4156
    %v4317 = vpack.c.b16 %v4161, %v4157
    %v4318 = vpack.c.b16 %v4166, %v4162
    %v4319 = vpack.c.b16 %v4167, %v4163
    %v4320 = vpack.c.b16 %v4168, %v4164
    %v4321 = vpack.c.b16 %v4169, %v4165
    %v4322 = vpack.c.b16 %v4174, %v4170
    %v4323 = vpack.c.b16 %v4175, %v4171
    %v4324 = vpack.c.b16 %v4176, %v4172
    %v4325 = vpack.c.b16 %v4177, %v4173
    %v4326 = vpack.c.b16 %v4182, %v4178
    %v4327 = vpack.c.b16 %v4183, %v4179
    %v4328 = vpack.c.b16 %v4184, %v4180
    %v4329 = vpack.c.b16 %v4185, %v4181
    %v4330 = vpack.c.b16 %v4190, %v4186
    %v4331 = vpack.c.b16 %v4191, %v4187
    %v4332 = vpack.c.b16 %v4192, %v4188
    %v4333 = vpack.c.b16 %v4193, %v4189
    %v4334 = vpack.c.b16 %v4198, %v4194
    %v4335 = vpack.c.b16 %v4199, %v4195
    %v4336 = vpack.c.b16 %v4200, %v4196
    %v4337 = vpack.c.b16 %v4201, %v4197
    %v4338 = vpack.c.b16 %v4206, %v4202
    %v4339 = vpack.c.b16 %v4207, %v4203
    %v4340 = vpack.c.b16 %v4208, %v4204
    %v4341 = vpack.c.b16 %v4209, %v4205
    %v4342 = vpack.c.b16 %v4214, %v4210
    %v4343 = vpack.c.b16 %v4215, %v4211
    %v4344 = vpack.c.b16 %v4216, %v4212
    %v4345 = vpack.c.b16 %v4217, %v4213
    %4474 = vmatpush.bf16.msra.mxu0 %v4246
    %4475 = vmatpush.bf16.msra.mxu0 %v4242
    %4476 = vmatpush.bf16.msra.mxu0 %v4238
    %4477 = vmatpush.bf16.msra.mxu0 %v4234
    %4478 = vmatpush.bf16.msra.mxu0 %v4230
    %4479 = vmatpush.bf16.msra.mxu0 %v4226
    %4480 = vmatpush.bf16.msra.mxu0 %v4222
    %4481 = vmatpush.bf16.msra.mxu0 %v4218
    %4482 = vmatmul.bf16.gmra.mxu0 %v3692
    %v4483 = vpop.f32.mrf.mxu0
    %v4484 = vadd.f32 %v3826, %v4483
    %v4485 = vpop.f32.mrf.mxu0
    %4486 = vdwg.mxu0
    %4487 = vmatpush.bf16.msra.mxu0 %v4278
    %4488 = vmatpush.bf16.msra.mxu0 %v4274
    %4489 = vmatpush.bf16.msra.mxu0 %v4270
    %4490 = vmatpush.bf16.msra.mxu0 %v4266
    %4491 = vmatpush.bf16.msra.mxu0 %v4262
    %4492 = vmatpush.bf16.msra.mxu0 %v4258
    %4493 = vmatpush.bf16.msra.mxu0 %v4254
    %4494 = vmatpush.bf16.msra.mxu0 %v4250
    %4495 = vmatmul.bf16.gmra.mxu0 %v3693
    %v4496 = vpop.f32.mrf.mxu0
    %v4497 = vadd.f32 %v4484, %v4496
    %v4498 = vpop.f32.mrf.mxu0
    %4499 = vdwg.mxu0
    %4500 = vmatpush.bf16.msra.mxu0 %v4310
    %4501 = vmatpush.bf16.msra.mxu0 %v4306
    %4502 = vmatpush.bf16.msra.mxu0 %v4302
    %4503 = vmatpush.bf16.msra.mxu0 %v4298
    %4504 = vmatpush.bf16.msra.mxu0 %v4294
    %4505 = vmatpush.bf16.msra.mxu0 %v4290
    %4506 = vmatpush.bf16.msra.mxu0 %v4286
    %4507 = vmatpush.bf16.msra.mxu0 %v4282
    %4508 = vmatmul.bf16.gmra.mxu0 %v3694
    %v4509 = vpop.f32.mrf.mxu0
    %v4510 = vadd.f32 %v4497, %v4509
    %v4511 = vpop.f32.mrf.mxu0
    %4512 = vdwg.mxu0
    %4513 = vmatpush.bf16.msra.mxu0 %v4342
    %4514 = vmatpush.bf16.msra.mxu0 %v4338
    %4515 = vmatpush.bf16.msra.mxu0 %v4334
    %4516 = vmatpush.bf16.msra.mxu0 %v4330
    %4517 = vmatpush.bf16.msra.mxu0 %v4326
    %4518 = vmatpush.bf16.msra.mxu0 %v4322
    %4519 = vmatpush.bf16.msra.mxu0 %v4318
    %4520 = vmatpush.bf16.msra.mxu0 %v4314
    %4521 = vmatmul.bf16.gmra.mxu0 %v3695
    %v4522 = vpop.f32.mrf.mxu0
    %v4523 = vadd.f32 %v4510, %v4522
    %v4524 = vpop.f32.mrf.mxu0
    %4525 = vdwg.mxu0
    %4526 = vmatpush.bf16.msra.mxu0 %v4247
    %4527 = vmatpush.bf16.msra.mxu0 %v4243
    %4528 = vmatpush.bf16.msra.mxu0 %v4239
    %4529 = vmatpush.bf16.msra.mxu0 %v4235
    %4530 = vmatpush.bf16.msra.mxu0 %v4231
    %4531 = vmatpush.bf16.msra.mxu0 %v4227
    %4532 = vmatpush.bf16.msra.mxu0 %v4223
    %4533 = vmatpush.bf16.msra.mxu0 %v4219
    %4534 = vmatmul.bf16.gmra.mxu0 %v3692
    %v4535 = vpop.f32.mrf.mxu0
    %v4536 = vadd.f32 %v3827, %v4535
    %v4537 = vpop.f32.mrf.mxu0
    %4538 = vdwg.mxu0
    %4539 = vmatpush.bf16.msra.mxu0 %v4279
    %4540 = vmatpush.bf16.msra.mxu0 %v4275
    %4541 = vmatpush.bf16.msra.mxu0 %v4271
    %4542 = vmatpush.bf16.msra.mxu0 %v4267
    %4543 = vmatpush.bf16.msra.mxu0 %v4263
    %4544 = vmatpush.bf16.msra.mxu0 %v4259
    %4545 = vmatpush.bf16.msra.mxu0 %v4255
    %4546 = vmatpush.bf16.msra.mxu0 %v4251
    %4547 = vmatmul.bf16.gmra.mxu0 %v3693
    %v4548 = vpop.f32.mrf.mxu0
    %v4549 = vadd.f32 %v4536, %v4548
    %v4550 = vpop.f32.mrf.mxu0
    %4551 = vdwg.mxu0
    %4552 = vmatpush.bf16.msra.mxu0 %v4311
    %4553 = vmatpush.bf16.msra.mxu0 %v4307
    %4554 = vmatpush.bf16.msra.mxu0 %v4303
    %4555 = vmatpush.bf16.msra.mxu0 %v4299
    %4556 = vmatpush.bf16.msra.mxu0 %v4295
    %4557 = vmatpush.bf16.msra.mxu0 %v4291
    %4558 = vmatpush.bf16.msra.mxu0 %v4287
    %4559 = vmatpush.bf16.msra.mxu0 %v4283
    %4560 = vmatmul.bf16.gmra.mxu0 %v3694
    %v4561 = vpop.f32.mrf.mxu0
    %v4562 = vadd.f32 %v4549, %v4561
    %v4563 = vpop.f32.mrf.mxu0
    %4564 = vdwg.mxu0
    %4565 = vmatpush.bf16.msra.mxu0 %v4343
    %4566 = vmatpush.bf16.msra.mxu0 %v4339
    %4567 = vmatpush.bf16.msra.mxu0 %v4335
    %4568 = vmatpush.bf16.msra.mxu0 %v4331
    %4569 = vmatpush.bf16.msra.mxu0 %v4327
    %4570 = vmatpush.bf16.msra.mxu0 %v4323
    %4571 = vmatpush.bf16.msra.mxu0 %v4319
    %4572 = vmatpush.bf16.msra.mxu0 %v4315
    %4573 = vmatmul.bf16.gmra.mxu0 %v3695
    %v4574 = vpop.f32.mrf.mxu0
    %v4575 = vadd.f32 %v4562, %v4574
    %v4576 = vpop.f32.mrf.mxu0
    %4577 = vdwg.mxu0
    %4578 = vmatpush.bf16.msra.mxu0 %v4248
    %4579 = vmatpush.bf16.msra.mxu0 %v4244
    %4580 = vmatpush.bf16.msra.mxu0 %v4240
    %4581 = vmatpush.bf16.msra.mxu0 %v4236
    %4582 = vmatpush.bf16.msra.mxu0 %v4232
    %4583 = vmatpush.bf16.msra.mxu0 %v4228
    %4584 = vmatpush.bf16.msra.mxu0 %v4224
    %4585 = vmatpush.bf16.msra.mxu0 %v4220
    %4586 = vmatmul.bf16.gmra.mxu0 %v3692
    %v4587 = vpop.f32.mrf.mxu0
    %v4588 = vadd.f32 %v3828, %v4587
    %v4589 = vpop.f32.mrf.mxu0
    %4590 = vdwg.mxu0
    %4591 = vmatpush.bf16.msra.mxu0 %v4280
    %4592 = vmatpush.bf16.msra.mxu0 %v4276
    %4593 = vmatpush.bf16.msra.mxu0 %v4272
    %4594 = vmatpush.bf16.msra.mxu0 %v4268
    %4595 = vmatpush.bf16.msra.mxu0 %v4264
    %4596 = vmatpush.bf16.msra.mxu0 %v4260
    %4597 = vmatpush.bf16.msra.mxu0 %v4256
    %4598 = vmatpush.bf16.msra.mxu0 %v4252
    %4599 = vmatmul.bf16.gmra.mxu0 %v3693
    %v4600 = vpop.f32.mrf.mxu0
    %v4601 = vadd.f32 %v4588, %v4600
    %v4602 = vpop.f32.mrf.mxu0
    %4603 = vdwg.mxu0
    %4604 = vmatpush.bf16.msra.mxu0 %v4312
    %4605 = vmatpush.bf16.msra.mxu0 %v4308
    %4606 = vmatpush.bf16.msra.mxu0 %v4304
    %4607 = vmatpush.bf16.msra.mxu0 %v4300
    %4608 = vmatpush.bf16.msra.mxu0 %v4296
    %4609 = vmatpush.bf16.msra.mxu0 %v4292
    %4610 = vmatpush.bf16.msra.mxu0 %v4288
    %4611 = vmatpush.bf16.msra.mxu0 %v4284
    %4612 = vmatmul.bf16.gmra.mxu0 %v3694
    %v4613 = vpop.f32.mrf.mxu0
    %v4614 = vadd.f32 %v4601, %v4613
    %v4615 = vpop.f32.mrf.mxu0
    %4616 = vdwg.mxu0
    %4617 = vmatpush.bf16.msra.mxu0 %v4344
    %4618 = vmatpush.bf16.msra.mxu0 %v4340
    %4619 = vmatpush.bf16.msra.mxu0 %v4336
    %4620 = vmatpush.bf16.msra.mxu0 %v4332
    %4621 = vmatpush.bf16.msra.mxu0 %v4328
    %4622 = vmatpush.bf16.msra.mxu0 %v4324
    %4623 = vmatpush.bf16.msra.mxu0 %v4320
    %4624 = vmatpush.bf16.msra.mxu0 %v4316
    %4625 = vmatmul.bf16.gmra.mxu0 %v3695
    %v4626 = vpop.f32.mrf.mxu0
    %v4627 = vadd.f32 %v4614, %v4626
    %v4628 = vpop.f32.mrf.mxu0
    %4629 = vdwg.mxu0
    %4630 = vmatpush.bf16.msra.mxu0 %v4249
    %4631 = vmatpush.bf16.msra.mxu0 %v4245
    %4632 = vmatpush.bf16.msra.mxu0 %v4241
    %4633 = vmatpush.bf16.msra.mxu0 %v4237
    %4634 = vmatpush.bf16.msra.mxu0 %v4233
    %4635 = vmatpush.bf16.msra.mxu0 %v4229
    %4636 = vmatpush.bf16.msra.mxu0 %v4225
    %4637 = vmatpush.bf16.msra.mxu0 %v4221
    %4638 = vmatmul.bf16.gmra.mxu0 %v3692
    %v4639 = vpop.f32.mrf.mxu0
    %v4640 = vadd.f32 %v3829, %v4639
    %v4641 = vpop.f32.mrf.mxu0
    %4642 = vdwg.mxu0
    %4643 = vmatpush.bf16.msra.mxu0 %v4281
    %4644 = vmatpush.bf16.msra.mxu0 %v4277
    %4645 = vmatpush.bf16.msra.mxu0 %v4273
    %4646 = vmatpush.bf16.msra.mxu0 %v4269
    %4647 = vmatpush.bf16.msra.mxu0 %v4265
    %4648 = vmatpush.bf16.msra.mxu0 %v4261
    %4649 = vmatpush.bf16.msra.mxu0 %v4257
    %4650 = vmatpush.bf16.msra.mxu0 %v4253
    %4651 = vmatmul.bf16.gmra.mxu0 %v3693
    %v4652 = vpop.f32.mrf.mxu0
    %v4653 = vadd.f32 %v4640, %v4652
    %v4654 = vpop.f32.mrf.mxu0
    %4655 = vdwg.mxu0
    %4656 = vmatpush.bf16.msra.mxu0 %v4313
    %4657 = vmatpush.bf16.msra.mxu0 %v4309
    %4658 = vmatpush.bf16.msra.mxu0 %v4305
    %4659 = vmatpush.bf16.msra.mxu0 %v4301
    %4660 = vmatpush.bf16.msra.mxu0 %v4297
    %4661 = vmatpush.bf16.msra.mxu0 %v4293
    %4662 = vmatpush.bf16.msra.mxu0 %v4289
    %4663 = vmatpush.bf16.msra.mxu0 %v4285
    %4664 = vmatmul.bf16.gmra.mxu0 %v3694
    %v4665 = vpop.f32.mrf.mxu0
    %v4666 = vadd.f32 %v4653, %v4665
    %v4667 = vpop.f32.mrf.mxu0
    %4668 = vdwg.mxu0
    %4669 = vmatpush.bf16.msra.mxu0 %v4345
    %4670 = vmatpush.bf16.msra.mxu0 %v4341
    %4671 = vmatpush.bf16.msra.mxu0 %v4337
    %4672 = vmatpush.bf16.msra.mxu0 %v4333
    %4673 = vmatpush.bf16.msra.mxu0 %v4329
    %4674 = vmatpush.bf16.msra.mxu0 %v4325
    %4675 = vmatpush.bf16.msra.mxu0 %v4321
    %4676 = vmatpush.bf16.msra.mxu0 %v4317
    %4677 = vmatmul.bf16.gmra.mxu0 %v3695
    %v4678 = vpop.f32.mrf.mxu0
    %v4679 = vadd.f32 %v4666, %v4678
    %v4680 = vpop.f32.mrf.mxu0
    %4681 = vdwg.mxu0
    %v4682 = vmax.f32 %v4523, 0.0
    %v4683 = vmax.f32 %v4575, 0.0
    %v4684 = vmax.f32 %v4627, 0.0
    %v4685 = vmax.f32 %v4679, 0.0
    %v4686 = vpack.c.bf16 %v4682, %v4682
    %v4687 = vpack.c.bf16 %v4683, %v4683
    %v4688 = vpack.c.bf16 %v4684, %v4684
    %v4689 = vpack.c.bf16 %v4685, %v4685
    %v4690 = vld [vmem:[#allocation17] sm:$0xff]
    %v4691 = vld [vmem:[#allocation17 + $0x8] sm:$0xff]
    %v4692 = vld [vmem:[#allocation17 + $0x10] sm:$0xff]
    %v4693 = vld [vmem:[#allocation17 + $0x18] sm:$0xff]
    %v4694 = vld [vmem:[#allocation17 + $0x20] sm:$0xff]
    %v4695 = vld [vmem:[#allocation17 + $0x28] sm:$0xff]
    %v4696 = vld [vmem:[#allocation17 + $0x30] sm:$0xff]
    %v4697 = vld [vmem:[#allocation17 + $0x38] sm:$0xff]
    %v4698 = vld [vmem:[#allocation17 + $0x40] sm:$0xff]
    %v4699 = vld [vmem:[#allocation17 + $0x48] sm:$0xff]
    %v4700 = vld [vmem:[#allocation17 + $0x50] sm:$0xff]
    %v4701 = vld [vmem:[#allocation17 + $0x58] sm:$0xff]
    %v4702 = vld [vmem:[#allocation17 + $0x60] sm:$0xff]
    %v4703 = vld [vmem:[#allocation17 + $0x68] sm:$0xff]
    %v4704 = vld [vmem:[#allocation17 + $0x70] sm:$0xff]
    %v4705 = vld [vmem:[#allocation17 + $0x78] sm:$0xff]
    %v4706 = vld [vmem:[#allocation17 + $0x80] sm:$0xff]
    %v4707 = vld [vmem:[#allocation17 + $0x88] sm:$0xff]
    %v4708 = vld [vmem:[#allocation17 + $0x90] sm:$0xff]
    %v4709 = vld [vmem:[#allocation17 + $0x98] sm:$0xff]
    %v4710 = vld [vmem:[#allocation17 + $0xa0] sm:$0xff]
    %v4711 = vld [vmem:[#allocation17 + $0xa8] sm:$0xff]
    %v4712 = vld [vmem:[#allocation17 + $0xb0] sm:$0xff]
    %v4713 = vld [vmem:[#allocation17 + $0xb8] sm:$0xff]
    %v4714 = vld [vmem:[#allocation17 + $0xc0] sm:$0xff]
    %v4715 = vld [vmem:[#allocation17 + $0xc8] sm:$0xff]
    %v4716 = vld [vmem:[#allocation17 + $0xd0] sm:$0xff]
    %v4717 = vld [vmem:[#allocation17 + $0xd8] sm:$0xff]
    %v4718 = vld [vmem:[#allocation17 + $0xe0] sm:$0xff]
    %v4719 = vld [vmem:[#allocation17 + $0xe8] sm:$0xff]
    %v4720 = vld [vmem:[#allocation17 + $0xf0] sm:$0xff]
    %v4721 = vld [vmem:[#allocation17 + $0xf8] sm:$0xff]
    %v4722 = vld [vmem:[#allocation17 + $0x100] sm:$0xff]
    %v4723 = vld [vmem:[#allocation17 + $0x108] sm:$0xff]
    %v4724 = vld [vmem:[#allocation17 + $0x110] sm:$0xff]
    %v4725 = vld [vmem:[#allocation17 + $0x118] sm:$0xff]
    %v4726 = vld [vmem:[#allocation17 + $0x120] sm:$0xff]
    %v4727 = vld [vmem:[#allocation17 + $0x128] sm:$0xff]
    %v4728 = vld [vmem:[#allocation17 + $0x130] sm:$0xff]
    %v4729 = vld [vmem:[#allocation17 + $0x138] sm:$0xff]
    %v4730 = vld [vmem:[#allocation17 + $0x140] sm:$0xff]
    %v4731 = vld [vmem:[#allocation17 + $0x148] sm:$0xff]
    %v4732 = vld [vmem:[#allocation17 + $0x150] sm:$0xff]
    %v4733 = vld [vmem:[#allocation17 + $0x158] sm:$0xff]
    %v4734 = vld [vmem:[#allocation17 + $0x160] sm:$0xff]
    %v4735 = vld [vmem:[#allocation17 + $0x168] sm:$0xff]
    %v4736 = vld [vmem:[#allocation17 + $0x170] sm:$0xff]
    %v4737 = vld [vmem:[#allocation17 + $0x178] sm:$0xff]
    %v4738 = vld [vmem:[#allocation17 + $0x180] sm:$0xff]
    %v4739 = vld [vmem:[#allocation17 + $0x188] sm:$0xff]
    %v4740 = vld [vmem:[#allocation17 + $0x190] sm:$0xff]
    %v4741 = vld [vmem:[#allocation17 + $0x198] sm:$0xff]
    %v4742 = vld [vmem:[#allocation17 + $0x1a0] sm:$0xff]
    %v4743 = vld [vmem:[#allocation17 + $0x1a8] sm:$0xff]
    %v4744 = vld [vmem:[#allocation17 + $0x1b0] sm:$0xff]
    %v4745 = vld [vmem:[#allocation17 + $0x1b8] sm:$0xff]
    %v4746 = vld [vmem:[#allocation17 + $0x1c0] sm:$0xff]
    %v4747 = vld [vmem:[#allocation17 + $0x1c8] sm:$0xff]
    %v4748 = vld [vmem:[#allocation17 + $0x1d0] sm:$0xff]
    %v4749 = vld [vmem:[#allocation17 + $0x1d8] sm:$0xff]
    %v4750 = vld [vmem:[#allocation17 + $0x1e0] sm:$0xff]
    %v4751 = vld [vmem:[#allocation17 + $0x1e8] sm:$0xff]
    %v4752 = vld [vmem:[#allocation17 + $0x1f0] sm:$0xff]
    %v4753 = vld [vmem:[#allocation17 + $0x1f8] sm:$0xff]
    %v4754 = vld [vmem:[#allocation17 + $0x200] sm:$0xff]
    %v4755 = vld [vmem:[#allocation17 + $0x208] sm:$0xff]
    %v4756 = vld [vmem:[#allocation17 + $0x210] sm:$0xff]
    %v4757 = vld [vmem:[#allocation17 + $0x218] sm:$0xff]
    %v4758 = vld [vmem:[#allocation17 + $0x220] sm:$0xff]
    %v4759 = vld [vmem:[#allocation17 + $0x228] sm:$0xff]
    %v4760 = vld [vmem:[#allocation17 + $0x230] sm:$0xff]
    %v4761 = vld [vmem:[#allocation17 + $0x238] sm:$0xff]
    %v4762 = vld [vmem:[#allocation17 + $0x240] sm:$0xff]
    %v4763 = vld [vmem:[#allocation17 + $0x248] sm:$0xff]
    %v4764 = vld [vmem:[#allocation17 + $0x250] sm:$0xff]
    %v4765 = vld [vmem:[#allocation17 + $0x258] sm:$0xff]
    %v4766 = vld [vmem:[#allocation17 + $0x260] sm:$0xff]
    %v4767 = vld [vmem:[#allocation17 + $0x268] sm:$0xff]
    %v4768 = vld [vmem:[#allocation17 + $0x270] sm:$0xff]
    %v4769 = vld [vmem:[#allocation17 + $0x278] sm:$0xff]
    %v4770 = vld [vmem:[#allocation17 + $0x280] sm:$0xff]
    %v4771 = vld [vmem:[#allocation17 + $0x288] sm:$0xff]
    %v4772 = vld [vmem:[#allocation17 + $0x290] sm:$0xff]
    %v4773 = vld [vmem:[#allocation17 + $0x298] sm:$0xff]
    %v4774 = vld [vmem:[#allocation17 + $0x2a0] sm:$0xff]
    %v4775 = vld [vmem:[#allocation17 + $0x2a8] sm:$0xff]
    %v4776 = vld [vmem:[#allocation17 + $0x2b0] sm:$0xff]
    %v4777 = vld [vmem:[#allocation17 + $0x2b8] sm:$0xff]
    %v4778 = vld [vmem:[#allocation17 + $0x2c0] sm:$0xff]
    %v4779 = vld [vmem:[#allocation17 + $0x2c8] sm:$0xff]
    %v4780 = vld [vmem:[#allocation17 + $0x2d0] sm:$0xff]
    %v4781 = vld [vmem:[#allocation17 + $0x2d8] sm:$0xff]
    %v4782 = vld [vmem:[#allocation17 + $0x2e0] sm:$0xff]
    %v4783 = vld [vmem:[#allocation17 + $0x2e8] sm:$0xff]
    %v4784 = vld [vmem:[#allocation17 + $0x2f0] sm:$0xff]
    %v4785 = vld [vmem:[#allocation17 + $0x2f8] sm:$0xff]
    %v4786 = vld [vmem:[#allocation17 + $0x300] sm:$0xff]
    %v4787 = vld [vmem:[#allocation17 + $0x308] sm:$0xff]
    %v4788 = vld [vmem:[#allocation17 + $0x310] sm:$0xff]
    %v4789 = vld [vmem:[#allocation17 + $0x318] sm:$0xff]
    %v4790 = vld [vmem:[#allocation17 + $0x320] sm:$0xff]
    %v4791 = vld [vmem:[#allocation17 + $0x328] sm:$0xff]
    %v4792 = vld [vmem:[#allocation17 + $0x330] sm:$0xff]
    %v4793 = vld [vmem:[#allocation17 + $0x338] sm:$0xff]
    %v4794 = vld [vmem:[#allocation17 + $0x340] sm:$0xff]
    %v4795 = vld [vmem:[#allocation17 + $0x348] sm:$0xff]
    %v4796 = vld [vmem:[#allocation17 + $0x350] sm:$0xff]
    %v4797 = vld [vmem:[#allocation17 + $0x358] sm:$0xff]
    %v4798 = vld [vmem:[#allocation17 + $0x360] sm:$0xff]
    %v4799 = vld [vmem:[#allocation17 + $0x368] sm:$0xff]
    %v4800 = vld [vmem:[#allocation17 + $0x370] sm:$0xff]
    %v4801 = vld [vmem:[#allocation17 + $0x378] sm:$0xff]
    %v4802 = vld [vmem:[#allocation17 + $0x380] sm:$0xff]
    %v4803 = vld [vmem:[#allocation17 + $0x388] sm:$0xff]
    %v4804 = vld [vmem:[#allocation17 + $0x390] sm:$0xff]
    %v4805 = vld [vmem:[#allocation17 + $0x398] sm:$0xff]
    %v4806 = vld [vmem:[#allocation17 + $0x3a0] sm:$0xff]
    %v4807 = vld [vmem:[#allocation17 + $0x3a8] sm:$0xff]
    %v4808 = vld [vmem:[#allocation17 + $0x3b0] sm:$0xff]
    %v4809 = vld [vmem:[#allocation17 + $0x3b8] sm:$0xff]
    %v4810 = vld [vmem:[#allocation17 + $0x3c0] sm:$0xff]
    %v4811 = vld [vmem:[#allocation17 + $0x3c8] sm:$0xff]
    %v4812 = vld [vmem:[#allocation17 + $0x3d0] sm:$0xff]
    %v4813 = vld [vmem:[#allocation17 + $0x3d8] sm:$0xff]
    %v4814 = vld [vmem:[#allocation17 + $0x3e0] sm:$0xff]
    %v4815 = vld [vmem:[#allocation17 + $0x3e8] sm:$0xff]
    %v4816 = vld [vmem:[#allocation17 + $0x3f0] sm:$0xff]
    %v4817 = vld [vmem:[#allocation17 + $0x3f8] sm:$0xff]
    %v4818 = vld [vmem:[#allocation19] sm:$0xf]
    %v4820 = vperm.slane %v4818, 0
    %v4821 = vperm.slane %v4818, 1
    %v4822 = vperm.slane %v4818, 2
    %v4823 = vperm.slane %v4818, 3
    %v4956 = vunpack.c.l.b16 %v4690
    %v4957 = vunpack.c.h.b16 %v4690
    %v4958 = vunpack.c.l.b16 %v4691
    %v4959 = vunpack.c.h.b16 %v4691
    %v4960 = vunpack.c.l.b16 %v4692
    %v4961 = vunpack.c.h.b16 %v4692
    %v4962 = vunpack.c.l.b16 %v4693
    %v4963 = vunpack.c.h.b16 %v4693
    %v4964 = vunpack.c.l.b16 %v4694
    %v4965 = vunpack.c.h.b16 %v4694
    %v4966 = vunpack.c.l.b16 %v4695
    %v4967 = vunpack.c.h.b16 %v4695
    %v4968 = vunpack.c.l.b16 %v4696
    %v4969 = vunpack.c.h.b16 %v4696
    %v4970 = vunpack.c.l.b16 %v4697
    %v4971 = vunpack.c.h.b16 %v4697
    %v4972 = vunpack.c.l.b16 %v4698
    %v4973 = vunpack.c.h.b16 %v4698
    %v4974 = vunpack.c.l.b16 %v4699
    %v4975 = vunpack.c.h.b16 %v4699
    %v4976 = vunpack.c.l.b16 %v4700
    %v4977 = vunpack.c.h.b16 %v4700
    %v4978 = vunpack.c.l.b16 %v4701
    %v4979 = vunpack.c.h.b16 %v4701
    %v4980 = vunpack.c.l.b16 %v4702
    %v4981 = vunpack.c.h.b16 %v4702
    %v4982 = vunpack.c.l.b16 %v4703
    %v4983 = vunpack.c.h.b16 %v4703
    %v4984 = vunpack.c.l.b16 %v4704
    %v4985 = vunpack.c.h.b16 %v4704
    %v4986 = vunpack.c.l.b16 %v4705
    %v4987 = vunpack.c.h.b16 %v4705
    %v4988 = vunpack.c.l.b16 %v4706
    %v4989 = vunpack.c.h.b16 %v4706
    %v4990 = vunpack.c.l.b16 %v4707
    %v4991 = vunpack.c.h.b16 %v4707
    %v4992 = vunpack.c.l.b16 %v4708
    %v4993 = vunpack.c.h.b16 %v4708
    %v4994 = vunpack.c.l.b16 %v4709
    %v4995 = vunpack.c.h.b16 %v4709
    %v4996 = vunpack.c.l.b16 %v4710
    %v4997 = vunpack.c.h.b16 %v4710
    %v4998 = vunpack.c.l.b16 %v4711
    %v4999 = vunpack.c.h.b16 %v4711
    %v5000 = vunpack.c.l.b16 %v4712
    %v5001 = vunpack.c.h.b16 %v4712
    %v5002 = vunpack.c.l.b16 %v4713
    %v5003 = vunpack.c.h.b16 %v4713
    %v5004 = vunpack.c.l.b16 %v4714
    %v5005 = vunpack.c.h.b16 %v4714
    %v5006 = vunpack.c.l.b16 %v4715
    %v5007 = vunpack.c.h.b16 %v4715
    %v5008 = vunpack.c.l.b16 %v4716
    %v5009 = vunpack.c.h.b16 %v4716
    %v5010 = vunpack.c.l.b16 %v4717
    %v5011 = vunpack.c.h.b16 %v4717
    %v5012 = vunpack.c.l.b16 %v4718
    %v5013 = vunpack.c.h.b16 %v4718
    %v5014 = vunpack.c.l.b16 %v4719
    %v5015 = vunpack.c.h.b16 %v4719
    %v5016 = vunpack.c.l.b16 %v4720
    %v5017 = vunpack.c.h.b16 %v4720
    %v5018 = vunpack.c.l.b16 %v4721
    %v5019 = vunpack.c.h.b16 %v4721
    %v5020 = vunpack.c.l.b16 %v4722
    %v5021 = vunpack.c.h.b16 %v4722
    %v5022 = vunpack.c.l.b16 %v4723
    %v5023 = vunpack.c.h.b16 %v4723
    %v5024 = vunpack.c.l.b16 %v4724
    %v5025 = vunpack.c.h.b16 %v4724
    %v5026 = vunpack.c.l.b16 %v4725
    %v5027 = vunpack.c.h.b16 %v4725
    %v5028 = vunpack.c.l.b16 %v4726
    %v5029 = vunpack.c.h.b16 %v4726
    %v5030 = vunpack.c.l.b16 %v4727
    %v5031 = vunpack.c.h.b16 %v4727
    %v5032 = vunpack.c.l.b16 %v4728
    %v5033 = vunpack.c.h.b16 %v4728
    %v5034 = vunpack.c.l.b16 %v4729
    %v5035 = vunpack.c.h.b16 %v4729
    %v5036 = vunpack.c.l.b16 %v4730
    %v5037 = vunpack.c.h.b16 %v4730
    %v5038 = vunpack.c.l.b16 %v4731
    %v5039 = vunpack.c.h.b16 %v4731
    %v5040 = vunpack.c.l.b16 %v4732
    %v5041 = vunpack.c.h.b16 %v4732
    %v5042 = vunpack.c.l.b16 %v4733
    %v5043 = vunpack.c.h.b16 %v4733
    %v5044 = vunpack.c.l.b16 %v4734
    %v5045 = vunpack.c.h.b16 %v4734
    %v5046 = vunpack.c.l.b16 %v4735
    %v5047 = vunpack.c.h.b16 %v4735
    %v5048 = vunpack.c.l.b16 %v4736
    %v5049 = vunpack.c.h.b16 %v4736
    %v5050 = vunpack.c.l.b16 %v4737
    %v5051 = vunpack.c.h.b16 %v4737
    %v5052 = vunpack.c.l.b16 %v4738
    %v5053 = vunpack.c.h.b16 %v4738
    %v5054 = vunpack.c.l.b16 %v4739
    %v5055 = vunpack.c.h.b16 %v4739
    %v5056 = vunpack.c.l.b16 %v4740
    %v5057 = vunpack.c.h.b16 %v4740
    %v5058 = vunpack.c.l.b16 %v4741
    %v5059 = vunpack.c.h.b16 %v4741
    %v5060 = vunpack.c.l.b16 %v4742
    %v5061 = vunpack.c.h.b16 %v4742
    %v5062 = vunpack.c.l.b16 %v4743
    %v5063 = vunpack.c.h.b16 %v4743
    %v5064 = vunpack.c.l.b16 %v4744
    %v5065 = vunpack.c.h.b16 %v4744
    %v5066 = vunpack.c.l.b16 %v4745
    %v5067 = vunpack.c.h.b16 %v4745
    %v5068 = vunpack.c.l.b16 %v4746
    %v5069 = vunpack.c.h.b16 %v4746
    %v5070 = vunpack.c.l.b16 %v4747
    %v5071 = vunpack.c.h.b16 %v4747
    %v5072 = vunpack.c.l.b16 %v4748
    %v5073 = vunpack.c.h.b16 %v4748
    %v5074 = vunpack.c.l.b16 %v4749
    %v5075 = vunpack.c.h.b16 %v4749
    %v5076 = vunpack.c.l.b16 %v4750
    %v5077 = vunpack.c.h.b16 %v4750
    %v5078 = vunpack.c.l.b16 %v4751
    %v5079 = vunpack.c.h.b16 %v4751
    %v5080 = vunpack.c.l.b16 %v4752
    %v5081 = vunpack.c.h.b16 %v4752
    %v5082 = vunpack.c.l.b16 %v4753
    %v5083 = vunpack.c.h.b16 %v4753
    %v5084 = vunpack.c.l.b16 %v4754
    %v5085 = vunpack.c.h.b16 %v4754
    %v5086 = vunpack.c.l.b16 %v4755
    %v5087 = vunpack.c.h.b16 %v4755
    %v5088 = vunpack.c.l.b16 %v4756
    %v5089 = vunpack.c.h.b16 %v4756
    %v5090 = vunpack.c.l.b16 %v4757
    %v5091 = vunpack.c.h.b16 %v4757
    %v5092 = vunpack.c.l.b16 %v4758
    %v5093 = vunpack.c.h.b16 %v4758
    %v5094 = vunpack.c.l.b16 %v4759
    %v5095 = vunpack.c.h.b16 %v4759
    %v5096 = vunpack.c.l.b16 %v4760
    %v5097 = vunpack.c.h.b16 %v4760
    %v5098 = vunpack.c.l.b16 %v4761
    %v5099 = vunpack.c.h.b16 %v4761
    %v5100 = vunpack.c.l.b16 %v4762
    %v5101 = vunpack.c.h.b16 %v4762
    %v5102 = vunpack.c.l.b16 %v4763
    %v5103 = vunpack.c.h.b16 %v4763
    %v5104 = vunpack.c.l.b16 %v4764
    %v5105 = vunpack.c.h.b16 %v4764
    %v5106 = vunpack.c.l.b16 %v4765
    %v5107 = vunpack.c.h.b16 %v4765
    %v5108 = vunpack.c.l.b16 %v4766
    %v5109 = vunpack.c.h.b16 %v4766
    %v5110 = vunpack.c.l.b16 %v4767
    %v5111 = vunpack.c.h.b16 %v4767
    %v5112 = vunpack.c.l.b16 %v4768
    %v5113 = vunpack.c.h.b16 %v4768
    %v5114 = vunpack.c.l.b16 %v4769
    %v5115 = vunpack.c.h.b16 %v4769
    %v5116 = vunpack.c.l.b16 %v4770
    %v5117 = vunpack.c.h.b16 %v4770
    %v5118 = vunpack.c.l.b16 %v4771
    %v5119 = vunpack.c.h.b16 %v4771
    %v5120 = vunpack.c.l.b16 %v4772
    %v5121 = vunpack.c.h.b16 %v4772
    %v5122 = vunpack.c.l.b16 %v4773
    %v5123 = vunpack.c.h.b16 %v4773
    %v5124 = vunpack.c.l.b16 %v4774
    %v5125 = vunpack.c.h.b16 %v4774
    %v5126 = vunpack.c.l.b16 %v4775
    %v5127 = vunpack.c.h.b16 %v4775
    %v5128 = vunpack.c.l.b16 %v4776
    %v5129 = vunpack.c.h.b16 %v4776
    %v5130 = vunpack.c.l.b16 %v4777
    %v5131 = vunpack.c.h.b16 %v4777
    %v5132 = vunpack.c.l.b16 %v4778
    %v5133 = vunpack.c.h.b16 %v4778
    %v5134 = vunpack.c.l.b16 %v4779
    %v5135 = vunpack.c.h.b16 %v4779
    %v5136 = vunpack.c.l.b16 %v4780
    %v5137 = vunpack.c.h.b16 %v4780
    %v5138 = vunpack.c.l.b16 %v4781
    %v5139 = vunpack.c.h.b16 %v4781
    %v5140 = vunpack.c.l.b16 %v4782
    %v5141 = vunpack.c.h.b16 %v4782
    %v5142 = vunpack.c.l.b16 %v4783
    %v5143 = vunpack.c.h.b16 %v4783
    %v5144 = vunpack.c.l.b16 %v4784
    %v5145 = vunpack.c.h.b16 %v4784
    %v5146 = vunpack.c.l.b16 %v4785
    %v5147 = vunpack.c.h.b16 %v4785
    %v5148 = vunpack.c.l.b16 %v4786
    %v5149 = vunpack.c.h.b16 %v4786
    %v5150 = vunpack.c.l.b16 %v4787
    %v5151 = vunpack.c.h.b16 %v4787
    %v5152 = vunpack.c.l.b16 %v4788
    %v5153 = vunpack.c.h.b16 %v4788
    %v5154 = vunpack.c.l.b16 %v4789
    %v5155 = vunpack.c.h.b16 %v4789
    %v5156 = vunpack.c.l.b16 %v4790
    %v5157 = vunpack.c.h.b16 %v4790
    %v5158 = vunpack.c.l.b16 %v4791
    %v5159 = vunpack.c.h.b16 %v4791
    %v5160 = vunpack.c.l.b16 %v4792
    %v5161 = vunpack.c.h.b16 %v4792
    %v5162 = vunpack.c.l.b16 %v4793
    %v5163 = vunpack.c.h.b16 %v4793
    %v5164 = vunpack.c.l.b16 %v4794
    %v5165 = vunpack.c.h.b16 %v4794
    %v5166 = vunpack.c.l.b16 %v4795
    %v5167 = vunpack.c.h.b16 %v4795
    %v5168 = vunpack.c.l.b16 %v4796
    %v5169 = vunpack.c.h.b16 %v4796
    %v5170 = vunpack.c.l.b16 %v4797
    %v5171 = vunpack.c.h.b16 %v4797
    %v5172 = vunpack.c.l.b16 %v4798
    %v5173 = vunpack.c.h.b16 %v4798
    %v5174 = vunpack.c.l.b16 %v4799
    %v5175 = vunpack.c.h.b16 %v4799
    %v5176 = vunpack.c.l.b16 %v4800
    %v5177 = vunpack.c.h.b16 %v4800
    %v5178 = vunpack.c.l.b16 %v4801
    %v5179 = vunpack.c.h.b16 %v4801
    %v5180 = vunpack.c.l.b16 %v4802
    %v5181 = vunpack.c.h.b16 %v4802
    %v5182 = vunpack.c.l.b16 %v4803
    %v5183 = vunpack.c.h.b16 %v4803
    %v5184 = vunpack.c.l.b16 %v4804
    %v5185 = vunpack.c.h.b16 %v4804
    %v5186 = vunpack.c.l.b16 %v4805
    %v5187 = vunpack.c.h.b16 %v4805
    %v5188 = vunpack.c.l.b16 %v4806
    %v5189 = vunpack.c.h.b16 %v4806
    %v5190 = vunpack.c.l.b16 %v4807
    %v5191 = vunpack.c.h.b16 %v4807
    %v5192 = vunpack.c.l.b16 %v4808
    %v5193 = vunpack.c.h.b16 %v4808
    %v5194 = vunpack.c.l.b16 %v4809
    %v5195 = vunpack.c.h.b16 %v4809
    %v5196 = vunpack.c.l.b16 %v4810
    %v5197 = vunpack.c.h.b16 %v4810
    %v5198 = vunpack.c.l.b16 %v4811
    %v5199 = vunpack.c.h.b16 %v4811
    %v5200 = vunpack.c.l.b16 %v4812
    %v5201 = vunpack.c.h.b16 %v4812
    %v5202 = vunpack.c.l.b16 %v4813
    %v5203 = vunpack.c.h.b16 %v4813
    %v5204 = vunpack.c.l.b16 %v4814
    %v5205 = vunpack.c.h.b16 %v4814
    %v5206 = vunpack.c.l.b16 %v4815
    %v5207 = vunpack.c.h.b16 %v4815
    %v5208 = vunpack.c.l.b16 %v4816
    %v5209 = vunpack.c.h.b16 %v4816
    %v5210 = vunpack.c.l.b16 %v4817
    %v5211 = vunpack.c.h.b16 %v4817
    %v5212 = vpack.c.b16 %v4960, %v4956
    %v5213 = vpack.c.b16 %v4961, %v4957
    %v5214 = vpack.c.b16 %v4962, %v4958
    %v5215 = vpack.c.b16 %v4963, %v4959
    %v5216 = vpack.c.b16 %v4968, %v4964
    %v5217 = vpack.c.b16 %v4969, %v4965
    %v5218 = vpack.c.b16 %v4970, %v4966
    %v5219 = vpack.c.b16 %v4971, %v4967
    %v5220 = vpack.c.b16 %v4976, %v4972
    %v5221 = vpack.c.b16 %v4977, %v4973
    %v5222 = vpack.c.b16 %v4978, %v4974
    %v5223 = vpack.c.b16 %v4979, %v4975
    %v5224 = vpack.c.b16 %v4984, %v4980
    %v5225 = vpack.c.b16 %v4985, %v4981
    %v5226 = vpack.c.b16 %v4986, %v4982
    %v5227 = vpack.c.b16 %v4987, %v4983
    %v5228 = vpack.c.b16 %v4992, %v4988
    %v5229 = vpack.c.b16 %v4993, %v4989
    %v5230 = vpack.c.b16 %v4994, %v4990
    %v5231 = vpack.c.b16 %v4995, %v4991
    %v5232 = vpack.c.b16 %v5000, %v4996
    %v5233 = vpack.c.b16 %v5001, %v4997
    %v5234 = vpack.c.b16 %v5002, %v4998
    %v5235 = vpack.c.b16 %v5003, %v4999
    %v5236 = vpack.c.b16 %v5008, %v5004
    %v5237 = vpack.c.b16 %v5009, %v5005
    %v5238 = vpack.c.b16 %v5010, %v5006
    %v5239 = vpack.c.b16 %v5011, %v5007
    %v5240 = vpack.c.b16 %v5016, %v5012
    %v5241 = vpack.c.b16 %v5017, %v5013
    %v5242 = vpack.c.b16 %v5018, %v5014
    %v5243 = vpack.c.b16 %v5019, %v5015
    %v5244 = vpack.c.b16 %v5024, %v5020
    %v5245 = vpack.c.b16 %v5025, %v5021
    %v5246 = vpack.c.b16 %v5026, %v5022
    %v5247 = vpack.c.b16 %v5027, %v5023
    %v5248 = vpack.c.b16 %v5032, %v5028
    %v5249 = vpack.c.b16 %v5033, %v5029
    %v5250 = vpack.c.b16 %v5034, %v5030
    %v5251 = vpack.c.b16 %v5035, %v5031
    %v5252 = vpack.c.b16 %v5040, %v5036
    %v5253 = vpack.c.b16 %v5041, %v5037
    %v5254 = vpack.c.b16 %v5042, %v5038
    %v5255 = vpack.c.b16 %v5043, %v5039
    %v5256 = vpack.c.b16 %v5048, %v5044
    %v5257 = vpack.c.b16 %v5049, %v5045
    %v5258 = vpack.c.b16 %v5050, %v5046
    %v5259 = vpack.c.b16 %v5051, %v5047
    %v5260 = vpack.c.b16 %v5056, %v5052
    %v5261 = vpack.c.b16 %v5057, %v5053
    %v5262 = vpack.c.b16 %v5058, %v5054
    %v5263 = vpack.c.b16 %v5059, %v5055
    %v5264 = vpack.c.b16 %v5064, %v5060
    %v5265 = vpack.c.b16 %v5065, %v5061
    %v5266 = vpack.c.b16 %v5066, %v5062
    %v5267 = vpack.c.b16 %v5067, %v5063
    %v5268 = vpack.c.b16 %v5072, %v5068
    %v5269 = vpack.c.b16 %v5073, %v5069
    %v5270 = vpack.c.b16 %v5074, %v5070
    %v5271 = vpack.c.b16 %v5075, %v5071
    %v5272 = vpack.c.b16 %v5080, %v5076
    %v5273 = vpack.c.b16 %v5081, %v5077
    %v5274 = vpack.c.b16 %v5082, %v5078
    %v5275 = vpack.c.b16 %v5083, %v5079
    %v5276 = vpack.c.b16 %v5088, %v5084
    %v5277 = vpack.c.b16 %v5089, %v5085
    %v5278 = vpack.c.b16 %v5090, %v5086
    %v5279 = vpack.c.b16 %v5091, %v5087
    %v5280 = vpack.c.b16 %v5096, %v5092
    %v5281 = vpack.c.b16 %v5097, %v5093
    %v5282 = vpack.c.b16 %v5098, %v5094
    %v5283 = vpack.c.b16 %v5099, %v5095
    %v5284 = vpack.c.b16 %v5104, %v5100
    %v5285 = vpack.c.b16 %v5105, %v5101
    %v5286 = vpack.c.b16 %v5106, %v5102
    %v5287 = vpack.c.b16 %v5107, %v5103
    %v5288 = vpack.c.b16 %v5112, %v5108
    %v5289 = vpack.c.b16 %v5113, %v5109
    %v5290 = vpack.c.b16 %v5114, %v5110
    %v5291 = vpack.c.b16 %v5115, %v5111
    %v5292 = vpack.c.b16 %v5120, %v5116
    %v5293 = vpack.c.b16 %v5121, %v5117
    %v5294 = vpack.c.b16 %v5122, %v5118
    %v5295 = vpack.c.b16 %v5123, %v5119
    %v5296 = vpack.c.b16 %v5128, %v5124
    %v5297 = vpack.c.b16 %v5129, %v5125
    %v5298 = vpack.c.b16 %v5130, %v5126
    %v5299 = vpack.c.b16 %v5131, %v5127
    %v5300 = vpack.c.b16 %v5136, %v5132
    %v5301 = vpack.c.b16 %v5137, %v5133
    %v5302 = vpack.c.b16 %v5138, %v5134
    %v5303 = vpack.c.b16 %v5139, %v5135
    %v5304 = vpack.c.b16 %v5144, %v5140
    %v5305 = vpack.c.b16 %v5145, %v5141
    %v5306 = vpack.c.b16 %v5146, %v5142
    %v5307 = vpack.c.b16 %v5147, %v5143
    %v5308 = vpack.c.b16 %v5152, %v5148
    %v5309 = vpack.c.b16 %v5153, %v5149
    %v5310 = vpack.c.b16 %v5154, %v5150
    %v5311 = vpack.c.b16 %v5155, %v5151
    %v5312 = vpack.c.b16 %v5160, %v5156
    %v5313 = vpack.c.b16 %v5161, %v5157
    %v5314 = vpack.c.b16 %v5162, %v5158
    %v5315 = vpack.c.b16 %v5163, %v5159
    %v5316 = vpack.c.b16 %v5168, %v5164
    %v5317 = vpack.c.b16 %v5169, %v5165
    %v5318 = vpack.c.b16 %v5170, %v5166
    %v5319 = vpack.c.b16 %v5171, %v5167
    %v5320 = vpack.c.b16 %v5176, %v5172
    %v5321 = vpack.c.b16 %v5177, %v5173
    %v5322 = vpack.c.b16 %v5178, %v5174
    %v5323 = vpack.c.b16 %v5179, %v5175
    %v5324 = vpack.c.b16 %v5184, %v5180
    %v5325 = vpack.c.b16 %v5185, %v5181
    %v5326 = vpack.c.b16 %v5186, %v5182
    %v5327 = vpack.c.b16 %v5187, %v5183
    %v5328 = vpack.c.b16 %v5192, %v5188
    %v5329 = vpack.c.b16 %v5193, %v5189
    %v5330 = vpack.c.b16 %v5194, %v5190
    %v5331 = vpack.c.b16 %v5195, %v5191
    %v5332 = vpack.c.b16 %v5200, %v5196
    %v5333 = vpack.c.b16 %v5201, %v5197
    %v5334 = vpack.c.b16 %v5202, %v5198
    %v5335 = vpack.c.b16 %v5203, %v5199
    %v5336 = vpack.c.b16 %v5208, %v5204
    %v5337 = vpack.c.b16 %v5209, %v5205
    %v5338 = vpack.c.b16 %v5210, %v5206
    %v5339 = vpack.c.b16 %v5211, %v5207
    %5468 = vmatpush.bf16.msra.mxu0 %v5240
    %5469 = vmatpush.bf16.msra.mxu0 %v5236
    %5470 = vmatpush.bf16.msra.mxu0 %v5232
    %5471 = vmatpush.bf16.msra.mxu0 %v5228
    %5472 = vmatpush.bf16.msra.mxu0 %v5224
    %5473 = vmatpush.bf16.msra.mxu0 %v5220
    %5474 = vmatpush.bf16.msra.mxu0 %v5216
    %5475 = vmatpush.bf16.msra.mxu0 %v5212
    %5476 = vmatmul.bf16.gmra.mxu0 %v4686
    %v5477 = vpop.f32.mrf.mxu0
    %v5478 = vadd.f32 %v4820, %v5477
    %v5479 = vpop.f32.mrf.mxu0
    %5480 = vdwg.mxu0
    %5481 = vmatpush.bf16.msra.mxu0 %v5272
    %5482 = vmatpush.bf16.msra.mxu0 %v5268
    %5483 = vmatpush.bf16.msra.mxu0 %v5264
    %5484 = vmatpush.bf16.msra.mxu0 %v5260
    %5485 = vmatpush.bf16.msra.mxu0 %v5256
    %5486 = vmatpush.bf16.msra.mxu0 %v5252
    %5487 = vmatpush.bf16.msra.mxu0 %v5248
    %5488 = vmatpush.bf16.msra.mxu0 %v5244
    %5489 = vmatmul.bf16.gmra.mxu0 %v4687
    %v5490 = vpop.f32.mrf.mxu0
    %v5491 = vadd.f32 %v5478, %v5490
    %v5492 = vpop.f32.mrf.mxu0
    %5493 = vdwg.mxu0
    %5494 = vmatpush.bf16.msra.mxu0 %v5304
    %5495 = vmatpush.bf16.msra.mxu0 %v5300
    %5496 = vmatpush.bf16.msra.mxu0 %v5296
    %5497 = vmatpush.bf16.msra.mxu0 %v5292
    %5498 = vmatpush.bf16.msra.mxu0 %v5288
    %5499 = vmatpush.bf16.msra.mxu0 %v5284
    %5500 = vmatpush.bf16.msra.mxu0 %v5280
    %5501 = vmatpush.bf16.msra.mxu0 %v5276
    %5502 = vmatmul.bf16.gmra.mxu0 %v4688
    %v5503 = vpop.f32.mrf.mxu0
    %v5504 = vadd.f32 %v5491, %v5503
    %v5505 = vpop.f32.mrf.mxu0
    %5506 = vdwg.mxu0
    %5507 = vmatpush.bf16.msra.mxu0 %v5336
    %5508 = vmatpush.bf16.msra.mxu0 %v5332
    %5509 = vmatpush.bf16.msra.mxu0 %v5328
    %5510 = vmatpush.bf16.msra.mxu0 %v5324
    %5511 = vmatpush.bf16.msra.mxu0 %v5320
    %5512 = vmatpush.bf16.msra.mxu0 %v5316
    %5513 = vmatpush.bf16.msra.mxu0 %v5312
    %5514 = vmatpush.bf16.msra.mxu0 %v5308
    %5515 = vmatmul.bf16.gmra.mxu0 %v4689
    %v5516 = vpop.f32.mrf.mxu0
    %v5517 = vadd.f32 %v5504, %v5516
    %v5518 = vpop.f32.mrf.mxu0
    %5519 = vdwg.mxu0
    %5520 = vmatpush.bf16.msra.mxu0 %v5241
    %5521 = vmatpush.bf16.msra.mxu0 %v5237
    %5522 = vmatpush.bf16.msra.mxu0 %v5233
    %5523 = vmatpush.bf16.msra.mxu0 %v5229
    %5524 = vmatpush.bf16.msra.mxu0 %v5225
    %5525 = vmatpush.bf16.msra.mxu0 %v5221
    %5526 = vmatpush.bf16.msra.mxu0 %v5217
    %5527 = vmatpush.bf16.msra.mxu0 %v5213
    %5528 = vmatmul.bf16.gmra.mxu0 %v4686
    %v5529 = vpop.f32.mrf.mxu0
    %v5530 = vadd.f32 %v4821, %v5529
    %v5531 = vpop.f32.mrf.mxu0
    %5532 = vdwg.mxu0
    %5533 = vmatpush.bf16.msra.mxu0 %v5273
    %5534 = vmatpush.bf16.msra.mxu0 %v5269
    %5535 = vmatpush.bf16.msra.mxu0 %v5265
    %5536 = vmatpush.bf16.msra.mxu0 %v5261
    %5537 = vmatpush.bf16.msra.mxu0 %v5257
    %5538 = vmatpush.bf16.msra.mxu0 %v5253
    %5539 = vmatpush.bf16.msra.mxu0 %v5249
    %5540 = vmatpush.bf16.msra.mxu0 %v5245
    %5541 = vmatmul.bf16.gmra.mxu0 %v4687
    %v5542 = vpop.f32.mrf.mxu0
    %v5543 = vadd.f32 %v5530, %v5542
    %v5544 = vpop.f32.mrf.mxu0
    %5545 = vdwg.mxu0
    %5546 = vmatpush.bf16.msra.mxu0 %v5305
    %5547 = vmatpush.bf16.msra.mxu0 %v5301
    %5548 = vmatpush.bf16.msra.mxu0 %v5297
    %5549 = vmatpush.bf16.msra.mxu0 %v5293
    %5550 = vmatpush.bf16.msra.mxu0 %v5289
    %5551 = vmatpush.bf16.msra.mxu0 %v5285
    %5552 = vmatpush.bf16.msra.mxu0 %v5281
    %5553 = vmatpush.bf16.msra.mxu0 %v5277
    %5554 = vmatmul.bf16.gmra.mxu0 %v4688
    %v5555 = vpop.f32.mrf.mxu0
    %v5556 = vadd.f32 %v5543, %v5555
    %v5557 = vpop.f32.mrf.mxu0
    %5558 = vdwg.mxu0
    %5559 = vmatpush.bf16.msra.mxu0 %v5337
    %5560 = vmatpush.bf16.msra.mxu0 %v5333
    %5561 = vmatpush.bf16.msra.mxu0 %v5329
    %5562 = vmatpush.bf16.msra.mxu0 %v5325
    %5563 = vmatpush.bf16.msra.mxu0 %v5321
    %5564 = vmatpush.bf16.msra.mxu0 %v5317
    %5565 = vmatpush.bf16.msra.mxu0 %v5313
    %5566 = vmatpush.bf16.msra.mxu0 %v5309
    %5567 = vmatmul.bf16.gmra.mxu0 %v4689
    %v5568 = vpop.f32.mrf.mxu0
    %v5569 = vadd.f32 %v5556, %v5568
    %v5570 = vpop.f32.mrf.mxu0
    %5571 = vdwg.mxu0
    %5572 = vmatpush.bf16.msra.mxu0 %v5242
    %5573 = vmatpush.bf16.msra.mxu0 %v5238
    %5574 = vmatpush.bf16.msra.mxu0 %v5234
    %5575 = vmatpush.bf16.msra.mxu0 %v5230
    %5576 = vmatpush.bf16.msra.mxu0 %v5226
    %5577 = vmatpush.bf16.msra.mxu0 %v5222
    %5578 = vmatpush.bf16.msra.mxu0 %v5218
    %5579 = vmatpush.bf16.msra.mxu0 %v5214
    %5580 = vmatmul.bf16.gmra.mxu0 %v4686
    %v5581 = vpop.f32.mrf.mxu0
    %v5582 = vadd.f32 %v4822, %v5581
    %v5583 = vpop.f32.mrf.mxu0
    %5584 = vdwg.mxu0
    %5585 = vmatpush.bf16.msra.mxu0 %v5274
    %5586 = vmatpush.bf16.msra.mxu0 %v5270
    %5587 = vmatpush.bf16.msra.mxu0 %v5266
    %5588 = vmatpush.bf16.msra.mxu0 %v5262
    %5589 = vmatpush.bf16.msra.mxu0 %v5258
    %5590 = vmatpush.bf16.msra.mxu0 %v5254
    %5591 = vmatpush.bf16.msra.mxu0 %v5250
    %5592 = vmatpush.bf16.msra.mxu0 %v5246
    %5593 = vmatmul.bf16.gmra.mxu0 %v4687
    %v5594 = vpop.f32.mrf.mxu0
    %v5595 = vadd.f32 %v5582, %v5594
    %v5596 = vpop.f32.mrf.mxu0
    %5597 = vdwg.mxu0
    %5598 = vmatpush.bf16.msra.mxu0 %v5306
    %5599 = vmatpush.bf16.msra.mxu0 %v5302
    %5600 = vmatpush.bf16.msra.mxu0 %v5298
    %5601 = vmatpush.bf16.msra.mxu0 %v5294
    %5602 = vmatpush.bf16.msra.mxu0 %v5290
    %5603 = vmatpush.bf16.msra.mxu0 %v5286
    %5604 = vmatpush.bf16.msra.mxu0 %v5282
    %5605 = vmatpush.bf16.msra.mxu0 %v5278
    %5606 = vmatmul.bf16.gmra.mxu0 %v4688
    %v5607 = vpop.f32.mrf.mxu0
    %v5608 = vadd.f32 %v5595, %v5607
    %v5609 = vpop.f32.mrf.mxu0
    %5610 = vdwg.mxu0
    %5611 = vmatpush.bf16.msra.mxu0 %v5338
    %5612 = vmatpush.bf16.msra.mxu0 %v5334
    %5613 = vmatpush.bf16.msra.mxu0 %v5330
    %5614 = vmatpush.bf16.msra.mxu0 %v5326
    %5615 = vmatpush.bf16.msra.mxu0 %v5322
    %5616 = vmatpush.bf16.msra.mxu0 %v5318
    %5617 = vmatpush.bf16.msra.mxu0 %v5314
    %5618 = vmatpush.bf16.msra.mxu0 %v5310
    %5619 = vmatmul.bf16.gmra.mxu0 %v4689
    %v5620 = vpop.f32.mrf.mxu0
    %v5621 = vadd.f32 %v5608, %v5620
    %v5622 = vpop.f32.mrf.mxu0
    %5623 = vdwg.mxu0
    %5624 = vmatpush.bf16.msra.mxu0 %v5243
    %5625 = vmatpush.bf16.msra.mxu0 %v5239
    %5626 = vmatpush.bf16.msra.mxu0 %v5235
    %5627 = vmatpush.bf16.msra.mxu0 %v5231
    %5628 = vmatpush.bf16.msra.mxu0 %v5227
    %5629 = vmatpush.bf16.msra.mxu0 %v5223
    %5630 = vmatpush.bf16.msra.mxu0 %v5219
    %5631 = vmatpush.bf16.msra.mxu0 %v5215
    %5632 = vmatmul.bf16.gmra.mxu0 %v4686
    %v5633 = vpop.f32.mrf.mxu0
    %v5634 = vadd.f32 %v4823, %v5633
    %v5635 = vpop.f32.mrf.mxu0
    %5636 = vdwg.mxu0
    %5637 = vmatpush.bf16.msra.mxu0 %v5275
    %5638 = vmatpush.bf16.msra.mxu0 %v5271
    %5639 = vmatpush.bf16.msra.mxu0 %v5267
    %5640 = vmatpush.bf16.msra.mxu0 %v5263
    %5641 = vmatpush.bf16.msra.mxu0 %v5259
    %5642 = vmatpush.bf16.msra.mxu0 %v5255
    %5643 = vmatpush.bf16.msra.mxu0 %v5251
    %5644 = vmatpush.bf16.msra.mxu0 %v5247
    %5645 = vmatmul.bf16.gmra.mxu0 %v4687
    %v5646 = vpop.f32.mrf.mxu0
    %v5647 = vadd.f32 %v5634, %v5646
    %v5648 = vpop.f32.mrf.mxu0
    %5649 = vdwg.mxu0
    %5650 = vmatpush.bf16.msra.mxu0 %v5307
    %5651 = vmatpush.bf16.msra.mxu0 %v5303
    %5652 = vmatpush.bf16.msra.mxu0 %v5299
    %5653 = vmatpush.bf16.msra.mxu0 %v5295
    %5654 = vmatpush.bf16.msra.mxu0 %v5291
    %5655 = vmatpush.bf16.msra.mxu0 %v5287
    %5656 = vmatpush.bf16.msra.mxu0 %v5283
    %5657 = vmatpush.bf16.msra.mxu0 %v5279
    %5658 = vmatmul.bf16.gmra.mxu0 %v4688
    %v5659 = vpop.f32.mrf.mxu0
    %v5660 = vadd.f32 %v5647, %v5659
    %v5661 = vpop.f32.mrf.mxu0
    %5662 = vdwg.mxu0
    %5663 = vmatpush.bf16.msra.mxu0 %v5339
    %5664 = vmatpush.bf16.msra.mxu0 %v5335
    %5665 = vmatpush.bf16.msra.mxu0 %v5331
    %5666 = vmatpush.bf16.msra.mxu0 %v5327
    %5667 = vmatpush.bf16.msra.mxu0 %v5323
    %5668 = vmatpush.bf16.msra.mxu0 %v5319
    %5669 = vmatpush.bf16.msra.mxu0 %v5315
    %5670 = vmatpush.bf16.msra.mxu0 %v5311
    %5671 = vmatmul.bf16.gmra.mxu0 %v4689
    %v5672 = vpop.f32.mrf.mxu0
    %v5673 = vadd.f32 %v5660, %v5672
    %v5674 = vpop.f32.mrf.mxu0
    %5675 = vdwg.mxu0
    %5676 = vst [vmem:[#allocation20] sm:$0xff] %v5517
    %5677 = vst [vmem:[#allocation20 + $0x8] sm:$0xff] %v5569
    %5678 = vst [vmem:[#allocation20 + $0x10] sm:$0xff] %v5621
    %5679 = vst [vmem:[#allocation20 + $0x18] sm:$0xff] %v5673
    // Predicated region
    $region98: #{tpu_custom_call.1} parent=1 // pred_check
      _
    $region99: #{tpu_custom_call.1} parent=1 // pred_check_branch
      %5681 = sbr.rel (0) target = $region101
    $region100: #{tpu_custom_call.1} parent=1 // pred_region
      %5683 = vsyncadd [#allocation4], 0
      %s5685 = sshll.u32 [#allocation20], 4
      %s5686 = int_to_ptr.vmem [resolvable:$true] %s5685
      %s5687 = sshll.u32 %s13, 4
      %s5688 = int_to_ptr.hbm [resolvable:$true] %s5687
      %5690 = dma.vmem_to_hbm [thread:$0]  %s5686, 512, %s5688, [#allocation4]
    $region101: #{tpu_custom_call.1} parent=1 // pred_fallthru
      _
    // Predicated region
    $region102: #{tpu_custom_call.1} parent=1 // pred_check
      _
    $region103: #{tpu_custom_call.1} parent=1 // pred_check_branch
      %5692 = sbr.rel (0) target = $region105
    $region104: #{tpu_custom_call.1} parent=1 // pred_region
      %5694 = dma.done [#allocation4], 512
    $region105: #{tpu_custom_call.1} parent=1 // pred_fallthru
      _
    %5695 = vsyncpa [#allocation3], 1
    %5696 = vsyncpa [#allocation6], 1
    %5697 = vsyncpa [#allocation9], 1
    %5698 = vsyncpa [#allocation12], 1
    %5699 = vsyncpa [#allocation15], 1
    %5700 = vsyncpa [#allocation18], 1
    %5701 = vsyncpa [#allocation4], 1

</llo_original>
